<compile_context>
chip_gen: v6e
topology: v6e:2x2x1
jax: 0.10.0
libtpu: 0.0.40
codegen_flags: <defaults>
</compile_context>

<pallas_src>
import functools
import math

import jax
import jax.numpy as jnp
import numpy as np
from jax.experimental import pallas as pl
from jax.experimental.pallas import tpu as pltpu

_PW = 16    # left halo width in the padded scratch (bf16 sublane tile = 16)
_PR = 8     # right halo width


@functools.lru_cache(maxsize=1)
def _vmem_limit_bytes():
    """Generation-aware VMEM budget: ~75% of physical, capped at 100 MiB."""
    cap = 64 * 1024 * 1024
    try:
        info = pltpu.get_tpu_info()
        cap = int(getattr(info, "vmem_capacity_bytes", cap)) or cap
    except Exception:
        pass
    return int(min(cap * 3 // 4, 100 * 1024 * 1024))


# ----------------------------- Pallas kernels ------------------------------


def _resblock_kernel(x_ref, w1_ref, b1_ref, w2_ref, b2_ref, o_ref, pad_ref,
                     *, res_scale):
    """Fused ResBlock: o = conv3x3(relu(conv3x3(x))) * res_scale + x.

    x_ref : (1, H, W, C) f32       one batch element
    w*_ref: (9, C, C)   bf16       per-tap 3x3 weights (index = kh*3 + kw)
    b*_ref: (1, C)      f32        biases
    pad_ref: VMEM scratch (H+2, W+_PW+_PR, C) bf16 -- zero halo ring with the
             interior stored at sublane offset _PW; padding never touches HBM.
    """
    _, H, W, C = x_ref.shape
    WP = W + _PW + _PR

    # Zero only the halo ring the 3x3 taps can read (interior is fully
    # rewritten by every conv); megacore-safe and O(perimeter) per step.
    zrow = jnp.zeros((1, WP, C), pad_ref.dtype)
    pad_ref[0:1] = zrow
    pad_ref[H + 1:H + 2] = zrow
    zcol = jnp.zeros((H + 2, _PR, C), pad_ref.dtype)
    pad_ref[:, _PW - _PR:_PW] = zcol
    pad_ref[:, _PW + W:_PW + W + _PR] = zcol

    def conv3x3(inp_hwc_bf16, w_ref_, b_ref_):
        # write the (H, W, C) bf16 activation into the scratch interior
        pad_ref[1:H + 1, _PW:_PW + W, :] = inp_hwc_bf16
        acc = None
        for kh in range(3):                     # 9 per-tap MXU matmuls, K = C
            for kw in range(3):
                tap = pad_ref[kh:kh + H, _PW - 1 + kw:_PW - 1 + kw + W, :]
                d = jnp.dot(tap.reshape(H * W, C), w_ref_[kh * 3 + kw],
                            preferred_element_type=jnp.float32)
                acc = d if acc is None else acc + d
        return acc + b_ref_[...]                # (H*W, C) f32

    x = x_ref[0]                                             # (H, W, C)
    h = jnp.maximum(conv3x3(x.astype(jnp.bfloat16), w1_ref, b1_ref), 0.0)
    y = conv3x3(h.astype(jnp.bfloat16).reshape(H, W, C), w2_ref, b2_ref)
    if res_scale != 1.0:
        y = y * res_scale
    y = y + x.astype(jnp.float32).reshape(H * W, C)
    o_ref[...] = y.reshape(1, H, W, C).astype(o_ref.dtype)


def _fuse1x1_kernel(x_ref, up_ref, wt_ref, wb_ref, b_ref, o_ref):
    # out = x @ Wtop + up @ Wbot + bias + x   (lane-dense slab layout)
    x = x_ref[...]
    acc = jnp.dot(x.astype(jnp.bfloat16), wt_ref[...],
                  preferred_element_type=jnp.float32)
    acc = acc + jnp.dot(up_ref[...].astype(jnp.bfloat16), wb_ref[...],
                        preferred_element_type=jnp.float32)
    acc = acc + b_ref[...] + x.astype(jnp.float32)
    o_ref[...] = acc.astype(o_ref.dtype)


def _fuse1x1_extra_kernel(x_ref, up_ref, r_ref, wt_ref, wb_ref, b_ref, o_ref):
    # out = x @ Wtop + up @ Wbot + bias + x + extra_residual
    x = x_ref[...]
    acc = jnp.dot(x.astype(jnp.bfloat16), wt_ref[...],
                  preferred_element_type=jnp.float32)
    acc = acc + jnp.dot(up_ref[...].astype(jnp.bfloat16), wb_ref[...],
                        preferred_element_type=jnp.float32)
    acc = acc + b_ref[...] + x.astype(jnp.float32) + r_ref[...].astype(jnp.float32)
    o_ref[...] = acc.astype(o_ref.dtype)


# ----------------------------- Pallas wrappers ------------------------------


def resblock_fused(x, w1, b1, w2, b2, res_scale=1.0):
    """x: (B,H,W,C) NHWC; w1/w2: (3,3,C,C) HWIO; b1/b2: (C,). SAME padding."""
    B, H, W, C = x.shape
    w1t = w1.reshape(9, C, C).astype(jnp.bfloat16)   # per-tap bf16 weights
    w2t = w2.reshape(9, C, C).astype(jnp.bfloat16)
    kern = functools.partial(_resblock_kernel, res_scale=float(res_scale))
    return pl.pallas_call(
        kern,
        out_shape=jax.ShapeDtypeStruct((B, H, W, C), x.dtype),
        grid=(B,),
        in_specs=[
            pl.BlockSpec((1, H, W, C), lambda b: (b, 0, 0, 0)),
            pl.BlockSpec((9, C, C), lambda b: (0, 0, 0)),
            pl.BlockSpec((1, C), lambda b: (0, 0)),
            pl.BlockSpec((9, C, C), lambda b: (0, 0, 0)),
            pl.BlockSpec((1, C), lambda b: (0, 0)),
        ],
        out_specs=pl.BlockSpec((1, H, W, C), lambda b: (b, 0, 0, 0)),
        scratch_shapes=[pltpu.VMEM((H + 2, W + _PW + _PR, C), jnp.bfloat16)],
        compiler_params=pltpu.CompilerParams(
            dimension_semantics=("parallel",),
            vmem_limit_bytes=_vmem_limit_bytes()),
    )(x, w1t, b1.reshape(1, C), w2t, b2.reshape(1, C))


def fuse1x1(x, up, w, b, extra=None):
    """out = conv1x1(cat(x, up)) + x (+ extra).  All NHWC with C channels.

    Lane-dense slab formulation: G consecutive pixels are grouped into one row
    (target ~512 lanes) and the per-pixel 1x1 conv becomes a matmul against
    the block-diagonal weight kron(I_G, W_sub).  No concat, no zeros residual.
    """
    B, H, W, C = x.shape
    N = B * H * W

    G = 128 // math.gcd(C, 128)                 # minimum group: G*C % 128 == 0
    while N % G:                                # fallback for odd pixel counts
        G //= 2
    while G * C < 512 and N % (2 * G) == 0:     # widen the slab toward 512 lanes
        G *= 2
    rows, lanes = N // G, G * C

    xs = x.reshape(rows, lanes)
    us = up.reshape(rows, lanes)
    eye = jnp.eye(G, dtype=jnp.float32)
    wt = jnp.kron(eye, w[:C, :]).astype(jnp.bfloat16)   # (lanes, lanes) blockdiag
    wb = jnp.kron(eye, w[C:, :]).astype(jnp.bfloat16)
    bt = jnp.tile(b, G).reshape(1, lanes)

    # Row tile: largest power-of-two divisor giving ~2 MiB f32 blocks and,
    # when possible, >= 2 grid steps (v7x megacore).
    cap = min(rows, max(8, (2 * 1024 * 1024) // (lanes * 4)))
    if rows >= 16:
        cap = min(cap, max(8, rows // 2))
    TM, t = rows, 8
    while t <= cap:
        if rows % t == 0:
            TM = t
        t *= 2

    row_spec = pl.BlockSpec((TM, lanes), lambda i: (i, 0))
    const2 = lambda i: (0, 0)

    in_specs = [row_spec, row_spec]
    args = [xs, us]
    if extra is not None:
        in_specs.append(row_spec)
        args.append(extra.reshape(rows, lanes))
    # TODO(synk): constant-index weight specs could be single-buffered
    # (pipeline_mode=pl.Buffered(1)) to shave a little VMEM on v7x.
    in_specs += [
        pl.BlockSpec((lanes, lanes), const2),
        pl.BlockSpec((lanes, lanes), const2),
        pl.BlockSpec((1, lanes), const2),
    ]
    args += [wt, wb, bt]

    kern = _fuse1x1_kernel if extra is None else _fuse1x1_extra_kernel
    out = pl.pallas_call(
        kern,
        out_shape=jax.ShapeDtypeStruct((rows, lanes), x.dtype),
        grid=(rows // TM,),
        in_specs=in_specs,
        out_specs=row_spec,
        compiler_params=pltpu.CompilerParams(
            dimension_semantics=("parallel",),
            vmem_limit_bytes=_vmem_limit_bytes()),
    )(*args)
    return out.reshape(B, H, W, C)


# ------------------------------ plain-JAX glue ------------------------------


def pixel_shuffle_nhwc(x, r):
    """Matches torch.nn.PixelShuffle semantics (channel ordering) in NHWC."""
    B, H, W, C = x.shape
    Cout = C // (r * r)
    x = x.reshape(B, H, W, Cout, r, r)
    x = x.transpose(0, 1, 4, 2, 5, 3)          # (B, H, r, W, r, Cout)
    return x.reshape(B, H * r, W * r, Cout)


def multiblock8_forward(xs_nchw, p, res_scale=1.0):
    """xs_nchw: list of 4 NCHW tensors (256/64/16/4 channels)."""
    x0, x1, x2, x3 = [jnp.transpose(x, (0, 2, 3, 1)) for x in xs_nchw]

    # output[0] = ResBlock(x[0])  (single fused kernel)
    out0 = resblock_fused(x0, p['res_w1'], p['res_b1'],
                          p['res_w2'], p['res_b2'], res_scale)

    # output[1] = fs_1(cat(x[1], up2(out0))) + x[1]
    up2_0 = pixel_shuffle_nhwc(out0, 2)
    out1 = fuse1x1(x1, up2_0, p['fs1_w'], p['fs1_b'])

    # output[2] = fs_2(cat(x[2], up2(out1))) + x[2] + up4(out0)
    up2_1 = pixel_shuffle_nhwc(out1, 2)
    up4_0 = pixel_shuffle_nhwc(out0, 4)
    out2 = fuse1x1(x2, up2_1, p['fs2_w'], p['fs2_b'], extra=up4_0)

    # output[3] = fs_3(cat(x[3], up2(out2))) + x[3] + up8(out0)
    up2_2 = pixel_shuffle_nhwc(out2, 2)
    up8_0 = pixel_shuffle_nhwc(out0, 8)
    out3 = fuse1x1(x3, up2_2, p['fs3_w'], p['fs3_b'], extra=up8_0)

    return [jnp.transpose(o, (0, 3, 1, 2)) for o in (out0, out1, out2, out3)]


# ------------------------- parameters & reference ---------------------------


def init_params(key, n_feats=256, ksize=3):
    ks = jax.random.split(key, 10)

    def wconv(k, kh, kw, cin, cout):
        return jax.random.normal(k, (kh, kw, cin, cout), jnp.float32) / np.sqrt(kh * kw * cin)

    def wdense(k, cin, cout):
        return jax.random.normal(k, (cin, cout), jnp.float32) / np.sqrt(cin)

    def bias(k, c):
        return 0.1 * jax.random.normal(k, (c,), jnp.float32)

    return {
        'res_w1': wconv(ks[0], ksize, ksize, n_feats, n_feats),
        'res_b1': bias(ks[1], n_feats),
        'res_w2': wconv(ks[2], ksize, ksize, n_feats, n_feats),
        'res_b2': bias(ks[3], n_feats),
        'fs1_w': wdense(ks[4], 2 * 64, 64), 'fs1_b': bias(ks[5], 64),
        'fs2_w': wdense(ks[6], 2 * 16, 16), 'fs2_b': bias(ks[7], 16),
        'fs3_w': wdense(ks[8], 2 * 4, 4),   'fs3_b': bias(ks[9], 4),
    }


def ref_forward(xs_nchw, p, res_scale=1.0):
    """Pure-JAX (XLA conv) reference mirroring the PyTorch forward."""
    def conv2d(x, w, b, pad):
        y = jax.lax.conv_general_dilated(
            x, w, (1, 1), pad, dimension_numbers=('NHWC', 'HWIO', 'NHWC'))
        return y + b

    x0, x1, x2, x3 = [jnp.transpose(x, (0, 2, 3, 1)) for x in xs_nchw]
    h = jnp.maximum(conv2d(x0, p['res_w1'], p['res_b1'], 'SAME'), 0.0)
    out0 = conv2d(h, p['res_w2'], p['res_b2'], 'SAME') * res_scale + x0

    up2_0 = pixel_shuffle_nhwc(out0, 2)
    cat1 = jnp.concatenate([x1, up2_0], axis=-1)
    out1 = conv2d(cat1, p['fs1_w'].reshape(1, 1, 128, 64), p['fs1_b'], 'VALID') + x1

    up2_1 = pixel_shuffle_nhwc(out1, 2)
    up4_0 = pixel_shuffle_nhwc(out0, 4)
    cat2 = jnp.concatenate([x2, up2_1], axis=-1)
    out2 = conv2d(cat2, p['fs2_w'].reshape(1, 1, 32, 16), p['fs2_b'], 'VALID') + x2 + up4_0

    up2_2 = pixel_shuffle_nhwc(out2, 2)
    up8_0 = pixel_shuffle_nhwc(out0, 8)
    cat3 = jnp.concatenate([x3, up2_2], axis=-1)
    out3 = conv2d(cat3, p['fs3_w'].reshape(1, 1, 8, 4), p['fs3_b'], 'VALID') + x3 + up8_0

    return [jnp.transpose(o, (0, 3, 1, 2)) for o in (out0, out1, out2, out3)]


# ----------------------------------- main -----------------------------------


if __name__ == "__main__":
    key = jax.random.PRNGKey(0)
    kp, kx = jax.random.split(key)
    n_feats, ksize = 256, 3          # n_feats is forced to 256 by fs_1/fs_2/fs_3
    params = init_params(kp, n_feats, ksize)

    B, H, W = 2, 4, 4
    kxs = jax.random.split(kx, 4)
    xs = [
        jax.random.normal(kxs[0], (B, 256, H, W), jnp.float32),
        jax.random.normal(kxs[1], (B, 64, 2 * H, 2 * W), jnp.float32),
        jax.random.normal(kxs[2], (B, 16, 4 * H, 4 * W), jnp.float32),
        jax.random.normal(kxs[3], (B, 4, 8 * H, 8 * W), jnp.float32),
    ]

    outs = multiblock8_forward(xs, params, res_scale=1.0)
    outs = [jax.block_until_ready(o) for o in outs]

    refs = ref_forward(xs, params, res_scale=1.0)
    expected_shapes = [(B, 256, H, W), (B, 64, 2 * H, 2 * W),
                       (B, 16, 4 * H, 4 * W), (B, 4, 8 * H, 8 * W)]
    for o, r, s in zip(outs, refs, expected_shapes):
        assert o.shape == s, (o.shape, s)
        np.testing.assert_allclose(np.asarray(o), np.asarray(r),
                                   rtol=3e-2, atol=3e-2)

    print("KERNEL_OK")
</pallas_src>

<mosaic_0001>
module attributes {stable_mosaic.version = 11 : i64} {
  func.func @_resblock_kernel(%arg0: i32, %arg1: memref<1x4x4x256xf32, #tpu.memory_space<vmem>>, %arg2: memref<9x256x256xbf16, #tpu.memory_space<vmem>>, %arg3: memref<1x256xf32, #tpu.memory_space<vmem>>, %arg4: memref<9x256x256xbf16, #tpu.memory_space<vmem>>, %arg5: memref<1x256xf32, #tpu.memory_space<vmem>>, %arg6: memref<1x4x4x256xf32, #tpu.memory_space<vmem>>, %arg7: memref<6x28x256xbf16, #tpu.memory_space<vmem>>) attributes {dimension_semantics = [#tpu.dimension_semantics<parallel>], iteration_bounds = array<i64: 2>, scalar_prefetch = 0 : i64, scratch_operands = 1 : i64, tpu.core_type = #tpu.core_type<tc>, window_params = [{transform_indices = @transform_0, window_bounds = array<i64: 1, 4, 4, 256>}, {pipeline_mode = #tpu.pipeline_mode<synchronous>, transform_indices = @transform_1, window_bounds = array<i64: 9, 256, 256>}, {pipeline_mode = #tpu.pipeline_mode<synchronous>, transform_indices = @transform_2, window_bounds = array<i64: 1, 256>}, {pipeline_mode = #tpu.pipeline_mode<synchronous>, transform_indices = @transform_3, window_bounds = array<i64: 9, 256, 256>}, {pipeline_mode = #tpu.pipeline_mode<synchronous>, transform_indices = @transform_4, window_bounds = array<i64: 1, 256>}, {transform_indices = @transform_5, window_bounds = array<i64: 1, 4, 4, 256>}]} {
    %cst = arith.constant 0.000000e+00 : bf16
    %0 = vector.broadcast %cst : bf16 to vector<1x28x256xbf16>
    %c0 = arith.constant 0 : index
    %c0_0 = arith.constant 0 : index
    %c0_1 = arith.constant 0 : index
    %1 = vector.load %arg7[%c0, %c0_0, %c0_1] : memref<6x28x256xbf16, #tpu.memory_space<vmem>>, vector<1x28x256xbf16>
    tpu.vector_store %arg7[%c0, %c0_0, %c0_1], %0 {strides = array<i32>} : memref<6x28x256xbf16, #tpu.memory_space<vmem>>, vector<1x28x256xbf16>,
    %c5 = arith.constant 5 : index
    %c0_2 = arith.constant 0 : index
    %c0_3 = arith.constant 0 : index
    %2 = vector.load %arg7[%c5, %c0_2, %c0_3] : memref<6x28x256xbf16, #tpu.memory_space<vmem>>, vector<1x28x256xbf16>
    tpu.vector_store %arg7[%c5, %c0_2, %c0_3], %0 {strides = array<i32>} : memref<6x28x256xbf16, #tpu.memory_space<vmem>>, vector<1x28x256xbf16>,
    %cst_4 = arith.constant 0.000000e+00 : bf16
    %3 = vector.broadcast %cst_4 : bf16 to vector<6x8x256xbf16>
    %c0_5 = arith.constant 0 : index
    %c8 = arith.constant 8 : index
    %c0_6 = arith.constant 0 : index
    %4 = vector.load %arg7[%c0_5, %c8, %c0_6] : memref<6x28x256xbf16, #tpu.memory_space<vmem>>, vector<6x8x256xbf16>
    tpu.vector_store %arg7[%c0_5, %c8, %c0_6], %3 {strides = array<i32>} : memref<6x28x256xbf16, #tpu.memory_space<vmem>>, vector<6x8x256xbf16>,
    %c0_7 = arith.constant 0 : index
    %c20 = arith.constant 20 : index
    %c0_8 = arith.constant 0 : index
    %5 = vector.load %arg7[%c0_7, %c20, %c0_8] : memref<6x28x256xbf16, #tpu.memory_space<vmem>>, vector<6x8x256xbf16>
    tpu.vector_store %arg7[%c0_7, %c20, %c0_8], %3 {strides = array<i32>} : memref<6x28x256xbf16, #tpu.memory_space<vmem>>, vector<6x8x256xbf16>,
    %c0_9 = arith.constant 0 : index
    %c0_10 = arith.constant 0 : index
    %c0_11 = arith.constant 0 : index
    %c0_12 = arith.constant 0 : index
    %6 = vector.load %arg1[%c0_9, %c0_10, %c0_11, %c0_12] : memref<1x4x4x256xf32, #tpu.memory_space<vmem>>, vector<1x4x4x256xf32>
    %7 = vector.shape_cast %6 : vector<1x4x4x256xf32> to vector<4x4x256xf32>
    %8 = arith.truncf %7 : vector<4x4x256xf32> to vector<4x4x256xbf16>
    %c1 = arith.constant 1 : index
    %c16 = arith.constant 16 : index
    %c0_13 = arith.constant 0 : index
    %9 = vector.load %arg7[%c1, %c16, %c0_13] : memref<6x28x256xbf16, #tpu.memory_space<vmem>>, vector<4x4x256xbf16>
    tpu.vector_store %arg7[%c1, %c16, %c0_13], %8 {strides = array<i32>} : memref<6x28x256xbf16, #tpu.memory_space<vmem>>, vector<4x4x256xbf16>,
    %c0_14 = arith.constant 0 : index
    %c15 = arith.constant 15 : index
    %c0_15 = arith.constant 0 : index
    %10 = vector.load %arg7[%c0_14, %c15, %c0_15] : memref<6x28x256xbf16, #tpu.memory_space<vmem>>, vector<4x4x256xbf16>
    %11 = vector.shape_cast %10 : vector<4x4x256xbf16> to vector<16x256xbf16>
    %c0_16 = arith.constant 0 : index
    %c0_17 = arith.constant 0 : index
    %c0_18 = arith.constant 0 : index
    %12 = vector.load %arg2[%c0_16, %c0_17, %c0_18] : memref<9x256x256xbf16, #tpu.memory_space<vmem>>, vector<1x256x256xbf16>
    %13 = vector.shape_cast %12 : vector<1x256x256xbf16> to vector<256x256xbf16>
    %cst_19 = arith.constant dense<0.000000e+00> : vector<16x256xf32>
    %14 = tpu.matmul %11, %13, %cst_19 {dimension_numbers = #tpu.dot_dimension_numbers<[1], [0], [0], [1], [0, 0, 1, 1], [], []>} : vector<16x256xbf16>, vector<256x256xbf16>, vector<16x256xf32> -> vector<16x256xf32>
    %c0_20 = arith.constant 0 : index
    %c16_21 = arith.constant 16 : index
    %c0_22 = arith.constant 0 : index
    %15 = vector.load %arg7[%c0_20, %c16_21, %c0_22] : memref<6x28x256xbf16, #tpu.memory_space<vmem>>, vector<4x4x256xbf16>
    %16 = vector.shape_cast %15 : vector<4x4x256xbf16> to vector<16x256xbf16>
    %c1_23 = arith.constant 1 : index
    %c0_24 = arith.constant 0 : index
    %c0_25 = arith.constant 0 : index
    %17 = vector.load %arg2[%c1_23, %c0_24, %c0_25] : memref<9x256x256xbf16, #tpu.memory_space<vmem>>, vector<1x256x256xbf16>
    %18 = vector.shape_cast %17 : vector<1x256x256xbf16> to vector<256x256xbf16>
    %cst_26 = arith.constant dense<0.000000e+00> : vector<16x256xf32>
    %19 = tpu.matmul %16, %18, %cst_26 {dimension_numbers = #tpu.dot_dimension_numbers<[1], [0], [0], [1], [0, 0, 1, 1], [], []>} : vector<16x256xbf16>, vector<256x256xbf16>, vector<16x256xf32> -> vector<16x256xf32>
    %20 = arith.addf %14, %19 : vector<16x256xf32>
    %c0_27 = arith.constant 0 : index
    %c17 = arith.constant 17 : index
    %c0_28 = arith.constant 0 : index
    %21 = vector.load %arg7[%c0_27, %c17, %c0_28] : memref<6x28x256xbf16, #tpu.memory_space<vmem>>, vector<4x4x256xbf16>
    %22 = vector.shape_cast %21 : vector<4x4x256xbf16> to vector<16x256xbf16>
    %c2 = arith.constant 2 : index
    %c0_29 = arith.constant 0 : index
    %c0_30 = arith.constant 0 : index
    %23 = vector.load %arg2[%c2, %c0_29, %c0_30] : memref<9x256x256xbf16, #tpu.memory_space<vmem>>, vector<1x256x256xbf16>
    %24 = vector.shape_cast %23 : vector<1x256x256xbf16> to vector<256x256xbf16>
    %cst_31 = arith.constant dense<0.000000e+00> : vector<16x256xf32>
    %25 = tpu.matmul %22, %24, %cst_31 {dimension_numbers = #tpu.dot_dimension_numbers<[1], [0], [0], [1], [0, 0, 1, 1], [], []>} : vector<16x256xbf16>, vector<256x256xbf16>, vector<16x256xf32> -> vector<16x256xf32>
    %26 = arith.addf %20, %25 : vector<16x256xf32>
    %c1_32 = arith.constant 1 : index
    %c15_33 = arith.constant 15 : index
    %c0_34 = arith.constant 0 : index
    %27 = vector.load %arg7[%c1_32, %c15_33, %c0_34] : memref<6x28x256xbf16, #tpu.memory_space<vmem>>, vector<4x4x256xbf16>
    %28 = vector.shape_cast %27 : vector<4x4x256xbf16> to vector<16x256xbf16>
    %c3 = arith.constant 3 : index
    %c0_35 = arith.constant 0 : index
    %c0_36 = arith.constant 0 : index
    %29 = vector.load %arg2[%c3, %c0_35, %c0_36] : memref<9x256x256xbf16, #tpu.memory_space<vmem>>, vector<1x256x256xbf16>
    %30 = vector.shape_cast %29 : vector<1x256x256xbf16> to vector<256x256xbf16>
    %cst_37 = arith.constant dense<0.000000e+00> : vector<16x256xf32>
    %31 = tpu.matmul %28, %30, %cst_37 {dimension_numbers = #tpu.dot_dimension_numbers<[1], [0], [0], [1], [0, 0, 1, 1], [], []>} : vector<16x256xbf16>, vector<256x256xbf16>, vector<16x256xf32> -> vector<16x256xf32>
    %32 = arith.addf %26, %31 : vector<16x256xf32>
    %c1_38 = arith.constant 1 : index
    %c16_39 = arith.constant 16 : index
    %c0_40 = arith.constant 0 : index
    %33 = vector.load %arg7[%c1_38, %c16_39, %c0_40] : memref<6x28x256xbf16, #tpu.memory_space<vmem>>, vector<4x4x256xbf16>
    %34 = vector.shape_cast %33 : vector<4x4x256xbf16> to vector<16x256xbf16>
    %c4 = arith.constant 4 : index
    %c0_41 = arith.constant 0 : index
    %c0_42 = arith.constant 0 : index
    %35 = vector.load %arg2[%c4, %c0_41, %c0_42] : memref<9x256x256xbf16, #tpu.memory_space<vmem>>, vector<1x256x256xbf16>
    %36 = vector.shape_cast %35 : vector<1x256x256xbf16> to vector<256x256xbf16>
    %cst_43 = arith.constant dense<0.000000e+00> : vector<16x256xf32>
    %37 = tpu.matmul %34, %36, %cst_43 {dimension_numbers = #tpu.dot_dimension_numbers<[1], [0], [0], [1], [0, 0, 1, 1], [], []>} : vector<16x256xbf16>, vector<256x256xbf16>, vector<16x256xf32> -> vector<16x256xf32>
    %38 = arith.addf %32, %37 : vector<16x256xf32>
    %c1_44 = arith.constant 1 : index
    %c17_45 = arith.constant 17 : index
    %c0_46 = arith.constant 0 : index
    %39 = vector.load %arg7[%c1_44, %c17_45, %c0_46] : memref<6x28x256xbf16, #tpu.memory_space<vmem>>, vector<4x4x256xbf16>
    %40 = vector.shape_cast %39 : vector<4x4x256xbf16> to vector<16x256xbf16>
    %c5_47 = arith.constant 5 : index
    %c0_48 = arith.constant 0 : index
    %c0_49 = arith.constant 0 : index
    %41 = vector.load %arg2[%c5_47, %c0_48, %c0_49] : memref<9x256x256xbf16, #tpu.memory_space<vmem>>, vector<1x256x256xbf16>
    %42 = vector.shape_cast %41 : vector<1x256x256xbf16> to vector<256x256xbf16>
    %cst_50 = arith.constant dense<0.000000e+00> : vector<16x256xf32>
    %43 = tpu.matmul %40, %42, %cst_50 {dimension_numbers = #tpu.dot_dimension_numbers<[1], [0], [0], [1], [0, 0, 1, 1], [], []>} : vector<16x256xbf16>, vector<256x256xbf16>, vector<16x256xf32> -> vector<16x256xf32>
    %44 = arith.addf %38, %43 : vector<16x256xf32>
    %c2_51 = arith.constant 2 : index
    %c15_52 = arith.constant 15 : index
    %c0_53 = arith.constant 0 : index
    %45 = vector.load %arg7[%c2_51, %c15_52, %c0_53] : memref<6x28x256xbf16, #tpu.memory_space<vmem>>, vector<4x4x256xbf16>
    %46 = vector.shape_cast %45 : vector<4x4x256xbf16> to vector<16x256xbf16>
    %c6 = arith.constant 6 : index
    %c0_54 = arith.constant 0 : index
    %c0_55 = arith.constant 0 : index
    %47 = vector.load %arg2[%c6, %c0_54, %c0_55] : memref<9x256x256xbf16, #tpu.memory_space<vmem>>, vector<1x256x256xbf16>
    %48 = vector.shape_cast %47 : vector<1x256x256xbf16> to vector<256x256xbf16>
    %cst_56 = arith.constant dense<0.000000e+00> : vector<16x256xf32>
    %49 = tpu.matmul %46, %48, %cst_56 {dimension_numbers = #tpu.dot_dimension_numbers<[1], [0], [0], [1], [0, 0, 1, 1], [], []>} : vector<16x256xbf16>, vector<256x256xbf16>, vector<16x256xf32> -> vector<16x256xf32>
    %50 = arith.addf %44, %49 : vector<16x256xf32>
    %c2_57 = arith.constant 2 : index
    %c16_58 = arith.constant 16 : index
    %c0_59 = arith.constant 0 : index
    %51 = vector.load %arg7[%c2_57, %c16_58, %c0_59] : memref<6x28x256xbf16, #tpu.memory_space<vmem>>, vector<4x4x256xbf16>
    %52 = vector.shape_cast %51 : vector<4x4x256xbf16> to vector<16x256xbf16>
    %c7 = arith.constant 7 : index
    %c0_60 = arith.constant 0 : index
    %c0_61 = arith.constant 0 : index
    %53 = vector.load %arg2[%c7, %c0_60, %c0_61] : memref<9x256x256xbf16, #tpu.memory_space<vmem>>, vector<1x256x256xbf16>
    %54 = vector.shape_cast %53 : vector<1x256x256xbf16> to vector<256x256xbf16>
    %cst_62 = arith.constant dense<0.000000e+00> : vector<16x256xf32>
    %55 = tpu.matmul %52, %54, %cst_62 {dimension_numbers = #tpu.dot_dimension_numbers<[1], [0], [0], [1], [0, 0, 1, 1], [], []>} : vector<16x256xbf16>, vector<256x256xbf16>, vector<16x256xf32> -> vector<16x256xf32>
    %56 = arith.addf %50, %55 : vector<16x256xf32>
    %c2_63 = arith.constant 2 : index
    %c17_64 = arith.constant 17 : index
    %c0_65 = arith.constant 0 : index
    %57 = vector.load %arg7[%c2_63, %c17_64, %c0_65] : memref<6x28x256xbf16, #tpu.memory_space<vmem>>, vector<4x4x256xbf16>
    %58 = vector.shape_cast %57 : vector<4x4x256xbf16> to vector<16x256xbf16>
    %c8_66 = arith.constant 8 : index
    %c0_67 = arith.constant 0 : index
    %c0_68 = arith.constant 0 : index
    %59 = vector.load %arg2[%c8_66, %c0_67, %c0_68] : memref<9x256x256xbf16, #tpu.memory_space<vmem>>, vector<1x256x256xbf16>
    %60 = vector.shape_cast %59 : vector<1x256x256xbf16> to vector<256x256xbf16>
    %cst_69 = arith.constant dense<0.000000e+00> : vector<16x256xf32>
    %61 = tpu.matmul %58, %60, %cst_69 {dimension_numbers = #tpu.dot_dimension_numbers<[1], [0], [0], [1], [0, 0, 1, 1], [], []>} : vector<16x256xbf16>, vector<256x256xbf16>, vector<16x256xf32> -> vector<16x256xf32>
    %62 = arith.addf %56, %61 : vector<16x256xf32>
    %c0_70 = arith.constant 0 : index
    %c0_71 = arith.constant 0 : index
    %63 = vector.load %arg3[%c0_70, %c0_71] : memref<1x256xf32, #tpu.memory_space<vmem>>, vector<1x256xf32>
    %64 = vector.broadcast %63 : vector<1x256xf32> to vector<16x256xf32>
    %65 = arith.addf %62, %64 : vector<16x256xf32>
    %cst_72 = arith.constant 0.000000e+00 : f32
    %66 = vector.broadcast %cst_72 : f32 to vector<16x256xf32>
    %67 = arith.maximumf %65, %66 : vector<16x256xf32>
    %68 = arith.truncf %67 : vector<16x256xf32> to vector<16x256xbf16>
    %69 = vector.shape_cast %68 : vector<16x256xbf16> to vector<4x4x256xbf16>
    %c1_73 = arith.constant 1 : index
    %c16_74 = arith.constant 16 : index
    %c0_75 = arith.constant 0 : index
    %70 = vector.load %arg7[%c1_73, %c16_74, %c0_75] : memref<6x28x256xbf16, #tpu.memory_space<vmem>>, vector<4x4x256xbf16>
    tpu.vector_store %arg7[%c1_73, %c16_74, %c0_75], %69 {strides = array<i32>} : memref<6x28x256xbf16, #tpu.memory_space<vmem>>, vector<4x4x256xbf16>,
    %c0_76 = arith.constant 0 : index
    %c15_77 = arith.constant 15 : index
    %c0_78 = arith.constant 0 : index
    %71 = vector.load %arg7[%c0_76, %c15_77, %c0_78] : memref<6x28x256xbf16, #tpu.memory_space<vmem>>, vector<4x4x256xbf16>
    %72 = vector.shape_cast %71 : vector<4x4x256xbf16> to vector<16x256xbf16>
    %c0_79 = arith.constant 0 : index
    %c0_80 = arith.constant 0 : index
    %c0_81 = arith.constant 0 : index
    %73 = vector.load %arg4[%c0_79, %c0_80, %c0_81] : memref<9x256x256xbf16, #tpu.memory_space<vmem>>, vector<1x256x256xbf16>
    %74 = vector.shape_cast %73 : vector<1x256x256xbf16> to vector<256x256xbf16>
    %cst_82 = arith.constant dense<0.000000e+00> : vector<16x256xf32>
    %75 = tpu.matmul %72, %74, %cst_82 {dimension_numbers = #tpu.dot_dimension_numbers<[1], [0], [0], [1], [0, 0, 1, 1], [], []>} : vector<16x256xbf16>, vector<256x256xbf16>, vector<16x256xf32> -> vector<16x256xf32>
    %c0_83 = arith.constant 0 : index
    %c16_84 = arith.constant 16 : index
    %c0_85 = arith.constant 0 : index
    %76 = vector.load %arg7[%c0_83, %c16_84, %c0_85] : memref<6x28x256xbf16, #tpu.memory_space<vmem>>, vector<4x4x256xbf16>
    %77 = vector.shape_cast %76 : vector<4x4x256xbf16> to vector<16x256xbf16>
    %c1_86 = arith.constant 1 : index
    %c0_87 = arith.constant 0 : index
    %c0_88 = arith.constant 0 : index
    %78 = vector.load %arg4[%c1_86, %c0_87, %c0_88] : memref<9x256x256xbf16, #tpu.memory_space<vmem>>, vector<1x256x256xbf16>
    %79 = vector.shape_cast %78 : vector<1x256x256xbf16> to vector<256x256xbf16>
    %cst_89 = arith.constant dense<0.000000e+00> : vector<16x256xf32>
    %80 = tpu.matmul %77, %79, %cst_89 {dimension_numbers = #tpu.dot_dimension_numbers<[1], [0], [0], [1], [0, 0, 1, 1], [], []>} : vector<16x256xbf16>, vector<256x256xbf16>, vector<16x256xf32> -> vector<16x256xf32>
    %81 = arith.addf %75, %80 : vector<16x256xf32>
    %c0_90 = arith.constant 0 : index
    %c17_91 = arith.constant 17 : index
    %c0_92 = arith.constant 0 : index
    %82 = vector.load %arg7[%c0_90, %c17_91, %c0_92] : memref<6x28x256xbf16, #tpu.memory_space<vmem>>, vector<4x4x256xbf16>
    %83 = vector.shape_cast %82 : vector<4x4x256xbf16> to vector<16x256xbf16>
    %c2_93 = arith.constant 2 : index
    %c0_94 = arith.constant 0 : index
    %c0_95 = arith.constant 0 : index
    %84 = vector.load %arg4[%c2_93, %c0_94, %c0_95] : memref<9x256x256xbf16, #tpu.memory_space<vmem>>, vector<1x256x256xbf16>
    %85 = vector.shape_cast %84 : vector<1x256x256xbf16> to vector<256x256xbf16>
    %cst_96 = arith.constant dense<0.000000e+00> : vector<16x256xf32>
    %86 = tpu.matmul %83, %85, %cst_96 {dimension_numbers = #tpu.dot_dimension_numbers<[1], [0], [0], [1], [0, 0, 1, 1], [], []>} : vector<16x256xbf16>, vector<256x256xbf16>, vector<16x256xf32> -> vector<16x256xf32>
    %87 = arith.addf %81, %86 : vector<16x256xf32>
    %c1_97 = arith.constant 1 : index
    %c15_98 = arith.constant 15 : index
    %c0_99 = arith.constant 0 : index
    %88 = vector.load %arg7[%c1_97, %c15_98, %c0_99] : memref<6x28x256xbf16, #tpu.memory_space<vmem>>, vector<4x4x256xbf16>
    %89 = vector.shape_cast %88 : vector<4x4x256xbf16> to vector<16x256xbf16>
    %c3_100 = arith.constant 3 : index
    %c0_101 = arith.constant 0 : index
    %c0_102 = arith.constant 0 : index
    %90 = vector.load %arg4[%c3_100, %c0_101, %c0_102] : memref<9x256x256xbf16, #tpu.memory_space<vmem>>, vector<1x256x256xbf16>
    %91 = vector.shape_cast %90 : vector<1x256x256xbf16> to vector<256x256xbf16>
    %cst_103 = arith.constant dense<0.000000e+00> : vector<16x256xf32>
    %92 = tpu.matmul %89, %91, %cst_103 {dimension_numbers = #tpu.dot_dimension_numbers<[1], [0], [0], [1], [0, 0, 1, 1], [], []>} : vector<16x256xbf16>, vector<256x256xbf16>, vector<16x256xf32> -> vector<16x256xf32>
    %93 = arith.addf %87, %92 : vector<16x256xf32>
    %c1_104 = arith.constant 1 : index
    %c16_105 = arith.constant 16 : index
    %c0_106 = arith.constant 0 : index
    %94 = vector.load %arg7[%c1_104, %c16_105, %c0_106] : memref<6x28x256xbf16, #tpu.memory_space<vmem>>, vector<4x4x256xbf16>
    %95 = vector.shape_cast %94 : vector<4x4x256xbf16> to vector<16x256xbf16>
    %c4_107 = arith.constant 4 : index
    %c0_108 = arith.constant 0 : index
    %c0_109 = arith.constant 0 : index
    %96 = vector.load %arg4[%c4_107, %c0_108, %c0_109] : memref<9x256x256xbf16, #tpu.memory_space<vmem>>, vector<1x256x256xbf16>
    %97 = vector.shape_cast %96 : vector<1x256x256xbf16> to vector<256x256xbf16>
    %cst_110 = arith.constant dense<0.000000e+00> : vector<16x256xf32>
    %98 = tpu.matmul %95, %97, %cst_110 {dimension_numbers = #tpu.dot_dimension_numbers<[1], [0], [0], [1], [0, 0, 1, 1], [], []>} : vector<16x256xbf16>, vector<256x256xbf16>, vector<16x256xf32> -> vector<16x256xf32>
    %99 = arith.addf %93, %98 : vector<16x256xf32>
    %c1_111 = arith.constant 1 : index
    %c17_112 = arith.constant 17 : index
    %c0_113 = arith.constant 0 : index
    %100 = vector.load %arg7[%c1_111, %c17_112, %c0_113] : memref<6x28x256xbf16, #tpu.memory_space<vmem>>, vector<4x4x256xbf16>
    %101 = vector.shape_cast %100 : vector<4x4x256xbf16> to vector<16x256xbf16>
    %c5_114 = arith.constant 5 : index
    %c0_115 = arith.constant 0 : index
    %c0_116 = arith.constant 0 : index
    %102 = vector.load %arg4[%c5_114, %c0_115, %c0_116] : memref<9x256x256xbf16, #tpu.memory_space<vmem>>, vector<1x256x256xbf16>
    %103 = vector.shape_cast %102 : vector<1x256x256xbf16> to vector<256x256xbf16>
    %cst_117 = arith.constant dense<0.000000e+00> : vector<16x256xf32>
    %104 = tpu.matmul %101, %103, %cst_117 {dimension_numbers = #tpu.dot_dimension_numbers<[1], [0], [0], [1], [0, 0, 1, 1], [], []>} : vector<16x256xbf16>, vector<256x256xbf16>, vector<16x256xf32> -> vector<16x256xf32>
    %105 = arith.addf %99, %104 : vector<16x256xf32>
    %c2_118 = arith.constant 2 : index
    %c15_119 = arith.constant 15 : index
    %c0_120 = arith.constant 0 : index
    %106 = vector.load %arg7[%c2_118, %c15_119, %c0_120] : memref<6x28x256xbf16, #tpu.memory_space<vmem>>, vector<4x4x256xbf16>
    %107 = vector.shape_cast %106 : vector<4x4x256xbf16> to vector<16x256xbf16>
    %c6_121 = arith.constant 6 : index
    %c0_122 = arith.constant 0 : index
    %c0_123 = arith.constant 0 : index
    %108 = vector.load %arg4[%c6_121, %c0_122, %c0_123] : memref<9x256x256xbf16, #tpu.memory_space<vmem>>, vector<1x256x256xbf16>
    %109 = vector.shape_cast %108 : vector<1x256x256xbf16> to vector<256x256xbf16>
    %cst_124 = arith.constant dense<0.000000e+00> : vector<16x256xf32>
    %110 = tpu.matmul %107, %109, %cst_124 {dimension_numbers = #tpu.dot_dimension_numbers<[1], [0], [0], [1], [0, 0, 1, 1], [], []>} : vector<16x256xbf16>, vector<256x256xbf16>, vector<16x256xf32> -> vector<16x256xf32>
    %111 = arith.addf %105, %110 : vector<16x256xf32>
    %c2_125 = arith.constant 2 : index
    %c16_126 = arith.constant 16 : index
    %c0_127 = arith.constant 0 : index
    %112 = vector.load %arg7[%c2_125, %c16_126, %c0_127] : memref<6x28x256xbf16, #tpu.memory_space<vmem>>, vector<4x4x256xbf16>
    %113 = vector.shape_cast %112 : vector<4x4x256xbf16> to vector<16x256xbf16>
    %c7_128 = arith.constant 7 : index
    %c0_129 = arith.constant 0 : index
    %c0_130 = arith.constant 0 : index
    %114 = vector.load %arg4[%c7_128, %c0_129, %c0_130] : memref<9x256x256xbf16, #tpu.memory_space<vmem>>, vector<1x256x256xbf16>
    %115 = vector.shape_cast %114 : vector<1x256x256xbf16> to vector<256x256xbf16>
    %cst_131 = arith.constant dense<0.000000e+00> : vector<16x256xf32>
    %116 = tpu.matmul %113, %115, %cst_131 {dimension_numbers = #tpu.dot_dimension_numbers<[1], [0], [0], [1], [0, 0, 1, 1], [], []>} : vector<16x256xbf16>, vector<256x256xbf16>, vector<16x256xf32> -> vector<16x256xf32>
    %117 = arith.addf %111, %116 : vector<16x256xf32>
    %c2_132 = arith.constant 2 : index
    %c17_133 = arith.constant 17 : index
    %c0_134 = arith.constant 0 : index
    %118 = vector.load %arg7[%c2_132, %c17_133, %c0_134] : memref<6x28x256xbf16, #tpu.memory_space<vmem>>, vector<4x4x256xbf16>
    %119 = vector.shape_cast %118 : vector<4x4x256xbf16> to vector<16x256xbf16>
    %c8_135 = arith.constant 8 : index
    %c0_136 = arith.constant 0 : index
    %c0_137 = arith.constant 0 : index
    %120 = vector.load %arg4[%c8_135, %c0_136, %c0_137] : memref<9x256x256xbf16, #tpu.memory_space<vmem>>, vector<1x256x256xbf16>
    %121 = vector.shape_cast %120 : vector<1x256x256xbf16> to vector<256x256xbf16>
    %cst_138 = arith.constant dense<0.000000e+00> : vector<16x256xf32>
    %122 = tpu.matmul %119, %121, %cst_138 {dimension_numbers = #tpu.dot_dimension_numbers<[1], [0], [0], [1], [0, 0, 1, 1], [], []>} : vector<16x256xbf16>, vector<256x256xbf16>, vector<16x256xf32> -> vector<16x256xf32>
    %123 = arith.addf %117, %122 : vector<16x256xf32>
    %c0_139 = arith.constant 0 : index
    %c0_140 = arith.constant 0 : index
    %124 = vector.load %arg5[%c0_139, %c0_140] : memref<1x256xf32, #tpu.memory_space<vmem>>, vector<1x256xf32>
    %125 = vector.broadcast %124 : vector<1x256xf32> to vector<16x256xf32>
    %126 = arith.addf %123, %125 : vector<16x256xf32>
    %127 = vector.shape_cast %7 : vector<4x4x256xf32> to vector<16x256xf32>
    %128 = arith.addf %126, %127 : vector<16x256xf32>
    %129 = vector.shape_cast %128 : vector<16x256xf32> to vector<1x4x4x256xf32>
    %c0_141 = arith.constant 0 : index
    %c0_142 = arith.constant 0 : index
    %c0_143 = arith.constant 0 : index
    %c0_144 = arith.constant 0 : index
    %130 = vector.load %arg6[%c0_141, %c0_142, %c0_143, %c0_144] : memref<1x4x4x256xf32, #tpu.memory_space<vmem>>, vector<1x4x4x256xf32>
    tpu.vector_store %arg6[%c0_141, %c0_142, %c0_143, %c0_144], %129 {strides = array<i32>} : memref<1x4x4x256xf32, #tpu.memory_space<vmem>>, vector<1x4x4x256xf32>,
    return
  }
  func.func @transform_0(%arg0: i32) -> (i32, i32, i32, i32) {
    %c0_i32 = arith.constant 0 : i32
    %c0_i32_0 = arith.constant 0 : i32
    %c0_i32_1 = arith.constant 0 : i32
    %c0_i32_2 = arith.constant 0 : i32
    return %arg0, %c0_i32, %c0_i32_0, %c0_i32_1 : i32, i32, i32, i32
  }
  func.func @transform_1(%arg0: i32) -> (i32, i32, i32) {
    %c0_i32 = arith.constant 0 : i32
    %c0_i32_0 = arith.constant 0 : i32
    %c0_i32_1 = arith.constant 0 : i32
    %c0_i32_2 = arith.constant 0 : i32
    return %c0_i32, %c0_i32_0, %c0_i32_1 : i32, i32, i32
  }
  func.func @transform_2(%arg0: i32) -> (i32, i32) {
    %c0_i32 = arith.constant 0 : i32
    %c0_i32_0 = arith.constant 0 : i32
    %c0_i32_1 = arith.constant 0 : i32
    return %c0_i32, %c0_i32_0 : i32, i32
  }
  func.func @transform_3(%arg0: i32) -> (i32, i32, i32) {
    %c0_i32 = arith.constant 0 : i32
    %c0_i32_0 = arith.constant 0 : i32
    %c0_i32_1 = arith.constant 0 : i32
    %c0_i32_2 = arith.constant 0 : i32
    return %c0_i32, %c0_i32_0, %c0_i32_1 : i32, i32, i32
  }
  func.func @transform_4(%arg0: i32) -> (i32, i32) {
    %c0_i32 = arith.constant 0 : i32
    %c0_i32_0 = arith.constant 0 : i32
    %c0_i32_1 = arith.constant 0 : i32
    return %c0_i32, %c0_i32_0 : i32, i32
  }
  func.func @transform_5(%arg0: i32) -> (i32, i32, i32, i32) {
    %c0_i32 = arith.constant 0 : i32
    %c0_i32_0 = arith.constant 0 : i32
    %c0_i32_1 = arith.constant 0 : i32
    %c0_i32_2 = arith.constant 0 : i32
    return %arg0, %c0_i32, %c0_i32_0, %c0_i32_1 : i32, i32, i32, i32
  }
}

</mosaic_0001>

<llo_original>
// kernel: tpu_custom_call.1
$region0: #{tpu_custom_call.1}
  #allocation0 [shape = 'u32[]', space=smem, size = 0x4, offset = 0x4, fixed_abs, tag = 'smem constant byte address 0x4 - core index']
  #allocation1 [shape = 'u32[144,128]{1,0:T(1,128)}', space=vmem, size = 0x12000, scoped, tag = 'internal scratch']
  #allocation2 [shape = 'bf16[6,28,256]{2,1,0:T(8,128)(2,1)}', space=vmem, size = 0x18000, scoped, tag = 'scratch operand']
  %s0 = inlined_call_operand.hbm [shape: f32[2,4,4,256], index: 0, kind: input, shape index: {}]
  %s1 = inlined_call_operand.hbm [shape: bf16[9,256,256], index: 1, kind: input, shape index: {}]
  %s2 = inlined_call_operand.hbm [shape: f32[1,256], index: 2, kind: input, shape index: {}]
  %s3 = inlined_call_operand.hbm [shape: bf16[9,256,256], index: 3, kind: input, shape index: {}]
  %s4 = inlined_call_operand.hbm [shape: f32[1,256], index: 4, kind: input, shape index: {}]
  %s5 = inlined_call_operand.hbm [shape: f32[2,4,4,256], index: 5, kind: output, shape index: {}]
  %s6 = sld [smem:[#allocation0]]
  $region73: #{tpu_custom_call.1} parent=0
    _
  %s8 = ssub.s32 1, %s6
  %s9 = scalar_select 0, %s8, %s6
  $region1: #{tpu_custom_call.1} parent=0
    #allocation3 [shape = 'u8[32768]{0}', space=vmem, size = 0x8000, scoped, tag = 'input window, operand 0']
    #allocation4 [shape = 's32[2]{0}', space=sflag, size = 0x8, scoped, tag = 'scoped memory for tpu_custom_call.1']
    #allocation5 [shape = 's32[2]{0}', space=sflag, size = 0x8, scoped, tag = 'scoped memory for tpu_custom_call.1']
    #allocation6 [shape = 'u8[1179648]{0}', space=vmem, size = 0x120000, scoped, tag = 'input window, operand 1, single buffered']
    #allocation7 [shape = 's32[1]{0}', space=sflag, size = 0x4, scoped, tag = 'scoped memory for tpu_custom_call.1']
    #allocation8 [shape = 'u8[1024]{0}', space=vmem, size = 0x400, scoped, tag = 'input window, operand 2, single buffered']
    #allocation9 [shape = 'u8[1179648]{0}', space=vmem, size = 0x120000, scoped, tag = 'input window, operand 3, single buffered']
    #allocation10 [shape = 's32[1]{0}', space=sflag, size = 0x4, scoped, tag = 'scoped memory for tpu_custom_call.1']
    #allocation11 [shape = 'u8[1024]{0}', space=vmem, size = 0x400, scoped, tag = 'input window, operand 4, single buffered']
    #allocation12 [shape = 'u8[32768]{0}', space=vmem, size = 0x8000, scoped, tag = 'output window, operand 0']
    %10 = vsyncpa [#allocation4], 0
    %s11 = scalar_lea.sflag [#allocation4], 1
    %12 = vsyncpa %s11, 0
    %13 = vsyncpa [#allocation7], 0
    %14 = vsyncpa [#allocation10], 0
    %15 = vsyncpa [#allocation5], 0
    %s16 = scalar_lea.sflag [#allocation5], 1
    %17 = vsyncpa %s16, 0
    loop: start=0, step=1, limit=4
    $region2: #{tpu_custom_call.1} parent=1 // loop_pre_header
      _
    $region3: #{tpu_custom_call.1} parent=1 // loop_header
      %s19 = sphi 0, %s23
      %p20 = scmp.ge.s32.totalorder %s19, 4
      %s29 = sphi 0, %s31
      %s32 = sphi 0, %s29
      %s33 = sphi 0, %s32
      %s49 = sphi 0, %s33
      %s53 = sphi 0, %s53
      %s55 = sphi 0, %s53
      %s56 = sphi 0, %s55
      %s70 = sphi 0, %s56
      %s74 = sphi 0, %s74
      %s76 = sphi 0, %s74
      %s77 = sphi 0, %s76
      %s91 = sphi 0, %s77
      %s95 = sphi 0, %s95
      %s97 = sphi 0, %s95
      %s98 = sphi 0, %s97
      %s112 = sphi 0, %s98
      %s116 = sphi 0, %s116
      %s118 = sphi 0, %s116
      %s119 = sphi 0, %s118
      %s133 = sphi 0, %s119
      %s139 = sphi 0, %s141
      %s142 = sphi 0, %s139
      %s143 = sphi 0, %s142
      %s159 = sphi 0, %s143
    $region4: #{tpu_custom_call.1} parent=1 // loop_header_branch
      %22 = sbr.rel (%p20) target = $region8
    $region5: #{tpu_custom_call.1} parent=1 // loop_body
      %s24 = ssub.s32 %s19, 1
      %s25 = ssub.s32 %s19, 2
      %s26 = sadd.s32 %s19, 1
      %s27 = ssub.s32 %s19, %s26
      %p28 = scmp.eq.s32.totalorder %s27, 0
      %s30 = sadd.s32 %s29, 1
      %s31 = scalar_select %p28, %s29, %s30
      %p34 = pneg %p28
      %p35 = scmp.eq.s32.totalorder %s19, 1
      %p36 = por %p34, %p35
      %p37 = scmp.ne.s32.totalorder %s29, %s32
      %p38 = scmp.eq.s32.totalorder %s19, 0
      %p39 = por %p37, %p38
      %p40 = scmp.ne.s32.totalorder %s29, %s32
      %p41 = scmp.eq.s32.totalorder %s24, 1
      %p42 = por %p40, %p41
      %p43 = scmp.ne.s32.totalorder %s32, %s33
      %p44 = scmp.eq.s32.totalorder %s24, 0
      %p45 = por %p43, %p44
      %p46 = scmp.ne.s32.totalorder %s32, %s33
      %p47 = scmp.eq.s32.totalorder %s25, 1
      %p48 = por %p46, %p47
      %p50 = scmp.ne.s32.totalorder %s33, %s49
      %p51 = scmp.eq.s32.totalorder %s25, 0
      %p52 = por %p50, %p51
      %s54 = sadd.s32 %s53, 1
      %p57 = scmp.eq.s32.totalorder %s19, 1
      %p58 = scmp.ne.s32.totalorder %s53, %s55
      %p59 = scmp.eq.s32.totalorder %s19, 0
      %p60 = por %p58, %p59
      %p61 = scmp.ne.s32.totalorder %s53, %s55
      %p62 = scmp.eq.s32.totalorder %s24, 1
      %p63 = por %p61, %p62
      %p64 = scmp.ne.s32.totalorder %s55, %s56
      %p65 = scmp.eq.s32.totalorder %s24, 0
      %p66 = por %p64, %p65
      %p67 = scmp.ne.s32.totalorder %s55, %s56
      %p68 = scmp.eq.s32.totalorder %s25, 1
      %p69 = por %p67, %p68
      %p71 = scmp.ne.s32.totalorder %s56, %s70
      %p72 = scmp.eq.s32.totalorder %s25, 0
      %p73 = por %p71, %p72
      %s75 = sadd.s32 %s74, 1
      %p78 = scmp.eq.s32.totalorder %s19, 1
      %p79 = scmp.ne.s32.totalorder %s74, %s76
      %p80 = scmp.eq.s32.totalorder %s19, 0
      %p81 = por %p79, %p80
      %p82 = scmp.ne.s32.totalorder %s74, %s76
      %p83 = scmp.eq.s32.totalorder %s24, 1
      %p84 = por %p82, %p83
      %p85 = scmp.ne.s32.totalorder %s76, %s77
      %p86 = scmp.eq.s32.totalorder %s24, 0
      %p87 = por %p85, %p86
      %p88 = scmp.ne.s32.totalorder %s76, %s77
      %p89 = scmp.eq.s32.totalorder %s25, 1
      %p90 = por %p88, %p89
      %p92 = scmp.ne.s32.totalorder %s77, %s91
      %p93 = scmp.eq.s32.totalorder %s25, 0
      %p94 = por %p92, %p93
      %s96 = sadd.s32 %s95, 1
      %p99 = scmp.eq.s32.totalorder %s19, 1
      %p100 = scmp.ne.s32.totalorder %s95, %s97
      %p101 = scmp.eq.s32.totalorder %s19, 0
      %p102 = por %p100, %p101
      %p103 = scmp.ne.s32.totalorder %s95, %s97
      %p104 = scmp.eq.s32.totalorder %s24, 1
      %p105 = por %p103, %p104
      %p106 = scmp.ne.s32.totalorder %s97, %s98
      %p107 = scmp.eq.s32.totalorder %s24, 0
      %p108 = por %p106, %p107
      %p109 = scmp.ne.s32.totalorder %s97, %s98
      %p110 = scmp.eq.s32.totalorder %s25, 1
      %p111 = por %p109, %p110
      %p113 = scmp.ne.s32.totalorder %s98, %s112
      %p114 = scmp.eq.s32.totalorder %s25, 0
      %p115 = por %p113, %p114
      %s117 = sadd.s32 %s116, 1
      %p120 = scmp.eq.s32.totalorder %s19, 1
      %p121 = scmp.ne.s32.totalorder %s116, %s118
      %p122 = scmp.eq.s32.totalorder %s19, 0
      %p123 = por %p121, %p122
      %p124 = scmp.ne.s32.totalorder %s116, %s118
      %p125 = scmp.eq.s32.totalorder %s24, 1
      %p126 = por %p124, %p125
      %p127 = scmp.ne.s32.totalorder %s118, %s119
      %p128 = scmp.eq.s32.totalorder %s24, 0
      %p129 = por %p127, %p128
      %p130 = scmp.ne.s32.totalorder %s118, %s119
      %p131 = scmp.eq.s32.totalorder %s25, 1
      %p132 = por %p130, %p131
      %p134 = scmp.ne.s32.totalorder %s119, %s133
      %p135 = scmp.eq.s32.totalorder %s25, 0
      %p136 = por %p134, %p135
      %s137 = ssub.s32 %s19, %s26
      %p138 = scmp.eq.s32.totalorder %s137, 0
      %s140 = sadd.s32 %s139, 1
      %s141 = scalar_select %p138, %s139, %s140
      %p144 = pneg %p138
      %p145 = scmp.eq.s32.totalorder %s19, 1
      %p146 = por %p144, %p145
      %p147 = scmp.ne.s32.totalorder %s139, %s142
      %p148 = scmp.eq.s32.totalorder %s19, 0
      %p149 = por %p147, %p148
      %p150 = scmp.ne.s32.totalorder %s139, %s142
      %p151 = scmp.eq.s32.totalorder %s24, 1
      %p152 = por %p150, %p151
      %p153 = scmp.ne.s32.totalorder %s142, %s143
      %p154 = scmp.eq.s32.totalorder %s24, 0
      %p155 = por %p153, %p154
      %p156 = scmp.ne.s32.totalorder %s142, %s143
      %p157 = scmp.eq.s32.totalorder %s25, 1
      %p158 = por %p156, %p157
      %p160 = scmp.ne.s32.totalorder %s143, %s159
      %p161 = scmp.eq.s32.totalorder %s25, 0
      %p162 = por %p160, %p161
      %p163 = scmp.le.s32.totalorder 1, %s19
      %p164 = scmp.lt.s32.totalorder %s19, 3
      %p165 = pnand %p163, %p164
      %p166 = pneg %p165
      // Predicated region
      $region9: #{tpu_custom_call.1} parent=5 // pred_check
        _
      $region10: #{tpu_custom_call.1} parent=5 // pred_check_branch
        %168 = sbr.rel (%p165) target = $region12
      $region11: #{tpu_custom_call.1} parent=5 // pred_region
        %s169 = ssub.s32 %s19, 1
        // Predicated region
        $region13: #{tpu_custom_call.1} parent=11 // pred_check
          %p170 = pneg %p66
        $region14: #{tpu_custom_call.1} parent=11 // pred_check_branch
          %172 = sbr.rel (%p170) target = $region16
        $region15: #{tpu_custom_call.1} parent=11 // pred_region
          %s174 = ssub.s32 36864, 36864
          %175 = vsyncadd [#allocation7], %s174
          %s176 = sshll.u32 [#allocation6], 4
          %s177 = int_to_ptr.vmem [resolvable:$true] %s176
          %182 = dma.hbm_to_vmem [thread:$0]  %s1, 36864, %s177, [#allocation7], 128, 128, 8
        $region16: #{tpu_custom_call.1} parent=11 // pred_fallthru
          _
        // Predicated region
        $region17: #{tpu_custom_call.1} parent=11 // pred_check
          %p183 = pneg %p87
        $region18: #{tpu_custom_call.1} parent=11 // pred_check_branch
          %185 = sbr.rel (%p183) target = $region20
        $region19: #{tpu_custom_call.1} parent=11 // pred_region
          %s187 = ssub.s32 32, 32
          %188 = vsyncadd [#allocation7], %s187
          %s190 = sshll.u32 [#allocation8], 4
          %s191 = int_to_ptr.vmem [resolvable:$true] %s190
          %193 = dma.hbm_to_vmem [thread:$0]  %s2, 32, %s191, [#allocation7]
        $region20: #{tpu_custom_call.1} parent=11 // pred_fallthru
          _
        // Predicated region
        $region21: #{tpu_custom_call.1} parent=11 // pred_check
          %p194 = pneg %p108
        $region22: #{tpu_custom_call.1} parent=11 // pred_check_branch
          %196 = sbr.rel (%p194) target = $region24
        $region23: #{tpu_custom_call.1} parent=11 // pred_region
          %s198 = ssub.s32 36864, 36864
          %199 = vsyncadd [#allocation10], %s198
          %s200 = sshll.u32 [#allocation9], 4
          %s201 = int_to_ptr.vmem [resolvable:$true] %s200
          %206 = dma.hbm_to_vmem [thread:$0]  %s3, 36864, %s201, [#allocation10], 128, 128, 8
        $region24: #{tpu_custom_call.1} parent=11 // pred_fallthru
          _
        // Predicated region
        $region25: #{tpu_custom_call.1} parent=11 // pred_check
          %p207 = pneg %p129
        $region26: #{tpu_custom_call.1} parent=11 // pred_check_branch
          %209 = sbr.rel (%p207) target = $region28
        $region27: #{tpu_custom_call.1} parent=11 // pred_region
          %s211 = ssub.s32 32, 32
          %212 = vsyncadd [#allocation10], %s211
          %s214 = sshll.u32 [#allocation11], 4
          %s215 = int_to_ptr.vmem [resolvable:$true] %s214
          %217 = dma.hbm_to_vmem [thread:$0]  %s4, 32, %s215, [#allocation10]
        $region28: #{tpu_custom_call.1} parent=11 // pred_fallthru
          _
      $region12: #{tpu_custom_call.1} parent=5 // pred_fallthru
        _
      %p218 = scmp.lt.s32.totalorder %s19, 2
      // Predicated region
      $region29: #{tpu_custom_call.1} parent=5 // pred_check
        %p219 = pneg %p218
      $region30: #{tpu_custom_call.1} parent=5 // pred_check_branch
        %221 = sbr.rel (%p219) target = $region32
      $region31: #{tpu_custom_call.1} parent=5 // pred_region
        // Predicated region
        $region33: #{tpu_custom_call.1} parent=31 // pred_check
          %p222 = pneg %p39
        $region34: #{tpu_custom_call.1} parent=31 // pred_check_branch
          %224 = sbr.rel (%p222) target = $region36
        $region35: #{tpu_custom_call.1} parent=31 // pred_region
          %s225 = sand.u32 %s29, 1
          %s226 = scalar_lea.sflag [#allocation4], %s225
          %s227 = sand.u32 %s29, 1
          %s228 = smul.addr %s227, 32
          %s229 = scalar_lea.vmem [#allocation3], %s228
          %s231 = ssub.s32 512, 512
          %232 = vsyncadd %s226, %s231
          %s233 = smul.addr %s19, 8
          %s234 = smul.addr %s233, 64
          %s235 = scalar_lea.hbm %s0, %s234
          %s236 = sshll.u32 %s229, 4
          %s237 = int_to_ptr.vmem [resolvable:$true] %s236
          %242 = dma.hbm_to_vmem [thread:$0]  %s235, 512, %s237, %s226, 128, 128, 8
        $region36: #{tpu_custom_call.1} parent=31 // pred_fallthru
          _
      $region32: #{tpu_custom_call.1} parent=5 // pred_fallthru
        _
      %p243 = scmp.le.s32.totalorder 1, %s19
      %p244 = scmp.lt.s32.totalorder %s19, 3
      %p245 = pnand %p243, %p244
      %p246 = pneg %p245
      // Predicated region
      $region37: #{tpu_custom_call.1} parent=5 // pred_check
        _
      $region38: #{tpu_custom_call.1} parent=5 // pred_check_branch
        %248 = sbr.rel (%p245) target = $region40
      $region39: #{tpu_custom_call.1} parent=5 // pred_region
        %s249 = ssub.s32 %s19, 1
        %s250 = sand.u32 %s32, 1
        %s251 = scalar_lea.sflag [#allocation4], %s250
        %s252 = sand.u32 %s32, 1
        %s253 = smul.addr %s252, 32
        %s254 = scalar_lea.vmem [#allocation3], %s253
        // Predicated region
        $region41: #{tpu_custom_call.1} parent=39 // pred_check
          %p255 = pneg %p45
        $region42: #{tpu_custom_call.1} parent=39 // pred_check_branch
          %257 = sbr.rel (%p255) target = $region44
        $region43: #{tpu_custom_call.1} parent=39 // pred_region
          %258 = dma.done %s251, 512
        $region44: #{tpu_custom_call.1} parent=39 // pred_fallthru
          _
        // Predicated region
        $region45: #{tpu_custom_call.1} parent=39 // pred_check
          %p259 = pneg %p66
        $region46: #{tpu_custom_call.1} parent=39 // pred_check_branch
          %261 = sbr.rel (%p259) target = $region48
        $region47: #{tpu_custom_call.1} parent=39 // pred_region
          %262 = dma.done [#allocation7], 36864
        $region48: #{tpu_custom_call.1} parent=39 // pred_fallthru
          _
        // Predicated region
        $region49: #{tpu_custom_call.1} parent=39 // pred_check
          %p263 = pneg %p87
        $region50: #{tpu_custom_call.1} parent=39 // pred_check_branch
          %265 = sbr.rel (%p263) target = $region52
        $region51: #{tpu_custom_call.1} parent=39 // pred_region
          %266 = dma.done [#allocation7], 32
        $region52: #{tpu_custom_call.1} parent=39 // pred_fallthru
          _
        // Predicated region
        $region53: #{tpu_custom_call.1} parent=39 // pred_check
          %p267 = pneg %p108
        $region54: #{tpu_custom_call.1} parent=39 // pred_check_branch
          %269 = sbr.rel (%p267) target = $region56
        $region55: #{tpu_custom_call.1} parent=39 // pred_region
          %270 = dma.done [#allocation10], 36864
        $region56: #{tpu_custom_call.1} parent=39 // pred_fallthru
          _
        // Predicated region
        $region57: #{tpu_custom_call.1} parent=39 // pred_check
          %p271 = pneg %p129
        $region58: #{tpu_custom_call.1} parent=39 // pred_check_branch
          %273 = sbr.rel (%p271) target = $region60
        $region59: #{tpu_custom_call.1} parent=39 // pred_region
          %274 = dma.done [#allocation10], 32
        $region60: #{tpu_custom_call.1} parent=39 // pred_fallthru
          _
        %s275 = sand.u32 %s32, 1
        %s276 = scalar_lea.sflag [#allocation4], %s275
        %s277 = sand.u32 %s32, 1
        %s278 = smul.addr %s277, 32
        %s279 = scalar_lea.vmem [#allocation3], %s278
        %p280 = pneg %p45
        %p281 = pneg %p42
        %p282 = pneg %p66
        %p283 = pneg %p63
        %p284 = pneg %p87
        %p285 = pneg %p84
        %p286 = pneg %p108
        %p287 = pneg %p105
        %p288 = pneg %p129
        %p289 = pneg %p126
        %p290 = pneg %p155
        %p291 = pneg %p152
        %s292 = sand.u32 %s142, 1
        %s293 = scalar_lea.sflag [#allocation5], %s292
        %s294 = sand.u32 %s142, 1
        %s295 = smul.addr %s294, 32
        %s296 = scalar_lea.vmem [#allocation12], %s295
        %298 = vst [vmem:[#allocation2] sm:$0xff] 0
        %299 = vst [vmem:[#allocation2 + $0x8] sm:$0xff] 0
        %300 = vst [vmem:[#allocation2 + $0x10] sm:$0xff] 0
        %301 = vst [vmem:[#allocation2 + $0x18] sm:$0x33] 0
        %s302 = scalar_lea.vmem [#allocation2], 160
        %303 = vst [vmem:[%s302] sm:$0xff] 0
        %304 = vst [vmem:[%s302 + $0x8] sm:$0xff] 0
        %305 = vst [vmem:[%s302 + $0x10] sm:$0xff] 0
        %306 = vst [vmem:[%s302 + $0x18] sm:$0x33] 0
        %307 = vst [vmem:[#allocation2 + $0x8] sm:$0xff] 0
        %308 = vst [vmem:[#allocation2 + $0x28] sm:$0xff] 0
        %309 = vst [vmem:[#allocation2 + $0x48] sm:$0xff] 0
        %310 = vst [vmem:[#allocation2 + $0x68] sm:$0xff] 0
        %311 = vst [vmem:[#allocation2 + $0x88] sm:$0xff] 0
        %312 = vst [vmem:[#allocation2 + $0xa8] sm:$0xff] 0
        %313 = vst [vmem:[#allocation2 + $0x10] sm:$0xcc] 0
        %314 = vst [vmem:[#allocation2 + $0x18] sm:$0x33] 0
        %315 = vst [vmem:[#allocation2 + $0x30] sm:$0xcc] 0
        %316 = vst [vmem:[#allocation2 + $0x38] sm:$0x33] 0
        %317 = vst [vmem:[#allocation2 + $0x50] sm:$0xcc] 0
        %318 = vst [vmem:[#allocation2 + $0x58] sm:$0x33] 0
        %319 = vst [vmem:[#allocation2 + $0x70] sm:$0xcc] 0
        %320 = vst [vmem:[#allocation2 + $0x78] sm:$0x33] 0
        %321 = vst [vmem:[#allocation2 + $0x90] sm:$0xcc] 0
        %322 = vst [vmem:[#allocation2 + $0x98] sm:$0x33] 0
        %323 = vst [vmem:[#allocation2 + $0xb0] sm:$0xcc] 0
        %324 = vst [vmem:[#allocation2 + $0xb8] sm:$0x33] 0
        %v325 = vld [vmem:[%s254] sm:$0xff]
        %v326 = vld [vmem:[%s254 + $0x8] sm:$0xff]
        %v327 = vld [vmem:[%s254 + $0x10] sm:$0xff]
        %v328 = vld [vmem:[%s254 + $0x18] sm:$0xff]
        %v333 = vcombine.high %v325, %v325
        %v334 = vcombine.high %v326, %v326
        %v335 = vcombine.high %v327, %v327
        %v336 = vcombine.high %v328, %v328
        %v341 = vpack.c.bf16 %v325, %v325
        %v342 = vpack.c.bf16 %v333, %v333
        %v343 = vpack.c.bf16 %v326, %v326
        %v344 = vpack.c.bf16 %v334, %v334
        %v345 = vpack.c.bf16 %v327, %v327
        %v346 = vpack.c.bf16 %v335, %v335
        %v347 = vpack.c.bf16 %v328, %v328
        %v348 = vpack.c.bf16 %v336, %v336
        %v357 = vunpack.c.l.b16 %v341
        %v358 = vunpack.c.l.b16 %v342
        %v359 = vunpack.c.l.b16 %v343
        %v360 = vunpack.c.l.b16 %v344
        %v361 = vunpack.c.l.b16 %v345
        %v362 = vunpack.c.l.b16 %v346
        %v363 = vunpack.c.l.b16 %v347
        %v364 = vunpack.c.l.b16 %v348
        %v365 = vpack.c.b16 %v358, %v357
        %v366 = vpack.c.b16 %v360, %v359
        %v367 = vpack.c.b16 %v362, %v361
        %v368 = vpack.c.b16 %v364, %v363
        %s373 = scalar_lea.vmem [#allocation2], 32
        %374 = vst [vmem:[%s373 + $0x10] sm:$0x33] %v365
        %375 = vst [vmem:[%s373 + $0x30] sm:$0x33] %v366
        %376 = vst [vmem:[%s373 + $0x50] sm:$0x33] %v367
        %377 = vst [vmem:[%s373 + $0x70] sm:$0x33] %v368
        %v378 = vld [vmem:[#allocation2 + $0x8] sm:$0x88]
        %v379 = vld [vmem:[#allocation2 + $0x10] sm:$0x33]
        %v380 = vld [vmem:[#allocation2 + $0x28] sm:$0x88]
        %v381 = vld [vmem:[#allocation2 + $0x30] sm:$0x33]
        %v382 = vld [vmem:[#allocation2 + $0x48] sm:$0x88]
        %v383 = vld [vmem:[#allocation2 + $0x50] sm:$0x33]
        %v384 = vld [vmem:[#allocation2 + $0x68] sm:$0x88]
        %v385 = vld [vmem:[#allocation2 + $0x70] sm:$0x33]
        %v395 = vunpack.c.l.s4 1983009808
        %v396 = vunpack.c.0.s8 %v395
        %v397 = vlaneseq
        %v398 = vshrl.u32 %v397, 7
        %v399 = vsub.s32 %v396, %v398
        %v400 = vrot.slane %v378, %v399
        %v401 = vcombine.high %v400, %v400
        %v403 = vunpack.c.l.s4 1983009808
        %v404 = vunpack.c.0.s8 %v403
        %v405 = vlaneseq
        %v406 = vshrl.u32 %v405, 7
        %v407 = vsub.s32 %v404, %v406
        %v408 = vrot.slane %v379, %v407
        %v410 = vunpack.c.l.s4 1983009808
        %v411 = vunpack.c.0.s8 %v410
        %v412 = vlaneseq
        %v413 = vshrl.u32 %v412, 7
        %v414 = vsub.s32 %v411, %v413
        %v415 = vrot.slane %v380, %v414
        %v416 = vcombine.high %v415, %v415
        %v418 = vunpack.c.l.s4 1983009808
        %v419 = vunpack.c.0.s8 %v418
        %v420 = vlaneseq
        %v421 = vshrl.u32 %v420, 7
        %v422 = vsub.s32 %v419, %v421
        %v423 = vrot.slane %v381, %v422
        %v425 = vunpack.c.l.s4 1983009808
        %v426 = vunpack.c.0.s8 %v425
        %v427 = vlaneseq
        %v428 = vshrl.u32 %v427, 7
        %v429 = vsub.s32 %v426, %v428
        %v430 = vrot.slane %v382, %v429
        %v431 = vcombine.high %v430, %v430
        %v433 = vunpack.c.l.s4 1983009808
        %v434 = vunpack.c.0.s8 %v433
        %v435 = vlaneseq
        %v436 = vshrl.u32 %v435, 7
        %v437 = vsub.s32 %v434, %v436
        %v438 = vrot.slane %v383, %v437
        %v440 = vunpack.c.l.s4 1983009808
        %v441 = vunpack.c.0.s8 %v440
        %v442 = vlaneseq
        %v443 = vshrl.u32 %v442, 7
        %v444 = vsub.s32 %v441, %v443
        %v445 = vrot.slane %v384, %v444
        %v446 = vcombine.high %v445, %v445
        %v448 = vunpack.c.l.s4 1983009808
        %v449 = vunpack.c.0.s8 %v448
        %v450 = vlaneseq
        %v451 = vshrl.u32 %v450, 7
        %v452 = vsub.s32 %v449, %v451
        %v453 = vrot.slane %v385, %v452
        %vm454 = vsmask.f32 256
        %vm455 = vsmask.f32 2312
        %vm456 = vmor %vm454, %vm455
        %vm457 = vsmask.f32 4368
        %vm458 = vmor %vm456, %vm457
        %vm459 = vsmask.f32 6424
        %vm460 = vmor %vm458, %vm459
        %v462 = vshrl.u32 %v401, 16
        %v464 = vrot.slane %v462, 7
        %v465 = vrot.slane %v464, 2
        %v467 = vshrl.u32 %v408, 16
        %v469 = vrot.slane %v467, 7
        %v470 = vshll.u32 %v408, 16
        %v472 = vor.u32 %v469, %v470
        %v473 = vsel %vm460, %v465, %v472
        %v475 = vshrl.u32 %v416, 16
        %v477 = vrot.slane %v475, 7
        %v478 = vrot.slane %v477, 2
        %v480 = vshrl.u32 %v423, 16
        %v482 = vrot.slane %v480, 7
        %v483 = vshll.u32 %v423, 16
        %v485 = vor.u32 %v482, %v483
        %v486 = vsel %vm460, %v478, %v485
        %v488 = vshrl.u32 %v431, 16
        %v490 = vrot.slane %v488, 7
        %v491 = vrot.slane %v490, 2
        %v493 = vshrl.u32 %v438, 16
        %v495 = vrot.slane %v493, 7
        %v496 = vshll.u32 %v438, 16
        %v498 = vor.u32 %v495, %v496
        %v499 = vsel %vm460, %v491, %v498
        %v501 = vshrl.u32 %v446, 16
        %v503 = vrot.slane %v501, 7
        %v504 = vrot.slane %v503, 2
        %v506 = vshrl.u32 %v453, 16
        %v508 = vrot.slane %v506, 7
        %v509 = vshll.u32 %v453, 16
        %v511 = vor.u32 %v508, %v509
        %v512 = vsel %vm460, %v504, %v511
        %v513 = vld [vmem:[#allocation6] sm:$0xff]
        %v514 = vld [vmem:[#allocation6 + $0x8] sm:$0xff]
        %v515 = vld [vmem:[#allocation6 + $0x10] sm:$0xff]
        %v516 = vld [vmem:[#allocation6 + $0x18] sm:$0xff]
        %v517 = vld [vmem:[#allocation6 + $0x20] sm:$0xff]
        %v518 = vld [vmem:[#allocation6 + $0x28] sm:$0xff]
        %v519 = vld [vmem:[#allocation6 + $0x30] sm:$0xff]
        %v520 = vld [vmem:[#allocation6 + $0x38] sm:$0xff]
        %v521 = vld [vmem:[#allocation6 + $0x40] sm:$0xff]
        %v522 = vld [vmem:[#allocation6 + $0x48] sm:$0xff]
        %v523 = vld [vmem:[#allocation6 + $0x50] sm:$0xff]
        %v524 = vld [vmem:[#allocation6 + $0x58] sm:$0xff]
        %v525 = vld [vmem:[#allocation6 + $0x60] sm:$0xff]
        %v526 = vld [vmem:[#allocation6 + $0x68] sm:$0xff]
        %v527 = vld [vmem:[#allocation6 + $0x70] sm:$0xff]
        %v528 = vld [vmem:[#allocation6 + $0x78] sm:$0xff]
        %v529 = vld [vmem:[#allocation6 + $0x80] sm:$0xff]
        %v530 = vld [vmem:[#allocation6 + $0x88] sm:$0xff]
        %v531 = vld [vmem:[#allocation6 + $0x90] sm:$0xff]
        %v532 = vld [vmem:[#allocation6 + $0x98] sm:$0xff]
        %v533 = vld [vmem:[#allocation6 + $0xa0] sm:$0xff]
        %v534 = vld [vmem:[#allocation6 + $0xa8] sm:$0xff]
        %v535 = vld [vmem:[#allocation6 + $0xb0] sm:$0xff]
        %v536 = vld [vmem:[#allocation6 + $0xb8] sm:$0xff]
        %v537 = vld [vmem:[#allocation6 + $0xc0] sm:$0xff]
        %v538 = vld [vmem:[#allocation6 + $0xc8] sm:$0xff]
        %v539 = vld [vmem:[#allocation6 + $0xd0] sm:$0xff]
        %v540 = vld [vmem:[#allocation6 + $0xd8] sm:$0xff]
        %v541 = vld [vmem:[#allocation6 + $0xe0] sm:$0xff]
        %v542 = vld [vmem:[#allocation6 + $0xe8] sm:$0xff]
        %v543 = vld [vmem:[#allocation6 + $0xf0] sm:$0xff]
        %v544 = vld [vmem:[#allocation6 + $0xf8] sm:$0xff]
        %s545 = scalar_lea.vmem [#allocation6], 256
        %v546 = vld [vmem:[%s545] sm:$0xff]
        %v547 = vld [vmem:[%s545 + $0x8] sm:$0xff]
        %v548 = vld [vmem:[%s545 + $0x10] sm:$0xff]
        %v549 = vld [vmem:[%s545 + $0x18] sm:$0xff]
        %v550 = vld [vmem:[%s545 + $0x20] sm:$0xff]
        %v551 = vld [vmem:[%s545 + $0x28] sm:$0xff]
        %v552 = vld [vmem:[%s545 + $0x30] sm:$0xff]
        %v553 = vld [vmem:[%s545 + $0x38] sm:$0xff]
        %v554 = vld [vmem:[%s545 + $0x40] sm:$0xff]
        %v555 = vld [vmem:[%s545 + $0x48] sm:$0xff]
        %v556 = vld [vmem:[%s545 + $0x50] sm:$0xff]
        %v557 = vld [vmem:[%s545 + $0x58] sm:$0xff]
        %v558 = vld [vmem:[%s545 + $0x60] sm:$0xff]
        %v559 = vld [vmem:[%s545 + $0x68] sm:$0xff]
        %v560 = vld [vmem:[%s545 + $0x70] sm:$0xff]
        %v561 = vld [vmem:[%s545 + $0x78] sm:$0xff]
        %v562 = vld [vmem:[%s545 + $0x80] sm:$0xff]
        %v563 = vld [vmem:[%s545 + $0x88] sm:$0xff]
        %v564 = vld [vmem:[%s545 + $0x90] sm:$0xff]
        %v565 = vld [vmem:[%s545 + $0x98] sm:$0xff]
        %v566 = vld [vmem:[%s545 + $0xa0] sm:$0xff]
        %v567 = vld [vmem:[%s545 + $0xa8] sm:$0xff]
        %v568 = vld [vmem:[%s545 + $0xb0] sm:$0xff]
        %v569 = vld [vmem:[%s545 + $0xb8] sm:$0xff]
        %v570 = vld [vmem:[%s545 + $0xc0] sm:$0xff]
        %v571 = vld [vmem:[%s545 + $0xc8] sm:$0xff]
        %v572 = vld [vmem:[%s545 + $0xd0] sm:$0xff]
        %v573 = vld [vmem:[%s545 + $0xd8] sm:$0xff]
        %v574 = vld [vmem:[%s545 + $0xe0] sm:$0xff]
        %v575 = vld [vmem:[%s545 + $0xe8] sm:$0xff]
        %v576 = vld [vmem:[%s545 + $0xf0] sm:$0xff]
        %v577 = vld [vmem:[%s545 + $0xf8] sm:$0xff]
        %v578 = vcombine.low %v408, %v423
        %v579 = vcombine.low %v438, %v453
        %v581 = vunpack.c.l.s4 1983009808
        %v582 = vunpack.c.0.s8 %v581
        %v583 = vlaneseq
        %v584 = vshrl.u32 %v583, 7
        %v585 = vsub.s32 %v582, %v584
        %v586 = vrot.slane %v578, %v585
        %v588 = vunpack.c.l.s4 1983009808
        %v589 = vunpack.c.0.s8 %v588
        %v590 = vlaneseq
        %v591 = vshrl.u32 %v590, 7
        %v592 = vsub.s32 %v589, %v591
        %v593 = vrot.slane %v579, %v592
        %v594 = vcombine.low %v586, %v593
        %v595 = vcombine.high %v586, %v593
        %v630 = vunpack.c.l.b16 %v546
        %v631 = vunpack.c.h.b16 %v546
        %v632 = vunpack.c.l.b16 %v547
        %v633 = vunpack.c.h.b16 %v547
        %v634 = vunpack.c.l.b16 %v548
        %v635 = vunpack.c.h.b16 %v548
        %v636 = vunpack.c.l.b16 %v549
        %v637 = vunpack.c.h.b16 %v549
        %v638 = vunpack.c.l.b16 %v550
        %v639 = vunpack.c.h.b16 %v550
        %v640 = vunpack.c.l.b16 %v551
        %v641 = vunpack.c.h.b16 %v551
        %v642 = vunpack.c.l.b16 %v552
        %v643 = vunpack.c.h.b16 %v552
        %v644 = vunpack.c.l.b16 %v553
        %v645 = vunpack.c.h.b16 %v553
        %v646 = vunpack.c.l.b16 %v554
        %v647 = vunpack.c.h.b16 %v554
        %v648 = vunpack.c.l.b16 %v555
        %v649 = vunpack.c.h.b16 %v555
        %v650 = vunpack.c.l.b16 %v556
        %v651 = vunpack.c.h.b16 %v556
        %v652 = vunpack.c.l.b16 %v557
        %v653 = vunpack.c.h.b16 %v557
        %v654 = vunpack.c.l.b16 %v558
        %v655 = vunpack.c.h.b16 %v558
        %v656 = vunpack.c.l.b16 %v559
        %v657 = vunpack.c.h.b16 %v559
        %v658 = vunpack.c.l.b16 %v560
        %v659 = vunpack.c.h.b16 %v560
        %v660 = vunpack.c.l.b16 %v561
        %v661 = vunpack.c.h.b16 %v561
        %v662 = vunpack.c.l.b16 %v562
        %v663 = vunpack.c.h.b16 %v562
        %v664 = vunpack.c.l.b16 %v563
        %v665 = vunpack.c.h.b16 %v563
        %v666 = vunpack.c.l.b16 %v564
        %v667 = vunpack.c.h.b16 %v564
        %v668 = vunpack.c.l.b16 %v565
        %v669 = vunpack.c.h.b16 %v565
        %v670 = vunpack.c.l.b16 %v566
        %v671 = vunpack.c.h.b16 %v566
        %v672 = vunpack.c.l.b16 %v567
        %v673 = vunpack.c.h.b16 %v567
        %v674 = vunpack.c.l.b16 %v568
        %v675 = vunpack.c.h.b16 %v568
        %v676 = vunpack.c.l.b16 %v569
        %v677 = vunpack.c.h.b16 %v569
        %v678 = vunpack.c.l.b16 %v570
        %v679 = vunpack.c.h.b16 %v570
        %v680 = vunpack.c.l.b16 %v571
        %v681 = vunpack.c.h.b16 %v571
        %v682 = vunpack.c.l.b16 %v572
        %v683 = vunpack.c.h.b16 %v572
        %v684 = vunpack.c.l.b16 %v573
        %v685 = vunpack.c.h.b16 %v573
        %v686 = vunpack.c.l.b16 %v574
        %v687 = vunpack.c.h.b16 %v574
        %v688 = vunpack.c.l.b16 %v575
        %v689 = vunpack.c.h.b16 %v575
        %v690 = vunpack.c.l.b16 %v576
        %v691 = vunpack.c.h.b16 %v576
        %v692 = vunpack.c.l.b16 %v577
        %v693 = vunpack.c.h.b16 %v577
        %v694 = vpack.c.b16 %v632, %v630
        %v695 = vpack.c.b16 %v633, %v631
        %v696 = vpack.c.b16 %v636, %v634
        %v697 = vpack.c.b16 %v637, %v635
        %v698 = vpack.c.b16 %v640, %v638
        %v699 = vpack.c.b16 %v641, %v639
        %v700 = vpack.c.b16 %v644, %v642
        %v701 = vpack.c.b16 %v645, %v643
        %v702 = vpack.c.b16 %v648, %v646
        %v703 = vpack.c.b16 %v649, %v647
        %v704 = vpack.c.b16 %v652, %v650
        %v705 = vpack.c.b16 %v653, %v651
        %v706 = vpack.c.b16 %v656, %v654
        %v707 = vpack.c.b16 %v657, %v655
        %v708 = vpack.c.b16 %v660, %v658
        %v709 = vpack.c.b16 %v661, %v659
        %v710 = vpack.c.b16 %v664, %v662
        %v711 = vpack.c.b16 %v665, %v663
        %v712 = vpack.c.b16 %v668, %v666
        %v713 = vpack.c.b16 %v669, %v667
        %v714 = vpack.c.b16 %v672, %v670
        %v715 = vpack.c.b16 %v673, %v671
        %v716 = vpack.c.b16 %v676, %v674
        %v717 = vpack.c.b16 %v677, %v675
        %v718 = vpack.c.b16 %v680, %v678
        %v719 = vpack.c.b16 %v681, %v679
        %v720 = vpack.c.b16 %v684, %v682
        %v721 = vpack.c.b16 %v685, %v683
        %v722 = vpack.c.b16 %v688, %v686
        %v723 = vpack.c.b16 %v689, %v687
        %v724 = vpack.c.b16 %v692, %v690
        %v725 = vpack.c.b16 %v693, %v691
        %758 = vmatprep.subr.bf16.mxu0 %v709
        %759 = vmatpush1.bf16.msra.mxu0 %v708
        %760 = vmatprep.subr.bf16.mxu0 %v707
        %761 = vmatpush1.bf16.msra.mxu0 %v706
        %762 = vmatprep.subr.bf16.mxu0 %v705
        %763 = vmatpush1.bf16.msra.mxu0 %v704
        %764 = vmatprep.subr.bf16.mxu0 %v703
        %765 = vmatpush1.bf16.msra.mxu0 %v702
        %766 = vmatprep.subr.bf16.mxu0 %v701
        %767 = vmatpush1.bf16.msra.mxu0 %v700
        %768 = vmatprep.subr.bf16.mxu0 %v699
        %769 = vmatpush1.bf16.msra.mxu0 %v698
        %770 = vmatprep.subr.bf16.mxu0 %v697
        %771 = vmatpush1.bf16.msra.mxu0 %v696
        %772 = vmatprep.subr.bf16.mxu0 %v695
        %773 = vmatpush1.bf16.msra.mxu0 %v694
        %774 = vmatprep.subr.bf16.mxu0 %v725
        %775 = vmatpush2.bf16.msra.mxu0 %v724
        %776 = vmatprep.subr.bf16.mxu0 %v723
        %777 = vmatpush2.bf16.msra.mxu0 %v722
        %778 = vmatprep.subr.bf16.mxu0 %v721
        %779 = vmatpush2.bf16.msra.mxu0 %v720
        %780 = vmatprep.subr.bf16.mxu0 %v719
        %781 = vmatpush2.bf16.msra.mxu0 %v718
        %782 = vmatprep.subr.bf16.mxu0 %v717
        %783 = vmatpush2.bf16.msra.mxu0 %v716
        %784 = vmatprep.subr.bf16.mxu0 %v715
        %785 = vmatpush2.bf16.msra.mxu0 %v714
        %786 = vmatprep.subr.bf16.mxu0 %v713
        %787 = vmatpush2.bf16.msra.mxu0 %v712
        %788 = vmatprep.subr.bf16.mxu0 %v711
        %789 = vmatpush2.bf16.msra.mxu0 %v710
        %790 = vmatprep.mubr.bf16.mxu0 %v595
        %791 = vmatmul.mubr.bf16.gmra.mxu0 %v594
        %v792 = vpop.f32.mrf.mxu0
        %v793 = vadd.f32 0.0, %v792
        %v794 = vpop.f32.mrf.mxu0
        %v795 = vadd.f32 0.0, %v794
        %v796 = vpop.f32.mrf.mxu0
        %v797 = vadd.f32 0.0, %v796
        %v798 = vpop.f32.mrf.mxu0
        %v799 = vadd.f32 0.0, %v798
        %800 = vdwg.mxu0
        %v801 = vcombine.low %v473, %v486
        %v802 = vcombine.low %v499, %v512
        %v804 = vunpack.c.l.s4 1983009808
        %v805 = vunpack.c.0.s8 %v804
        %v806 = vlaneseq
        %v807 = vshrl.u32 %v806, 7
        %v808 = vsub.s32 %v805, %v807
        %v809 = vrot.slane %v801, %v808
        %v811 = vunpack.c.l.s4 1983009808
        %v812 = vunpack.c.0.s8 %v811
        %v813 = vlaneseq
        %v814 = vshrl.u32 %v813, 7
        %v815 = vsub.s32 %v812, %v814
        %v816 = vrot.slane %v802, %v815
        %v817 = vcombine.low %v809, %v816
        %v818 = vcombine.high %v809, %v816
        %v853 = vunpack.c.l.b16 %v513
        %v854 = vunpack.c.h.b16 %v513
        %v855 = vunpack.c.l.b16 %v514
        %v856 = vunpack.c.h.b16 %v514
        %v857 = vunpack.c.l.b16 %v515
        %v858 = vunpack.c.h.b16 %v515
        %v859 = vunpack.c.l.b16 %v516
        %v860 = vunpack.c.h.b16 %v516
        %v861 = vunpack.c.l.b16 %v517
        %v862 = vunpack.c.h.b16 %v517
        %v863 = vunpack.c.l.b16 %v518
        %v864 = vunpack.c.h.b16 %v518
        %v865 = vunpack.c.l.b16 %v519
        %v866 = vunpack.c.h.b16 %v519
        %v867 = vunpack.c.l.b16 %v520
        %v868 = vunpack.c.h.b16 %v520
        %v869 = vunpack.c.l.b16 %v521
        %v870 = vunpack.c.h.b16 %v521
        %v871 = vunpack.c.l.b16 %v522
        %v872 = vunpack.c.h.b16 %v522
        %v873 = vunpack.c.l.b16 %v523
        %v874 = vunpack.c.h.b16 %v523
        %v875 = vunpack.c.l.b16 %v524
        %v876 = vunpack.c.h.b16 %v524
        %v877 = vunpack.c.l.b16 %v525
        %v878 = vunpack.c.h.b16 %v525
        %v879 = vunpack.c.l.b16 %v526
        %v880 = vunpack.c.h.b16 %v526
        %v881 = vunpack.c.l.b16 %v527
        %v882 = vunpack.c.h.b16 %v527
        %v883 = vunpack.c.l.b16 %v528
        %v884 = vunpack.c.h.b16 %v528
        %v885 = vunpack.c.l.b16 %v529
        %v886 = vunpack.c.h.b16 %v529
        %v887 = vunpack.c.l.b16 %v530
        %v888 = vunpack.c.h.b16 %v530
        %v889 = vunpack.c.l.b16 %v531
        %v890 = vunpack.c.h.b16 %v531
        %v891 = vunpack.c.l.b16 %v532
        %v892 = vunpack.c.h.b16 %v532
        %v893 = vunpack.c.l.b16 %v533
        %v894 = vunpack.c.h.b16 %v533
        %v895 = vunpack.c.l.b16 %v534
        %v896 = vunpack.c.h.b16 %v534
        %v897 = vunpack.c.l.b16 %v535
        %v898 = vunpack.c.h.b16 %v535
        %v899 = vunpack.c.l.b16 %v536
        %v900 = vunpack.c.h.b16 %v536
        %v901 = vunpack.c.l.b16 %v537
        %v902 = vunpack.c.h.b16 %v537
        %v903 = vunpack.c.l.b16 %v538
        %v904 = vunpack.c.h.b16 %v538
        %v905 = vunpack.c.l.b16 %v539
        %v906 = vunpack.c.h.b16 %v539
        %v907 = vunpack.c.l.b16 %v540
        %v908 = vunpack.c.h.b16 %v540
        %v909 = vunpack.c.l.b16 %v541
        %v910 = vunpack.c.h.b16 %v541
        %v911 = vunpack.c.l.b16 %v542
        %v912 = vunpack.c.h.b16 %v542
        %v913 = vunpack.c.l.b16 %v543
        %v914 = vunpack.c.h.b16 %v543
        %v915 = vunpack.c.l.b16 %v544
        %v916 = vunpack.c.h.b16 %v544
        %v917 = vpack.c.b16 %v855, %v853
        %v918 = vpack.c.b16 %v856, %v854
        %v919 = vpack.c.b16 %v859, %v857
        %v920 = vpack.c.b16 %v860, %v858
        %v921 = vpack.c.b16 %v863, %v861
        %v922 = vpack.c.b16 %v864, %v862
        %v923 = vpack.c.b16 %v867, %v865
        %v924 = vpack.c.b16 %v868, %v866
        %v925 = vpack.c.b16 %v871, %v869
        %v926 = vpack.c.b16 %v872, %v870
        %v927 = vpack.c.b16 %v875, %v873
        %v928 = vpack.c.b16 %v876, %v874
        %v929 = vpack.c.b16 %v879, %v877
        %v930 = vpack.c.b16 %v880, %v878
        %v931 = vpack.c.b16 %v883, %v881
        %v932 = vpack.c.b16 %v884, %v882
        %v933 = vpack.c.b16 %v887, %v885
        %v934 = vpack.c.b16 %v888, %v886
        %v935 = vpack.c.b16 %v891, %v889
        %v936 = vpack.c.b16 %v892, %v890
        %v937 = vpack.c.b16 %v895, %v893
        %v938 = vpack.c.b16 %v896, %v894
        %v939 = vpack.c.b16 %v899, %v897
        %v940 = vpack.c.b16 %v900, %v898
        %v941 = vpack.c.b16 %v903, %v901
        %v942 = vpack.c.b16 %v904, %v902
        %v943 = vpack.c.b16 %v907, %v905
        %v944 = vpack.c.b16 %v908, %v906
        %v945 = vpack.c.b16 %v911, %v909
        %v946 = vpack.c.b16 %v912, %v910
        %v947 = vpack.c.b16 %v915, %v913
        %v948 = vpack.c.b16 %v916, %v914
        %981 = vmatprep.subr.bf16.mxu0 %v932
        %982 = vmatpush1.bf16.msra.mxu0 %v931
        %983 = vmatprep.subr.bf16.mxu0 %v930
        %984 = vmatpush1.bf16.msra.mxu0 %v929
        %985 = vmatprep.subr.bf16.mxu0 %v928
        %986 = vmatpush1.bf16.msra.mxu0 %v927
        %987 = vmatprep.subr.bf16.mxu0 %v926
        %988 = vmatpush1.bf16.msra.mxu0 %v925
        %989 = vmatprep.subr.bf16.mxu0 %v924
        %990 = vmatpush1.bf16.msra.mxu0 %v923
        %991 = vmatprep.subr.bf16.mxu0 %v922
        %992 = vmatpush1.bf16.msra.mxu0 %v921
        %993 = vmatprep.subr.bf16.mxu0 %v920
        %994 = vmatpush1.bf16.msra.mxu0 %v919
        %995 = vmatprep.subr.bf16.mxu0 %v918
        %996 = vmatpush1.bf16.msra.mxu0 %v917
        %997 = vmatprep.subr.bf16.mxu0 %v948
        %998 = vmatpush2.bf16.msra.mxu0 %v947
        %999 = vmatprep.subr.bf16.mxu0 %v946
        %1000 = vmatpush2.bf16.msra.mxu0 %v945
        %1001 = vmatprep.subr.bf16.mxu0 %v944
        %1002 = vmatpush2.bf16.msra.mxu0 %v943
        %1003 = vmatprep.subr.bf16.mxu0 %v942
        %1004 = vmatpush2.bf16.msra.mxu0 %v941
        %1005 = vmatprep.subr.bf16.mxu0 %v940
        %1006 = vmatpush2.bf16.msra.mxu0 %v939
        %1007 = vmatprep.subr.bf16.mxu0 %v938
        %1008 = vmatpush2.bf16.msra.mxu0 %v937
        %1009 = vmatprep.subr.bf16.mxu0 %v936
        %1010 = vmatpush2.bf16.msra.mxu0 %v935
        %1011 = vmatprep.subr.bf16.mxu0 %v934
        %1012 = vmatpush2.bf16.msra.mxu0 %v933
        %1013 = vmatprep.mubr.bf16.mxu0 %v818
        %1014 = vmatmul.mubr.bf16.gmra.mxu0 %v817
        %v1015 = vpop.f32.mrf.mxu0
        %v1016 = vadd.f32 %v793, %v1015
        %v1017 = vpop.f32.mrf.mxu0
        %v1018 = vadd.f32 %v795, %v1017
        %v1019 = vpop.f32.mrf.mxu0
        %v1020 = vadd.f32 %v797, %v1019
        %v1021 = vpop.f32.mrf.mxu0
        %v1022 = vadd.f32 %v799, %v1021
        %1023 = vdwg.mxu0
        %v1024 = vld [vmem:[#allocation2 + $0x10] sm:$0x77]
        %v1025 = vld [vmem:[#allocation2 + $0x30] sm:$0x77]
        %v1026 = vld [vmem:[#allocation2 + $0x50] sm:$0x77]
        %v1027 = vld [vmem:[#allocation2 + $0x70] sm:$0x77]
        %v1033 = vunpack.c.l.s4 1983009808
        %v1034 = vunpack.c.0.s8 %v1033
        %v1035 = vlaneseq
        %v1036 = vshrl.u32 %v1035, 7
        %v1037 = vsub.s32 %v1034, %v1036
        %v1038 = vrot.slane %v1024, %v1037
        %v1039 = vcombine.high %v1038, %v1038
        %v1041 = vunpack.c.l.s4 1983009808
        %v1042 = vunpack.c.0.s8 %v1041
        %v1043 = vlaneseq
        %v1044 = vshrl.u32 %v1043, 7
        %v1045 = vsub.s32 %v1042, %v1044
        %v1046 = vrot.slane %v1025, %v1045
        %v1047 = vcombine.high %v1046, %v1046
        %v1049 = vunpack.c.l.s4 1983009808
        %v1050 = vunpack.c.0.s8 %v1049
        %v1051 = vlaneseq
        %v1052 = vshrl.u32 %v1051, 7
        %v1053 = vsub.s32 %v1050, %v1052
        %v1054 = vrot.slane %v1026, %v1053
        %v1055 = vcombine.high %v1054, %v1054
        %v1057 = vunpack.c.l.s4 1983009808
        %v1058 = vunpack.c.0.s8 %v1057
        %v1059 = vlaneseq
        %v1060 = vshrl.u32 %v1059, 7
        %v1061 = vsub.s32 %v1058, %v1060
        %v1062 = vrot.slane %v1027, %v1061
        %v1063 = vcombine.high %v1062, %v1062
        %vm1064 = vsmask.f32 1280
        %vm1065 = vsmask.f32 3336
        %vm1066 = vmor %vm1064, %vm1065
        %vm1067 = vsmask.f32 5392
        %vm1068 = vmor %vm1066, %vm1067
        %vm1069 = vsmask.f32 7448
        %vm1070 = vmor %vm1068, %vm1069
        %v1072 = vshrl.u32 %v1038, 16
        %v1074 = vrot.slane %v1072, 6
        %v1075 = vshll.u32 %v1038, 16
        %v1077 = vrot.slane %v1075, 7
        %v1078 = vor.u32 %v1074, %v1077
        %v1079 = vrot.slane %v1078, 2
        %v1081 = vshll.u32 %v1039, 16
        %v1083 = vrot.slane %v1081, 7
        %v1084 = vsel %vm1070, %v1079, %v1083
        %v1086 = vshrl.u32 %v1046, 16
        %v1088 = vrot.slane %v1086, 6
        %v1089 = vshll.u32 %v1046, 16
        %v1091 = vrot.slane %v1089, 7
        %v1092 = vor.u32 %v1088, %v1091
        %v1093 = vrot.slane %v1092, 2
        %v1095 = vshll.u32 %v1047, 16
        %v1097 = vrot.slane %v1095, 7
        %v1098 = vsel %vm1070, %v1093, %v1097
        %v1100 = vshrl.u32 %v1054, 16
        %v1102 = vrot.slane %v1100, 6
        %v1103 = vshll.u32 %v1054, 16
        %v1105 = vrot.slane %v1103, 7
        %v1106 = vor.u32 %v1102, %v1105
        %v1107 = vrot.slane %v1106, 2
        %v1109 = vshll.u32 %v1055, 16
        %v1111 = vrot.slane %v1109, 7
        %v1112 = vsel %vm1070, %v1107, %v1111
        %v1114 = vshrl.u32 %v1062, 16
        %v1116 = vrot.slane %v1114, 6
        %v1117 = vshll.u32 %v1062, 16
        %v1119 = vrot.slane %v1117, 7
        %v1120 = vor.u32 %v1116, %v1119
        %v1121 = vrot.slane %v1120, 2
        %v1123 = vshll.u32 %v1063, 16
        %v1125 = vrot.slane %v1123, 7
        %v1126 = vsel %vm1070, %v1121, %v1125
        %s1127 = scalar_lea.vmem [#allocation6], 512
        %v1128 = vld [vmem:[%s1127] sm:$0xff]
        %v1129 = vld [vmem:[%s1127 + $0x8] sm:$0xff]
        %v1130 = vld [vmem:[%s1127 + $0x10] sm:$0xff]
        %v1131 = vld [vmem:[%s1127 + $0x18] sm:$0xff]
        %v1132 = vld [vmem:[%s1127 + $0x20] sm:$0xff]
        %v1133 = vld [vmem:[%s1127 + $0x28] sm:$0xff]
        %v1134 = vld [vmem:[%s1127 + $0x30] sm:$0xff]
        %v1135 = vld [vmem:[%s1127 + $0x38] sm:$0xff]
        %v1136 = vld [vmem:[%s1127 + $0x40] sm:$0xff]
        %v1137 = vld [vmem:[%s1127 + $0x48] sm:$0xff]
        %v1138 = vld [vmem:[%s1127 + $0x50] sm:$0xff]
        %v1139 = vld [vmem:[%s1127 + $0x58] sm:$0xff]
        %v1140 = vld [vmem:[%s1127 + $0x60] sm:$0xff]
        %v1141 = vld [vmem:[%s1127 + $0x68] sm:$0xff]
        %v1142 = vld [vmem:[%s1127 + $0x70] sm:$0xff]
        %v1143 = vld [vmem:[%s1127 + $0x78] sm:$0xff]
        %v1144 = vld [vmem:[%s1127 + $0x80] sm:$0xff]
        %v1145 = vld [vmem:[%s1127 + $0x88] sm:$0xff]
        %v1146 = vld [vmem:[%s1127 + $0x90] sm:$0xff]
        %v1147 = vld [vmem:[%s1127 + $0x98] sm:$0xff]
        %v1148 = vld [vmem:[%s1127 + $0xa0] sm:$0xff]
        %v1149 = vld [vmem:[%s1127 + $0xa8] sm:$0xff]
        %v1150 = vld [vmem:[%s1127 + $0xb0] sm:$0xff]
        %v1151 = vld [vmem:[%s1127 + $0xb8] sm:$0xff]
        %v1152 = vld [vmem:[%s1127 + $0xc0] sm:$0xff]
        %v1153 = vld [vmem:[%s1127 + $0xc8] sm:$0xff]
        %v1154 = vld [vmem:[%s1127 + $0xd0] sm:$0xff]
        %v1155 = vld [vmem:[%s1127 + $0xd8] sm:$0xff]
        %v1156 = vld [vmem:[%s1127 + $0xe0] sm:$0xff]
        %v1157 = vld [vmem:[%s1127 + $0xe8] sm:$0xff]
        %v1158 = vld [vmem:[%s1127 + $0xf0] sm:$0xff]
        %v1159 = vld [vmem:[%s1127 + $0xf8] sm:$0xff]
        %v1160 = vcombine.low %v1084, %v1098
        %v1161 = vcombine.low %v1112, %v1126
        %v1163 = vunpack.c.l.s4 1983009808
        %v1164 = vunpack.c.0.s8 %v1163
        %v1165 = vlaneseq
        %v1166 = vshrl.u32 %v1165, 7
        %v1167 = vsub.s32 %v1164, %v1166
        %v1168 = vrot.slane %v1160, %v1167
        %v1170 = vunpack.c.l.s4 1983009808
        %v1171 = vunpack.c.0.s8 %v1170
        %v1172 = vlaneseq
        %v1173 = vshrl.u32 %v1172, 7
        %v1174 = vsub.s32 %v1171, %v1173
        %v1175 = vrot.slane %v1161, %v1174
        %v1176 = vcombine.low %v1168, %v1175
        %v1177 = vcombine.high %v1168, %v1175
        %v1212 = vunpack.c.l.b16 %v1128
        %v1213 = vunpack.c.h.b16 %v1128
        %v1214 = vunpack.c.l.b16 %v1129
        %v1215 = vunpack.c.h.b16 %v1129
        %v1216 = vunpack.c.l.b16 %v1130
        %v1217 = vunpack.c.h.b16 %v1130
        %v1218 = vunpack.c.l.b16 %v1131
        %v1219 = vunpack.c.h.b16 %v1131
        %v1220 = vunpack.c.l.b16 %v1132
        %v1221 = vunpack.c.h.b16 %v1132
        %v1222 = vunpack.c.l.b16 %v1133
        %v1223 = vunpack.c.h.b16 %v1133
        %v1224 = vunpack.c.l.b16 %v1134
        %v1225 = vunpack.c.h.b16 %v1134
        %v1226 = vunpack.c.l.b16 %v1135
        %v1227 = vunpack.c.h.b16 %v1135
        %v1228 = vunpack.c.l.b16 %v1136
        %v1229 = vunpack.c.h.b16 %v1136
        %v1230 = vunpack.c.l.b16 %v1137
        %v1231 = vunpack.c.h.b16 %v1137
        %v1232 = vunpack.c.l.b16 %v1138
        %v1233 = vunpack.c.h.b16 %v1138
        %v1234 = vunpack.c.l.b16 %v1139
        %v1235 = vunpack.c.h.b16 %v1139
        %v1236 = vunpack.c.l.b16 %v1140
        %v1237 = vunpack.c.h.b16 %v1140
        %v1238 = vunpack.c.l.b16 %v1141
        %v1239 = vunpack.c.h.b16 %v1141
        %v1240 = vunpack.c.l.b16 %v1142
        %v1241 = vunpack.c.h.b16 %v1142
        %v1242 = vunpack.c.l.b16 %v1143
        %v1243 = vunpack.c.h.b16 %v1143
        %v1244 = vunpack.c.l.b16 %v1144
        %v1245 = vunpack.c.h.b16 %v1144
        %v1246 = vunpack.c.l.b16 %v1145
        %v1247 = vunpack.c.h.b16 %v1145
        %v1248 = vunpack.c.l.b16 %v1146
        %v1249 = vunpack.c.h.b16 %v1146
        %v1250 = vunpack.c.l.b16 %v1147
        %v1251 = vunpack.c.h.b16 %v1147
        %v1252 = vunpack.c.l.b16 %v1148
        %v1253 = vunpack.c.h.b16 %v1148
        %v1254 = vunpack.c.l.b16 %v1149
        %v1255 = vunpack.c.h.b16 %v1149
        %v1256 = vunpack.c.l.b16 %v1150
        %v1257 = vunpack.c.h.b16 %v1150
        %v1258 = vunpack.c.l.b16 %v1151
        %v1259 = vunpack.c.h.b16 %v1151
        %v1260 = vunpack.c.l.b16 %v1152
        %v1261 = vunpack.c.h.b16 %v1152
        %v1262 = vunpack.c.l.b16 %v1153
        %v1263 = vunpack.c.h.b16 %v1153
        %v1264 = vunpack.c.l.b16 %v1154
        %v1265 = vunpack.c.h.b16 %v1154
        %v1266 = vunpack.c.l.b16 %v1155
        %v1267 = vunpack.c.h.b16 %v1155
        %v1268 = vunpack.c.l.b16 %v1156
        %v1269 = vunpack.c.h.b16 %v1156
        %v1270 = vunpack.c.l.b16 %v1157
        %v1271 = vunpack.c.h.b16 %v1157
        %v1272 = vunpack.c.l.b16 %v1158
        %v1273 = vunpack.c.h.b16 %v1158
        %v1274 = vunpack.c.l.b16 %v1159
        %v1275 = vunpack.c.h.b16 %v1159
        %v1276 = vpack.c.b16 %v1214, %v1212
        %v1277 = vpack.c.b16 %v1215, %v1213
        %v1278 = vpack.c.b16 %v1218, %v1216
        %v1279 = vpack.c.b16 %v1219, %v1217
        %v1280 = vpack.c.b16 %v1222, %v1220
        %v1281 = vpack.c.b16 %v1223, %v1221
        %v1282 = vpack.c.b16 %v1226, %v1224
        %v1283 = vpack.c.b16 %v1227, %v1225
        %v1284 = vpack.c.b16 %v1230, %v1228
        %v1285 = vpack.c.b16 %v1231, %v1229
        %v1286 = vpack.c.b16 %v1234, %v1232
        %v1287 = vpack.c.b16 %v1235, %v1233
        %v1288 = vpack.c.b16 %v1238, %v1236
        %v1289 = vpack.c.b16 %v1239, %v1237
        %v1290 = vpack.c.b16 %v1242, %v1240
        %v1291 = vpack.c.b16 %v1243, %v1241
        %v1292 = vpack.c.b16 %v1246, %v1244
        %v1293 = vpack.c.b16 %v1247, %v1245
        %v1294 = vpack.c.b16 %v1250, %v1248
        %v1295 = vpack.c.b16 %v1251, %v1249
        %v1296 = vpack.c.b16 %v1254, %v1252
        %v1297 = vpack.c.b16 %v1255, %v1253
        %v1298 = vpack.c.b16 %v1258, %v1256
        %v1299 = vpack.c.b16 %v1259, %v1257
        %v1300 = vpack.c.b16 %v1262, %v1260
        %v1301 = vpack.c.b16 %v1263, %v1261
        %v1302 = vpack.c.b16 %v1266, %v1264
        %v1303 = vpack.c.b16 %v1267, %v1265
        %v1304 = vpack.c.b16 %v1270, %v1268
        %v1305 = vpack.c.b16 %v1271, %v1269
        %v1306 = vpack.c.b16 %v1274, %v1272
        %v1307 = vpack.c.b16 %v1275, %v1273
        %1340 = vmatprep.subr.bf16.mxu0 %v1291
        %1341 = vmatpush1.bf16.msra.mxu0 %v1290
        %1342 = vmatprep.subr.bf16.mxu0 %v1289
        %1343 = vmatpush1.bf16.msra.mxu0 %v1288
        %1344 = vmatprep.subr.bf16.mxu0 %v1287
        %1345 = vmatpush1.bf16.msra.mxu0 %v1286
        %1346 = vmatprep.subr.bf16.mxu0 %v1285
        %1347 = vmatpush1.bf16.msra.mxu0 %v1284
        %1348 = vmatprep.subr.bf16.mxu0 %v1283
        %1349 = vmatpush1.bf16.msra.mxu0 %v1282
        %1350 = vmatprep.subr.bf16.mxu0 %v1281
        %1351 = vmatpush1.bf16.msra.mxu0 %v1280
        %1352 = vmatprep.subr.bf16.mxu0 %v1279
        %1353 = vmatpush1.bf16.msra.mxu0 %v1278
        %1354 = vmatprep.subr.bf16.mxu0 %v1277
        %1355 = vmatpush1.bf16.msra.mxu0 %v1276
        %1356 = vmatprep.subr.bf16.mxu0 %v1307
        %1357 = vmatpush2.bf16.msra.mxu0 %v1306
        %1358 = vmatprep.subr.bf16.mxu0 %v1305
        %1359 = vmatpush2.bf16.msra.mxu0 %v1304
        %1360 = vmatprep.subr.bf16.mxu0 %v1303
        %1361 = vmatpush2.bf16.msra.mxu0 %v1302
        %1362 = vmatprep.subr.bf16.mxu0 %v1301
        %1363 = vmatpush2.bf16.msra.mxu0 %v1300
        %1364 = vmatprep.subr.bf16.mxu0 %v1299
        %1365 = vmatpush2.bf16.msra.mxu0 %v1298
        %1366 = vmatprep.subr.bf16.mxu0 %v1297
        %1367 = vmatpush2.bf16.msra.mxu0 %v1296
        %1368 = vmatprep.subr.bf16.mxu0 %v1295
        %1369 = vmatpush2.bf16.msra.mxu0 %v1294
        %1370 = vmatprep.subr.bf16.mxu0 %v1293
        %1371 = vmatpush2.bf16.msra.mxu0 %v1292
        %1372 = vmatprep.mubr.bf16.mxu0 %v1177
        %1373 = vmatmul.mubr.bf16.gmra.mxu0 %v1176
        %v1374 = vpop.f32.mrf.mxu0
        %v1375 = vadd.f32 0.0, %v1374
        %v1376 = vpop.f32.mrf.mxu0
        %v1377 = vadd.f32 0.0, %v1376
        %v1378 = vpop.f32.mrf.mxu0
        %v1379 = vadd.f32 0.0, %v1378
        %v1380 = vpop.f32.mrf.mxu0
        %v1381 = vadd.f32 0.0, %v1380
        %1382 = vdwg.mxu0
        %v1383 = vadd.f32 %v1016, %v1375
        %v1384 = vadd.f32 %v1018, %v1377
        %v1385 = vadd.f32 %v1020, %v1379
        %v1386 = vadd.f32 %v1022, %v1381
        %v1387 = vld [vmem:[%s373 + $0x8] sm:$0x88]
        %v1388 = vld [vmem:[%s373 + $0x10] sm:$0x33]
        %v1389 = vld [vmem:[%s373 + $0x28] sm:$0x88]
        %v1390 = vld [vmem:[%s373 + $0x30] sm:$0x33]
        %v1391 = vld [vmem:[%s373 + $0x48] sm:$0x88]
        %v1392 = vld [vmem:[%s373 + $0x50] sm:$0x33]
        %v1393 = vld [vmem:[%s373 + $0x68] sm:$0x88]
        %v1394 = vld [vmem:[%s373 + $0x70] sm:$0x33]
        %v1404 = vunpack.c.l.s4 1983009808
        %v1405 = vunpack.c.0.s8 %v1404
        %v1406 = vlaneseq
        %v1407 = vshrl.u32 %v1406, 7
        %v1408 = vsub.s32 %v1405, %v1407
        %v1409 = vrot.slane %v1387, %v1408
        %v1410 = vcombine.high %v1409, %v1409
        %v1412 = vunpack.c.l.s4 1983009808
        %v1413 = vunpack.c.0.s8 %v1412
        %v1414 = vlaneseq
        %v1415 = vshrl.u32 %v1414, 7
        %v1416 = vsub.s32 %v1413, %v1415
        %v1417 = vrot.slane %v1388, %v1416
        %v1419 = vunpack.c.l.s4 1983009808
        %v1420 = vunpack.c.0.s8 %v1419
        %v1421 = vlaneseq
        %v1422 = vshrl.u32 %v1421, 7
        %v1423 = vsub.s32 %v1420, %v1422
        %v1424 = vrot.slane %v1389, %v1423
        %v1425 = vcombine.high %v1424, %v1424
        %v1427 = vunpack.c.l.s4 1983009808
        %v1428 = vunpack.c.0.s8 %v1427
        %v1429 = vlaneseq
        %v1430 = vshrl.u32 %v1429, 7
        %v1431 = vsub.s32 %v1428, %v1430
        %v1432 = vrot.slane %v1390, %v1431
        %v1434 = vunpack.c.l.s4 1983009808
        %v1435 = vunpack.c.0.s8 %v1434
        %v1436 = vlaneseq
        %v1437 = vshrl.u32 %v1436, 7
        %v1438 = vsub.s32 %v1435, %v1437
        %v1439 = vrot.slane %v1391, %v1438
        %v1440 = vcombine.high %v1439, %v1439
        %v1442 = vunpack.c.l.s4 1983009808
        %v1443 = vunpack.c.0.s8 %v1442
        %v1444 = vlaneseq
        %v1445 = vshrl.u32 %v1444, 7
        %v1446 = vsub.s32 %v1443, %v1445
        %v1447 = vrot.slane %v1392, %v1446
        %v1449 = vunpack.c.l.s4 1983009808
        %v1450 = vunpack.c.0.s8 %v1449
        %v1451 = vlaneseq
        %v1452 = vshrl.u32 %v1451, 7
        %v1453 = vsub.s32 %v1450, %v1452
        %v1454 = vrot.slane %v1393, %v1453
        %v1455 = vcombine.high %v1454, %v1454
        %v1457 = vunpack.c.l.s4 1983009808
        %v1458 = vunpack.c.0.s8 %v1457
        %v1459 = vlaneseq
        %v1460 = vshrl.u32 %v1459, 7
        %v1461 = vsub.s32 %v1458, %v1460
        %v1462 = vrot.slane %v1394, %v1461
        %v1464 = vshrl.u32 %v1410, 16
        %v1466 = vrot.slane %v1464, 7
        %v1467 = vrot.slane %v1466, 2
        %v1469 = vshrl.u32 %v1417, 16
        %v1471 = vrot.slane %v1469, 7
        %v1472 = vshll.u32 %v1417, 16
        %v1474 = vor.u32 %v1471, %v1472
        %v1475 = vsel %vm460, %v1467, %v1474
        %v1477 = vshrl.u32 %v1425, 16
        %v1479 = vrot.slane %v1477, 7
        %v1480 = vrot.slane %v1479, 2
        %v1482 = vshrl.u32 %v1432, 16
        %v1484 = vrot.slane %v1482, 7
        %v1485 = vshll.u32 %v1432, 16
        %v1487 = vor.u32 %v1484, %v1485
        %v1488 = vsel %vm460, %v1480, %v1487
        %v1490 = vshrl.u32 %v1440, 16
        %v1492 = vrot.slane %v1490, 7
        %v1493 = vrot.slane %v1492, 2
        %v1495 = vshrl.u32 %v1447, 16
        %v1497 = vrot.slane %v1495, 7
        %v1498 = vshll.u32 %v1447, 16
        %v1500 = vor.u32 %v1497, %v1498
        %v1501 = vsel %vm460, %v1493, %v1500
        %v1503 = vshrl.u32 %v1455, 16
        %v1505 = vrot.slane %v1503, 7
        %v1506 = vrot.slane %v1505, 2
        %v1508 = vshrl.u32 %v1462, 16
        %v1510 = vrot.slane %v1508, 7
        %v1511 = vshll.u32 %v1462, 16
        %v1513 = vor.u32 %v1510, %v1511
        %v1514 = vsel %vm460, %v1506, %v1513
        %s1515 = scalar_lea.vmem [#allocation6], 768
        %v1516 = vld [vmem:[%s1515] sm:$0xff]
        %v1517 = vld [vmem:[%s1515 + $0x8] sm:$0xff]
        %v1518 = vld [vmem:[%s1515 + $0x10] sm:$0xff]
        %v1519 = vld [vmem:[%s1515 + $0x18] sm:$0xff]
        %v1520 = vld [vmem:[%s1515 + $0x20] sm:$0xff]
        %v1521 = vld [vmem:[%s1515 + $0x28] sm:$0xff]
        %v1522 = vld [vmem:[%s1515 + $0x30] sm:$0xff]
        %v1523 = vld [vmem:[%s1515 + $0x38] sm:$0xff]
        %v1524 = vld [vmem:[%s1515 + $0x40] sm:$0xff]
        %v1525 = vld [vmem:[%s1515 + $0x48] sm:$0xff]
        %v1526 = vld [vmem:[%s1515 + $0x50] sm:$0xff]
        %v1527 = vld [vmem:[%s1515 + $0x58] sm:$0xff]
        %v1528 = vld [vmem:[%s1515 + $0x60] sm:$0xff]
        %v1529 = vld [vmem:[%s1515 + $0x68] sm:$0xff]
        %v1530 = vld [vmem:[%s1515 + $0x70] sm:$0xff]
        %v1531 = vld [vmem:[%s1515 + $0x78] sm:$0xff]
        %v1532 = vld [vmem:[%s1515 + $0x80] sm:$0xff]
        %v1533 = vld [vmem:[%s1515 + $0x88] sm:$0xff]
        %v1534 = vld [vmem:[%s1515 + $0x90] sm:$0xff]
        %v1535 = vld [vmem:[%s1515 + $0x98] sm:$0xff]
        %v1536 = vld [vmem:[%s1515 + $0xa0] sm:$0xff]
        %v1537 = vld [vmem:[%s1515 + $0xa8] sm:$0xff]
        %v1538 = vld [vmem:[%s1515 + $0xb0] sm:$0xff]
        %v1539 = vld [vmem:[%s1515 + $0xb8] sm:$0xff]
        %v1540 = vld [vmem:[%s1515 + $0xc0] sm:$0xff]
        %v1541 = vld [vmem:[%s1515 + $0xc8] sm:$0xff]
        %v1542 = vld [vmem:[%s1515 + $0xd0] sm:$0xff]
        %v1543 = vld [vmem:[%s1515 + $0xd8] sm:$0xff]
        %v1544 = vld [vmem:[%s1515 + $0xe0] sm:$0xff]
        %v1545 = vld [vmem:[%s1515 + $0xe8] sm:$0xff]
        %v1546 = vld [vmem:[%s1515 + $0xf0] sm:$0xff]
        %v1547 = vld [vmem:[%s1515 + $0xf8] sm:$0xff]
        %v1548 = vcombine.low %v1475, %v1488
        %v1549 = vcombine.low %v1501, %v1514
        %v1551 = vunpack.c.l.s4 1983009808
        %v1552 = vunpack.c.0.s8 %v1551
        %v1553 = vlaneseq
        %v1554 = vshrl.u32 %v1553, 7
        %v1555 = vsub.s32 %v1552, %v1554
        %v1556 = vrot.slane %v1548, %v1555
        %v1558 = vunpack.c.l.s4 1983009808
        %v1559 = vunpack.c.0.s8 %v1558
        %v1560 = vlaneseq
        %v1561 = vshrl.u32 %v1560, 7
        %v1562 = vsub.s32 %v1559, %v1561
        %v1563 = vrot.slane %v1549, %v1562
        %v1564 = vcombine.low %v1556, %v1563
        %v1565 = vcombine.high %v1556, %v1563
        %v1600 = vunpack.c.l.b16 %v1516
        %v1601 = vunpack.c.h.b16 %v1516
        %v1602 = vunpack.c.l.b16 %v1517
        %v1603 = vunpack.c.h.b16 %v1517
        %v1604 = vunpack.c.l.b16 %v1518
        %v1605 = vunpack.c.h.b16 %v1518
        %v1606 = vunpack.c.l.b16 %v1519
        %v1607 = vunpack.c.h.b16 %v1519
        %v1608 = vunpack.c.l.b16 %v1520
        %v1609 = vunpack.c.h.b16 %v1520
        %v1610 = vunpack.c.l.b16 %v1521
        %v1611 = vunpack.c.h.b16 %v1521
        %v1612 = vunpack.c.l.b16 %v1522
        %v1613 = vunpack.c.h.b16 %v1522
        %v1614 = vunpack.c.l.b16 %v1523
        %v1615 = vunpack.c.h.b16 %v1523
        %v1616 = vunpack.c.l.b16 %v1524
        %v1617 = vunpack.c.h.b16 %v1524
        %v1618 = vunpack.c.l.b16 %v1525
        %v1619 = vunpack.c.h.b16 %v1525
        %v1620 = vunpack.c.l.b16 %v1526
        %v1621 = vunpack.c.h.b16 %v1526
        %v1622 = vunpack.c.l.b16 %v1527
        %v1623 = vunpack.c.h.b16 %v1527
        %v1624 = vunpack.c.l.b16 %v1528
        %v1625 = vunpack.c.h.b16 %v1528
        %v1626 = vunpack.c.l.b16 %v1529
        %v1627 = vunpack.c.h.b16 %v1529
        %v1628 = vunpack.c.l.b16 %v1530
        %v1629 = vunpack.c.h.b16 %v1530
        %v1630 = vunpack.c.l.b16 %v1531
        %v1631 = vunpack.c.h.b16 %v1531
        %v1632 = vunpack.c.l.b16 %v1532
        %v1633 = vunpack.c.h.b16 %v1532
        %v1634 = vunpack.c.l.b16 %v1533
        %v1635 = vunpack.c.h.b16 %v1533
        %v1636 = vunpack.c.l.b16 %v1534
        %v1637 = vunpack.c.h.b16 %v1534
        %v1638 = vunpack.c.l.b16 %v1535
        %v1639 = vunpack.c.h.b16 %v1535
        %v1640 = vunpack.c.l.b16 %v1536
        %v1641 = vunpack.c.h.b16 %v1536
        %v1642 = vunpack.c.l.b16 %v1537
        %v1643 = vunpack.c.h.b16 %v1537
        %v1644 = vunpack.c.l.b16 %v1538
        %v1645 = vunpack.c.h.b16 %v1538
        %v1646 = vunpack.c.l.b16 %v1539
        %v1647 = vunpack.c.h.b16 %v1539
        %v1648 = vunpack.c.l.b16 %v1540
        %v1649 = vunpack.c.h.b16 %v1540
        %v1650 = vunpack.c.l.b16 %v1541
        %v1651 = vunpack.c.h.b16 %v1541
        %v1652 = vunpack.c.l.b16 %v1542
        %v1653 = vunpack.c.h.b16 %v1542
        %v1654 = vunpack.c.l.b16 %v1543
        %v1655 = vunpack.c.h.b16 %v1543
        %v1656 = vunpack.c.l.b16 %v1544
        %v1657 = vunpack.c.h.b16 %v1544
        %v1658 = vunpack.c.l.b16 %v1545
        %v1659 = vunpack.c.h.b16 %v1545
        %v1660 = vunpack.c.l.b16 %v1546
        %v1661 = vunpack.c.h.b16 %v1546
        %v1662 = vunpack.c.l.b16 %v1547
        %v1663 = vunpack.c.h.b16 %v1547
        %v1664 = vpack.c.b16 %v1602, %v1600
        %v1665 = vpack.c.b16 %v1603, %v1601
        %v1666 = vpack.c.b16 %v1606, %v1604
        %v1667 = vpack.c.b16 %v1607, %v1605
        %v1668 = vpack.c.b16 %v1610, %v1608
        %v1669 = vpack.c.b16 %v1611, %v1609
        %v1670 = vpack.c.b16 %v1614, %v1612
        %v1671 = vpack.c.b16 %v1615, %v1613
        %v1672 = vpack.c.b16 %v1618, %v1616
        %v1673 = vpack.c.b16 %v1619, %v1617
        %v1674 = vpack.c.b16 %v1622, %v1620
        %v1675 = vpack.c.b16 %v1623, %v1621
        %v1676 = vpack.c.b16 %v1626, %v1624
        %v1677 = vpack.c.b16 %v1627, %v1625
        %v1678 = vpack.c.b16 %v1630, %v1628
        %v1679 = vpack.c.b16 %v1631, %v1629
        %v1680 = vpack.c.b16 %v1634, %v1632
        %v1681 = vpack.c.b16 %v1635, %v1633
        %v1682 = vpack.c.b16 %v1638, %v1636
        %v1683 = vpack.c.b16 %v1639, %v1637
        %v1684 = vpack.c.b16 %v1642, %v1640
        %v1685 = vpack.c.b16 %v1643, %v1641
        %v1686 = vpack.c.b16 %v1646, %v1644
        %v1687 = vpack.c.b16 %v1647, %v1645
        %v1688 = vpack.c.b16 %v1650, %v1648
        %v1689 = vpack.c.b16 %v1651, %v1649
        %v1690 = vpack.c.b16 %v1654, %v1652
        %v1691 = vpack.c.b16 %v1655, %v1653
        %v1692 = vpack.c.b16 %v1658, %v1656
        %v1693 = vpack.c.b16 %v1659, %v1657
        %v1694 = vpack.c.b16 %v1662, %v1660
        %v1695 = vpack.c.b16 %v1663, %v1661
        %1728 = vmatprep.subr.bf16.mxu0 %v1679
        %1729 = vmatpush1.bf16.msra.mxu0 %v1678
        %1730 = vmatprep.subr.bf16.mxu0 %v1677
        %1731 = vmatpush1.bf16.msra.mxu0 %v1676
        %1732 = vmatprep.subr.bf16.mxu0 %v1675
        %1733 = vmatpush1.bf16.msra.mxu0 %v1674
        %1734 = vmatprep.subr.bf16.mxu0 %v1673
        %1735 = vmatpush1.bf16.msra.mxu0 %v1672
        %1736 = vmatprep.subr.bf16.mxu0 %v1671
        %1737 = vmatpush1.bf16.msra.mxu0 %v1670
        %1738 = vmatprep.subr.bf16.mxu0 %v1669
        %1739 = vmatpush1.bf16.msra.mxu0 %v1668
        %1740 = vmatprep.subr.bf16.mxu0 %v1667
        %1741 = vmatpush1.bf16.msra.mxu0 %v1666
        %1742 = vmatprep.subr.bf16.mxu0 %v1665
        %1743 = vmatpush1.bf16.msra.mxu0 %v1664
        %1744 = vmatprep.subr.bf16.mxu0 %v1695
        %1745 = vmatpush2.bf16.msra.mxu0 %v1694
        %1746 = vmatprep.subr.bf16.mxu0 %v1693
        %1747 = vmatpush2.bf16.msra.mxu0 %v1692
        %1748 = vmatprep.subr.bf16.mxu0 %v1691
        %1749 = vmatpush2.bf16.msra.mxu0 %v1690
        %1750 = vmatprep.subr.bf16.mxu0 %v1689
        %1751 = vmatpush2.bf16.msra.mxu0 %v1688
        %1752 = vmatprep.subr.bf16.mxu0 %v1687
        %1753 = vmatpush2.bf16.msra.mxu0 %v1686
        %1754 = vmatprep.subr.bf16.mxu0 %v1685
        %1755 = vmatpush2.bf16.msra.mxu0 %v1684
        %1756 = vmatprep.subr.bf16.mxu0 %v1683
        %1757 = vmatpush2.bf16.msra.mxu0 %v1682
        %1758 = vmatprep.subr.bf16.mxu0 %v1681
        %1759 = vmatpush2.bf16.msra.mxu0 %v1680
        %1760 = vmatprep.mubr.bf16.mxu0 %v1565
        %1761 = vmatmul.mubr.bf16.gmra.mxu0 %v1564
        %v1762 = vpop.f32.mrf.mxu0
        %v1763 = vadd.f32 0.0, %v1762
        %v1764 = vpop.f32.mrf.mxu0
        %v1765 = vadd.f32 0.0, %v1764
        %v1766 = vpop.f32.mrf.mxu0
        %v1767 = vadd.f32 0.0, %v1766
        %v1768 = vpop.f32.mrf.mxu0
        %v1769 = vadd.f32 0.0, %v1768
        %1770 = vdwg.mxu0
        %v1771 = vadd.f32 %v1383, %v1763
        %v1772 = vadd.f32 %v1384, %v1765
        %v1773 = vadd.f32 %v1385, %v1767
        %v1774 = vadd.f32 %v1386, %v1769
        %v1775 = vld [vmem:[%s373 + $0x10] sm:$0x33]
        %v1776 = vld [vmem:[%s373 + $0x30] sm:$0x33]
        %v1777 = vld [vmem:[%s373 + $0x50] sm:$0x33]
        %v1778 = vld [vmem:[%s373 + $0x70] sm:$0x33]
        %v1784 = vunpack.c.l.s4 1983009808
        %v1785 = vunpack.c.0.s8 %v1784
        %v1786 = vlaneseq
        %v1787 = vshrl.u32 %v1786, 7
        %v1788 = vsub.s32 %v1785, %v1787
        %v1789 = vrot.slane %v1775, %v1788
        %v1791 = vunpack.c.l.s4 1983009808
        %v1792 = vunpack.c.0.s8 %v1791
        %v1793 = vlaneseq
        %v1794 = vshrl.u32 %v1793, 7
        %v1795 = vsub.s32 %v1792, %v1794
        %v1796 = vrot.slane %v1776, %v1795
        %v1798 = vunpack.c.l.s4 1983009808
        %v1799 = vunpack.c.0.s8 %v1798
        %v1800 = vlaneseq
        %v1801 = vshrl.u32 %v1800, 7
        %v1802 = vsub.s32 %v1799, %v1801
        %v1803 = vrot.slane %v1777, %v1802
        %v1805 = vunpack.c.l.s4 1983009808
        %v1806 = vunpack.c.0.s8 %v1805
        %v1807 = vlaneseq
        %v1808 = vshrl.u32 %v1807, 7
        %v1809 = vsub.s32 %v1806, %v1808
        %v1810 = vrot.slane %v1778, %v1809
        %s1811 = scalar_lea.vmem [#allocation6], 1024
        %v1812 = vld [vmem:[%s1811] sm:$0xff]
        %v1813 = vld [vmem:[%s1811 + $0x8] sm:$0xff]
        %v1814 = vld [vmem:[%s1811 + $0x10] sm:$0xff]
        %v1815 = vld [vmem:[%s1811 + $0x18] sm:$0xff]
        %v1816 = vld [vmem:[%s1811 + $0x20] sm:$0xff]
        %v1817 = vld [vmem:[%s1811 + $0x28] sm:$0xff]
        %v1818 = vld [vmem:[%s1811 + $0x30] sm:$0xff]
        %v1819 = vld [vmem:[%s1811 + $0x38] sm:$0xff]
        %v1820 = vld [vmem:[%s1811 + $0x40] sm:$0xff]
        %v1821 = vld [vmem:[%s1811 + $0x48] sm:$0xff]
        %v1822 = vld [vmem:[%s1811 + $0x50] sm:$0xff]
        %v1823 = vld [vmem:[%s1811 + $0x58] sm:$0xff]
        %v1824 = vld [vmem:[%s1811 + $0x60] sm:$0xff]
        %v1825 = vld [vmem:[%s1811 + $0x68] sm:$0xff]
        %v1826 = vld [vmem:[%s1811 + $0x70] sm:$0xff]
        %v1827 = vld [vmem:[%s1811 + $0x78] sm:$0xff]
        %v1828 = vld [vmem:[%s1811 + $0x80] sm:$0xff]
        %v1829 = vld [vmem:[%s1811 + $0x88] sm:$0xff]
        %v1830 = vld [vmem:[%s1811 + $0x90] sm:$0xff]
        %v1831 = vld [vmem:[%s1811 + $0x98] sm:$0xff]
        %v1832 = vld [vmem:[%s1811 + $0xa0] sm:$0xff]
        %v1833 = vld [vmem:[%s1811 + $0xa8] sm:$0xff]
        %v1834 = vld [vmem:[%s1811 + $0xb0] sm:$0xff]
        %v1835 = vld [vmem:[%s1811 + $0xb8] sm:$0xff]
        %v1836 = vld [vmem:[%s1811 + $0xc0] sm:$0xff]
        %v1837 = vld [vmem:[%s1811 + $0xc8] sm:$0xff]
        %v1838 = vld [vmem:[%s1811 + $0xd0] sm:$0xff]
        %v1839 = vld [vmem:[%s1811 + $0xd8] sm:$0xff]
        %v1840 = vld [vmem:[%s1811 + $0xe0] sm:$0xff]
        %v1841 = vld [vmem:[%s1811 + $0xe8] sm:$0xff]
        %v1842 = vld [vmem:[%s1811 + $0xf0] sm:$0xff]
        %v1843 = vld [vmem:[%s1811 + $0xf8] sm:$0xff]
        %v1844 = vcombine.low %v1789, %v1796
        %v1845 = vcombine.low %v1803, %v1810
        %v1847 = vunpack.c.l.s4 1983009808
        %v1848 = vunpack.c.0.s8 %v1847
        %v1849 = vlaneseq
        %v1850 = vshrl.u32 %v1849, 7
        %v1851 = vsub.s32 %v1848, %v1850
        %v1852 = vrot.slane %v1844, %v1851
        %v1854 = vunpack.c.l.s4 1983009808
        %v1855 = vunpack.c.0.s8 %v1854
        %v1856 = vlaneseq
        %v1857 = vshrl.u32 %v1856, 7
        %v1858 = vsub.s32 %v1855, %v1857
        %v1859 = vrot.slane %v1845, %v1858
        %v1860 = vcombine.low %v1852, %v1859
        %v1861 = vcombine.high %v1852, %v1859
        %v1896 = vunpack.c.l.b16 %v1812
        %v1897 = vunpack.c.h.b16 %v1812
        %v1898 = vunpack.c.l.b16 %v1813
        %v1899 = vunpack.c.h.b16 %v1813
        %v1900 = vunpack.c.l.b16 %v1814
        %v1901 = vunpack.c.h.b16 %v1814
        %v1902 = vunpack.c.l.b16 %v1815
        %v1903 = vunpack.c.h.b16 %v1815
        %v1904 = vunpack.c.l.b16 %v1816
        %v1905 = vunpack.c.h.b16 %v1816
        %v1906 = vunpack.c.l.b16 %v1817
        %v1907 = vunpack.c.h.b16 %v1817
        %v1908 = vunpack.c.l.b16 %v1818
        %v1909 = vunpack.c.h.b16 %v1818
        %v1910 = vunpack.c.l.b16 %v1819
        %v1911 = vunpack.c.h.b16 %v1819
        %v1912 = vunpack.c.l.b16 %v1820
        %v1913 = vunpack.c.h.b16 %v1820
        %v1914 = vunpack.c.l.b16 %v1821
        %v1915 = vunpack.c.h.b16 %v1821
        %v1916 = vunpack.c.l.b16 %v1822
        %v1917 = vunpack.c.h.b16 %v1822
        %v1918 = vunpack.c.l.b16 %v1823
        %v1919 = vunpack.c.h.b16 %v1823
        %v1920 = vunpack.c.l.b16 %v1824
        %v1921 = vunpack.c.h.b16 %v1824
        %v1922 = vunpack.c.l.b16 %v1825
        %v1923 = vunpack.c.h.b16 %v1825
        %v1924 = vunpack.c.l.b16 %v1826
        %v1925 = vunpack.c.h.b16 %v1826
        %v1926 = vunpack.c.l.b16 %v1827
        %v1927 = vunpack.c.h.b16 %v1827
        %v1928 = vunpack.c.l.b16 %v1828
        %v1929 = vunpack.c.h.b16 %v1828
        %v1930 = vunpack.c.l.b16 %v1829
        %v1931 = vunpack.c.h.b16 %v1829
        %v1932 = vunpack.c.l.b16 %v1830
        %v1933 = vunpack.c.h.b16 %v1830
        %v1934 = vunpack.c.l.b16 %v1831
        %v1935 = vunpack.c.h.b16 %v1831
        %v1936 = vunpack.c.l.b16 %v1832
        %v1937 = vunpack.c.h.b16 %v1832
        %v1938 = vunpack.c.l.b16 %v1833
        %v1939 = vunpack.c.h.b16 %v1833
        %v1940 = vunpack.c.l.b16 %v1834
        %v1941 = vunpack.c.h.b16 %v1834
        %v1942 = vunpack.c.l.b16 %v1835
        %v1943 = vunpack.c.h.b16 %v1835
        %v1944 = vunpack.c.l.b16 %v1836
        %v1945 = vunpack.c.h.b16 %v1836
        %v1946 = vunpack.c.l.b16 %v1837
        %v1947 = vunpack.c.h.b16 %v1837
        %v1948 = vunpack.c.l.b16 %v1838
        %v1949 = vunpack.c.h.b16 %v1838
        %v1950 = vunpack.c.l.b16 %v1839
        %v1951 = vunpack.c.h.b16 %v1839
        %v1952 = vunpack.c.l.b16 %v1840
        %v1953 = vunpack.c.h.b16 %v1840
        %v1954 = vunpack.c.l.b16 %v1841
        %v1955 = vunpack.c.h.b16 %v1841
        %v1956 = vunpack.c.l.b16 %v1842
        %v1957 = vunpack.c.h.b16 %v1842
        %v1958 = vunpack.c.l.b16 %v1843
        %v1959 = vunpack.c.h.b16 %v1843
        %v1960 = vpack.c.b16 %v1898, %v1896
        %v1961 = vpack.c.b16 %v1899, %v1897
        %v1962 = vpack.c.b16 %v1902, %v1900
        %v1963 = vpack.c.b16 %v1903, %v1901
        %v1964 = vpack.c.b16 %v1906, %v1904
        %v1965 = vpack.c.b16 %v1907, %v1905
        %v1966 = vpack.c.b16 %v1910, %v1908
        %v1967 = vpack.c.b16 %v1911, %v1909
        %v1968 = vpack.c.b16 %v1914, %v1912
        %v1969 = vpack.c.b16 %v1915, %v1913
        %v1970 = vpack.c.b16 %v1918, %v1916
        %v1971 = vpack.c.b16 %v1919, %v1917
        %v1972 = vpack.c.b16 %v1922, %v1920
        %v1973 = vpack.c.b16 %v1923, %v1921
        %v1974 = vpack.c.b16 %v1926, %v1924
        %v1975 = vpack.c.b16 %v1927, %v1925
        %v1976 = vpack.c.b16 %v1930, %v1928
        %v1977 = vpack.c.b16 %v1931, %v1929
        %v1978 = vpack.c.b16 %v1934, %v1932
        %v1979 = vpack.c.b16 %v1935, %v1933
        %v1980 = vpack.c.b16 %v1938, %v1936
        %v1981 = vpack.c.b16 %v1939, %v1937
        %v1982 = vpack.c.b16 %v1942, %v1940
        %v1983 = vpack.c.b16 %v1943, %v1941
        %v1984 = vpack.c.b16 %v1946, %v1944
        %v1985 = vpack.c.b16 %v1947, %v1945
        %v1986 = vpack.c.b16 %v1950, %v1948
        %v1987 = vpack.c.b16 %v1951, %v1949
        %v1988 = vpack.c.b16 %v1954, %v1952
        %v1989 = vpack.c.b16 %v1955, %v1953
        %v1990 = vpack.c.b16 %v1958, %v1956
        %v1991 = vpack.c.b16 %v1959, %v1957
        %2024 = vmatprep.subr.bf16.mxu0 %v1975
        %2025 = vmatpush1.bf16.msra.mxu0 %v1974
        %2026 = vmatprep.subr.bf16.mxu0 %v1973
        %2027 = vmatpush1.bf16.msra.mxu0 %v1972
        %2028 = vmatprep.subr.bf16.mxu0 %v1971
        %2029 = vmatpush1.bf16.msra.mxu0 %v1970
        %2030 = vmatprep.subr.bf16.mxu0 %v1969
        %2031 = vmatpush1.bf16.msra.mxu0 %v1968
        %2032 = vmatprep.subr.bf16.mxu0 %v1967
        %2033 = vmatpush1.bf16.msra.mxu0 %v1966
        %2034 = vmatprep.subr.bf16.mxu0 %v1965
        %2035 = vmatpush1.bf16.msra.mxu0 %v1964
        %2036 = vmatprep.subr.bf16.mxu0 %v1963
        %2037 = vmatpush1.bf16.msra.mxu0 %v1962
        %2038 = vmatprep.subr.bf16.mxu0 %v1961
        %2039 = vmatpush1.bf16.msra.mxu0 %v1960
        %2040 = vmatprep.subr.bf16.mxu0 %v1991
        %2041 = vmatpush2.bf16.msra.mxu0 %v1990
        %2042 = vmatprep.subr.bf16.mxu0 %v1989
        %2043 = vmatpush2.bf16.msra.mxu0 %v1988
        %2044 = vmatprep.subr.bf16.mxu0 %v1987
        %2045 = vmatpush2.bf16.msra.mxu0 %v1986
        %2046 = vmatprep.subr.bf16.mxu0 %v1985
        %2047 = vmatpush2.bf16.msra.mxu0 %v1984
        %2048 = vmatprep.subr.bf16.mxu0 %v1983
        %2049 = vmatpush2.bf16.msra.mxu0 %v1982
        %2050 = vmatprep.subr.bf16.mxu0 %v1981
        %2051 = vmatpush2.bf16.msra.mxu0 %v1980
        %2052 = vmatprep.subr.bf16.mxu0 %v1979
        %2053 = vmatpush2.bf16.msra.mxu0 %v1978
        %2054 = vmatprep.subr.bf16.mxu0 %v1977
        %2055 = vmatpush2.bf16.msra.mxu0 %v1976
        %2056 = vmatprep.mubr.bf16.mxu0 %v1861
        %2057 = vmatmul.mubr.bf16.gmra.mxu0 %v1860
        %v2058 = vpop.f32.mrf.mxu0
        %v2059 = vadd.f32 0.0, %v2058
        %v2060 = vpop.f32.mrf.mxu0
        %v2061 = vadd.f32 0.0, %v2060
        %v2062 = vpop.f32.mrf.mxu0
        %v2063 = vadd.f32 0.0, %v2062
        %v2064 = vpop.f32.mrf.mxu0
        %v2065 = vadd.f32 0.0, %v2064
        %2066 = vdwg.mxu0
        %v2067 = vadd.f32 %v1771, %v2059
        %v2068 = vadd.f32 %v1772, %v2061
        %v2069 = vadd.f32 %v1773, %v2063
        %v2070 = vadd.f32 %v1774, %v2065
        %v2071 = vld [vmem:[%s373 + $0x10] sm:$0x77]
        %v2072 = vld [vmem:[%s373 + $0x30] sm:$0x77]
        %v2073 = vld [vmem:[%s373 + $0x50] sm:$0x77]
        %v2074 = vld [vmem:[%s373 + $0x70] sm:$0x77]
        %v2080 = vunpack.c.l.s4 1983009808
        %v2081 = vunpack.c.0.s8 %v2080
        %v2082 = vlaneseq
        %v2083 = vshrl.u32 %v2082, 7
        %v2084 = vsub.s32 %v2081, %v2083
        %v2085 = vrot.slane %v2071, %v2084
        %v2086 = vcombine.high %v2085, %v2085
        %v2088 = vunpack.c.l.s4 1983009808
        %v2089 = vunpack.c.0.s8 %v2088
        %v2090 = vlaneseq
        %v2091 = vshrl.u32 %v2090, 7
        %v2092 = vsub.s32 %v2089, %v2091
        %v2093 = vrot.slane %v2072, %v2092
        %v2094 = vcombine.high %v2093, %v2093
        %v2096 = vunpack.c.l.s4 1983009808
        %v2097 = vunpack.c.0.s8 %v2096
        %v2098 = vlaneseq
        %v2099 = vshrl.u32 %v2098, 7
        %v2100 = vsub.s32 %v2097, %v2099
        %v2101 = vrot.slane %v2073, %v2100
        %v2102 = vcombine.high %v2101, %v2101
        %v2104 = vunpack.c.l.s4 1983009808
        %v2105 = vunpack.c.0.s8 %v2104
        %v2106 = vlaneseq
        %v2107 = vshrl.u32 %v2106, 7
        %v2108 = vsub.s32 %v2105, %v2107
        %v2109 = vrot.slane %v2074, %v2108
        %v2110 = vcombine.high %v2109, %v2109
        %v2112 = vshrl.u32 %v2085, 16
        %v2114 = vrot.slane %v2112, 6
        %v2115 = vshll.u32 %v2085, 16
        %v2117 = vrot.slane %v2115, 7
        %v2118 = vor.u32 %v2114, %v2117
        %v2119 = vrot.slane %v2118, 2
        %v2121 = vshll.u32 %v2086, 16
        %v2123 = vrot.slane %v2121, 7
        %v2124 = vsel %vm1070, %v2119, %v2123
        %v2126 = vshrl.u32 %v2093, 16
        %v2128 = vrot.slane %v2126, 6
        %v2129 = vshll.u32 %v2093, 16
        %v2131 = vrot.slane %v2129, 7
        %v2132 = vor.u32 %v2128, %v2131
        %v2133 = vrot.slane %v2132, 2
        %v2135 = vshll.u32 %v2094, 16
        %v2137 = vrot.slane %v2135, 7
        %v2138 = vsel %vm1070, %v2133, %v2137
        %v2140 = vshrl.u32 %v2101, 16
        %v2142 = vrot.slane %v2140, 6
        %v2143 = vshll.u32 %v2101, 16
        %v2145 = vrot.slane %v2143, 7
        %v2146 = vor.u32 %v2142, %v2145
        %v2147 = vrot.slane %v2146, 2
        %v2149 = vshll.u32 %v2102, 16
        %v2151 = vrot.slane %v2149, 7
        %v2152 = vsel %vm1070, %v2147, %v2151
        %v2154 = vshrl.u32 %v2109, 16
        %v2156 = vrot.slane %v2154, 6
        %v2157 = vshll.u32 %v2109, 16
        %v2159 = vrot.slane %v2157, 7
        %v2160 = vor.u32 %v2156, %v2159
        %v2161 = vrot.slane %v2160, 2
        %v2163 = vshll.u32 %v2110, 16
        %v2165 = vrot.slane %v2163, 7
        %v2166 = vsel %vm1070, %v2161, %v2165
        %s2167 = scalar_lea.vmem [#allocation6], 1280
        %v2168 = vld [vmem:[%s2167] sm:$0xff]
        %v2169 = vld [vmem:[%s2167 + $0x8] sm:$0xff]
        %v2170 = vld [vmem:[%s2167 + $0x10] sm:$0xff]
        %v2171 = vld [vmem:[%s2167 + $0x18] sm:$0xff]
        %v2172 = vld [vmem:[%s2167 + $0x20] sm:$0xff]
        %v2173 = vld [vmem:[%s2167 + $0x28] sm:$0xff]
        %v2174 = vld [vmem:[%s2167 + $0x30] sm:$0xff]
        %v2175 = vld [vmem:[%s2167 + $0x38] sm:$0xff]
        %v2176 = vld [vmem:[%s2167 + $0x40] sm:$0xff]
        %v2177 = vld [vmem:[%s2167 + $0x48] sm:$0xff]
        %v2178 = vld [vmem:[%s2167 + $0x50] sm:$0xff]
        %v2179 = vld [vmem:[%s2167 + $0x58] sm:$0xff]
        %v2180 = vld [vmem:[%s2167 + $0x60] sm:$0xff]
        %v2181 = vld [vmem:[%s2167 + $0x68] sm:$0xff]
        %v2182 = vld [vmem:[%s2167 + $0x70] sm:$0xff]
        %v2183 = vld [vmem:[%s2167 + $0x78] sm:$0xff]
        %v2184 = vld [vmem:[%s2167 + $0x80] sm:$0xff]
        %v2185 = vld [vmem:[%s2167 + $0x88] sm:$0xff]
        %v2186 = vld [vmem:[%s2167 + $0x90] sm:$0xff]
        %v2187 = vld [vmem:[%s2167 + $0x98] sm:$0xff]
        %v2188 = vld [vmem:[%s2167 + $0xa0] sm:$0xff]
        %v2189 = vld [vmem:[%s2167 + $0xa8] sm:$0xff]
        %v2190 = vld [vmem:[%s2167 + $0xb0] sm:$0xff]
        %v2191 = vld [vmem:[%s2167 + $0xb8] sm:$0xff]
        %v2192 = vld [vmem:[%s2167 + $0xc0] sm:$0xff]
        %v2193 = vld [vmem:[%s2167 + $0xc8] sm:$0xff]
        %v2194 = vld [vmem:[%s2167 + $0xd0] sm:$0xff]
        %v2195 = vld [vmem:[%s2167 + $0xd8] sm:$0xff]
        %v2196 = vld [vmem:[%s2167 + $0xe0] sm:$0xff]
        %v2197 = vld [vmem:[%s2167 + $0xe8] sm:$0xff]
        %v2198 = vld [vmem:[%s2167 + $0xf0] sm:$0xff]
        %v2199 = vld [vmem:[%s2167 + $0xf8] sm:$0xff]
        %v2200 = vcombine.low %v2124, %v2138
        %v2201 = vcombine.low %v2152, %v2166
        %v2203 = vunpack.c.l.s4 1983009808
        %v2204 = vunpack.c.0.s8 %v2203
        %v2205 = vlaneseq
        %v2206 = vshrl.u32 %v2205, 7
        %v2207 = vsub.s32 %v2204, %v2206
        %v2208 = vrot.slane %v2200, %v2207
        %v2210 = vunpack.c.l.s4 1983009808
        %v2211 = vunpack.c.0.s8 %v2210
        %v2212 = vlaneseq
        %v2213 = vshrl.u32 %v2212, 7
        %v2214 = vsub.s32 %v2211, %v2213
        %v2215 = vrot.slane %v2201, %v2214
        %v2216 = vcombine.low %v2208, %v2215
        %v2217 = vcombine.high %v2208, %v2215
        %v2252 = vunpack.c.l.b16 %v2168
        %v2253 = vunpack.c.h.b16 %v2168
        %v2254 = vunpack.c.l.b16 %v2169
        %v2255 = vunpack.c.h.b16 %v2169
        %v2256 = vunpack.c.l.b16 %v2170
        %v2257 = vunpack.c.h.b16 %v2170
        %v2258 = vunpack.c.l.b16 %v2171
        %v2259 = vunpack.c.h.b16 %v2171
        %v2260 = vunpack.c.l.b16 %v2172
        %v2261 = vunpack.c.h.b16 %v2172
        %v2262 = vunpack.c.l.b16 %v2173
        %v2263 = vunpack.c.h.b16 %v2173
        %v2264 = vunpack.c.l.b16 %v2174
        %v2265 = vunpack.c.h.b16 %v2174
        %v2266 = vunpack.c.l.b16 %v2175
        %v2267 = vunpack.c.h.b16 %v2175
        %v2268 = vunpack.c.l.b16 %v2176
        %v2269 = vunpack.c.h.b16 %v2176
        %v2270 = vunpack.c.l.b16 %v2177
        %v2271 = vunpack.c.h.b16 %v2177
        %v2272 = vunpack.c.l.b16 %v2178
        %v2273 = vunpack.c.h.b16 %v2178
        %v2274 = vunpack.c.l.b16 %v2179
        %v2275 = vunpack.c.h.b16 %v2179
        %v2276 = vunpack.c.l.b16 %v2180
        %v2277 = vunpack.c.h.b16 %v2180
        %v2278 = vunpack.c.l.b16 %v2181
        %v2279 = vunpack.c.h.b16 %v2181
        %v2280 = vunpack.c.l.b16 %v2182
        %v2281 = vunpack.c.h.b16 %v2182
        %v2282 = vunpack.c.l.b16 %v2183
        %v2283 = vunpack.c.h.b16 %v2183
        %v2284 = vunpack.c.l.b16 %v2184
        %v2285 = vunpack.c.h.b16 %v2184
        %v2286 = vunpack.c.l.b16 %v2185
        %v2287 = vunpack.c.h.b16 %v2185
        %v2288 = vunpack.c.l.b16 %v2186
        %v2289 = vunpack.c.h.b16 %v2186
        %v2290 = vunpack.c.l.b16 %v2187
        %v2291 = vunpack.c.h.b16 %v2187
        %v2292 = vunpack.c.l.b16 %v2188
        %v2293 = vunpack.c.h.b16 %v2188
        %v2294 = vunpack.c.l.b16 %v2189
        %v2295 = vunpack.c.h.b16 %v2189
        %v2296 = vunpack.c.l.b16 %v2190
        %v2297 = vunpack.c.h.b16 %v2190
        %v2298 = vunpack.c.l.b16 %v2191
        %v2299 = vunpack.c.h.b16 %v2191
        %v2300 = vunpack.c.l.b16 %v2192
        %v2301 = vunpack.c.h.b16 %v2192
        %v2302 = vunpack.c.l.b16 %v2193
        %v2303 = vunpack.c.h.b16 %v2193
        %v2304 = vunpack.c.l.b16 %v2194
        %v2305 = vunpack.c.h.b16 %v2194
        %v2306 = vunpack.c.l.b16 %v2195
        %v2307 = vunpack.c.h.b16 %v2195
        %v2308 = vunpack.c.l.b16 %v2196
        %v2309 = vunpack.c.h.b16 %v2196
        %v2310 = vunpack.c.l.b16 %v2197
        %v2311 = vunpack.c.h.b16 %v2197
        %v2312 = vunpack.c.l.b16 %v2198
        %v2313 = vunpack.c.h.b16 %v2198
        %v2314 = vunpack.c.l.b16 %v2199
        %v2315 = vunpack.c.h.b16 %v2199
        %v2316 = vpack.c.b16 %v2254, %v2252
        %v2317 = vpack.c.b16 %v2255, %v2253
        %v2318 = vpack.c.b16 %v2258, %v2256
        %v2319 = vpack.c.b16 %v2259, %v2257
        %v2320 = vpack.c.b16 %v2262, %v2260
        %v2321 = vpack.c.b16 %v2263, %v2261
        %v2322 = vpack.c.b16 %v2266, %v2264
        %v2323 = vpack.c.b16 %v2267, %v2265
        %v2324 = vpack.c.b16 %v2270, %v2268
        %v2325 = vpack.c.b16 %v2271, %v2269
        %v2326 = vpack.c.b16 %v2274, %v2272
        %v2327 = vpack.c.b16 %v2275, %v2273
        %v2328 = vpack.c.b16 %v2278, %v2276
        %v2329 = vpack.c.b16 %v2279, %v2277
        %v2330 = vpack.c.b16 %v2282, %v2280
        %v2331 = vpack.c.b16 %v2283, %v2281
        %v2332 = vpack.c.b16 %v2286, %v2284
        %v2333 = vpack.c.b16 %v2287, %v2285
        %v2334 = vpack.c.b16 %v2290, %v2288
        %v2335 = vpack.c.b16 %v2291, %v2289
        %v2336 = vpack.c.b16 %v2294, %v2292
        %v2337 = vpack.c.b16 %v2295, %v2293
        %v2338 = vpack.c.b16 %v2298, %v2296
        %v2339 = vpack.c.b16 %v2299, %v2297
        %v2340 = vpack.c.b16 %v2302, %v2300
        %v2341 = vpack.c.b16 %v2303, %v2301
        %v2342 = vpack.c.b16 %v2306, %v2304
        %v2343 = vpack.c.b16 %v2307, %v2305
        %v2344 = vpack.c.b16 %v2310, %v2308
        %v2345 = vpack.c.b16 %v2311, %v2309
        %v2346 = vpack.c.b16 %v2314, %v2312
        %v2347 = vpack.c.b16 %v2315, %v2313
        %2380 = vmatprep.subr.bf16.mxu0 %v2331
        %2381 = vmatpush1.bf16.msra.mxu0 %v2330
        %2382 = vmatprep.subr.bf16.mxu0 %v2329
        %2383 = vmatpush1.bf16.msra.mxu0 %v2328
        %2384 = vmatprep.subr.bf16.mxu0 %v2327
        %2385 = vmatpush1.bf16.msra.mxu0 %v2326
        %2386 = vmatprep.subr.bf16.mxu0 %v2325
        %2387 = vmatpush1.bf16.msra.mxu0 %v2324
        %2388 = vmatprep.subr.bf16.mxu0 %v2323
        %2389 = vmatpush1.bf16.msra.mxu0 %v2322
        %2390 = vmatprep.subr.bf16.mxu0 %v2321
        %2391 = vmatpush1.bf16.msra.mxu0 %v2320
        %2392 = vmatprep.subr.bf16.mxu0 %v2319
        %2393 = vmatpush1.bf16.msra.mxu0 %v2318
        %2394 = vmatprep.subr.bf16.mxu0 %v2317
        %2395 = vmatpush1.bf16.msra.mxu0 %v2316
        %2396 = vmatprep.subr.bf16.mxu0 %v2347
        %2397 = vmatpush2.bf16.msra.mxu0 %v2346
        %2398 = vmatprep.subr.bf16.mxu0 %v2345
        %2399 = vmatpush2.bf16.msra.mxu0 %v2344
        %2400 = vmatprep.subr.bf16.mxu0 %v2343
        %2401 = vmatpush2.bf16.msra.mxu0 %v2342
        %2402 = vmatprep.subr.bf16.mxu0 %v2341
        %2403 = vmatpush2.bf16.msra.mxu0 %v2340
        %2404 = vmatprep.subr.bf16.mxu0 %v2339
        %2405 = vmatpush2.bf16.msra.mxu0 %v2338
        %2406 = vmatprep.subr.bf16.mxu0 %v2337
        %2407 = vmatpush2.bf16.msra.mxu0 %v2336
        %2408 = vmatprep.subr.bf16.mxu0 %v2335
        %2409 = vmatpush2.bf16.msra.mxu0 %v2334
        %2410 = vmatprep.subr.bf16.mxu0 %v2333
        %2411 = vmatpush2.bf16.msra.mxu0 %v2332
        %2412 = vmatprep.mubr.bf16.mxu0 %v2217
        %2413 = vmatmul.mubr.bf16.gmra.mxu0 %v2216
        %v2414 = vpop.f32.mrf.mxu0
        %v2415 = vadd.f32 0.0, %v2414
        %v2416 = vpop.f32.mrf.mxu0
        %v2417 = vadd.f32 0.0, %v2416
        %v2418 = vpop.f32.mrf.mxu0
        %v2419 = vadd.f32 0.0, %v2418
        %v2420 = vpop.f32.mrf.mxu0
        %v2421 = vadd.f32 0.0, %v2420
        %2422 = vdwg.mxu0
        %v2423 = vadd.f32 %v2067, %v2415
        %v2424 = vadd.f32 %v2068, %v2417
        %v2425 = vadd.f32 %v2069, %v2419
        %v2426 = vadd.f32 %v2070, %v2421
        %s2427 = scalar_lea.vmem [#allocation2], 64
        %v2428 = vld [vmem:[%s2427 + $0x8] sm:$0x88]
        %v2429 = vld [vmem:[%s2427 + $0x10] sm:$0x33]
        %v2430 = vld [vmem:[%s2427 + $0x28] sm:$0x88]
        %v2431 = vld [vmem:[%s2427 + $0x30] sm:$0x33]
        %v2432 = vld [vmem:[%s2427 + $0x48] sm:$0x88]
        %v2433 = vld [vmem:[%s2427 + $0x50] sm:$0x33]
        %v2434 = vld [vmem:[%s2427 + $0x68] sm:$0x88]
        %v2435 = vld [vmem:[%s2427 + $0x70] sm:$0x33]
        %v2445 = vunpack.c.l.s4 1983009808
        %v2446 = vunpack.c.0.s8 %v2445
        %v2447 = vlaneseq
        %v2448 = vshrl.u32 %v2447, 7
        %v2449 = vsub.s32 %v2446, %v2448
        %v2450 = vrot.slane %v2428, %v2449
        %v2451 = vcombine.high %v2450, %v2450
        %v2453 = vunpack.c.l.s4 1983009808
        %v2454 = vunpack.c.0.s8 %v2453
        %v2455 = vlaneseq
        %v2456 = vshrl.u32 %v2455, 7
        %v2457 = vsub.s32 %v2454, %v2456
        %v2458 = vrot.slane %v2429, %v2457
        %v2460 = vunpack.c.l.s4 1983009808
        %v2461 = vunpack.c.0.s8 %v2460
        %v2462 = vlaneseq
        %v2463 = vshrl.u32 %v2462, 7
        %v2464 = vsub.s32 %v2461, %v2463
        %v2465 = vrot.slane %v2430, %v2464
        %v2466 = vcombine.high %v2465, %v2465
        %v2468 = vunpack.c.l.s4 1983009808
        %v2469 = vunpack.c.0.s8 %v2468
        %v2470 = vlaneseq
        %v2471 = vshrl.u32 %v2470, 7
        %v2472 = vsub.s32 %v2469, %v2471
        %v2473 = vrot.slane %v2431, %v2472
        %v2475 = vunpack.c.l.s4 1983009808
        %v2476 = vunpack.c.0.s8 %v2475
        %v2477 = vlaneseq
        %v2478 = vshrl.u32 %v2477, 7
        %v2479 = vsub.s32 %v2476, %v2478
        %v2480 = vrot.slane %v2432, %v2479
        %v2481 = vcombine.high %v2480, %v2480
        %v2483 = vunpack.c.l.s4 1983009808
        %v2484 = vunpack.c.0.s8 %v2483
        %v2485 = vlaneseq
        %v2486 = vshrl.u32 %v2485, 7
        %v2487 = vsub.s32 %v2484, %v2486
        %v2488 = vrot.slane %v2433, %v2487
        %v2490 = vunpack.c.l.s4 1983009808
        %v2491 = vunpack.c.0.s8 %v2490
        %v2492 = vlaneseq
        %v2493 = vshrl.u32 %v2492, 7
        %v2494 = vsub.s32 %v2491, %v2493
        %v2495 = vrot.slane %v2434, %v2494
        %v2496 = vcombine.high %v2495, %v2495
        %v2498 = vunpack.c.l.s4 1983009808
        %v2499 = vunpack.c.0.s8 %v2498
        %v2500 = vlaneseq
        %v2501 = vshrl.u32 %v2500, 7
        %v2502 = vsub.s32 %v2499, %v2501
        %v2503 = vrot.slane %v2435, %v2502
        %v2505 = vshrl.u32 %v2451, 16
        %v2507 = vrot.slane %v2505, 7
        %v2508 = vrot.slane %v2507, 2
        %v2510 = vshrl.u32 %v2458, 16
        %v2512 = vrot.slane %v2510, 7
        %v2513 = vshll.u32 %v2458, 16
        %v2515 = vor.u32 %v2512, %v2513
        %v2516 = vsel %vm460, %v2508, %v2515
        %v2518 = vshrl.u32 %v2466, 16
        %v2520 = vrot.slane %v2518, 7
        %v2521 = vrot.slane %v2520, 2
        %v2523 = vshrl.u32 %v2473, 16
        %v2525 = vrot.slane %v2523, 7
        %v2526 = vshll.u32 %v2473, 16
        %v2528 = vor.u32 %v2525, %v2526
        %v2529 = vsel %vm460, %v2521, %v2528
        %v2531 = vshrl.u32 %v2481, 16
        %v2533 = vrot.slane %v2531, 7
        %v2534 = vrot.slane %v2533, 2
        %v2536 = vshrl.u32 %v2488, 16
        %v2538 = vrot.slane %v2536, 7
        %v2539 = vshll.u32 %v2488, 16
        %v2541 = vor.u32 %v2538, %v2539
        %v2542 = vsel %vm460, %v2534, %v2541
        %v2544 = vshrl.u32 %v2496, 16
        %v2546 = vrot.slane %v2544, 7
        %v2547 = vrot.slane %v2546, 2
        %v2549 = vshrl.u32 %v2503, 16
        %v2551 = vrot.slane %v2549, 7
        %v2552 = vshll.u32 %v2503, 16
        %v2554 = vor.u32 %v2551, %v2552
        %v2555 = vsel %vm460, %v2547, %v2554
        %s2556 = scalar_lea.vmem [#allocation6], 1536
        %v2557 = vld [vmem:[%s2556] sm:$0xff]
        %v2558 = vld [vmem:[%s2556 + $0x8] sm:$0xff]
        %v2559 = vld [vmem:[%s2556 + $0x10] sm:$0xff]
        %v2560 = vld [vmem:[%s2556 + $0x18] sm:$0xff]
        %v2561 = vld [vmem:[%s2556 + $0x20] sm:$0xff]
        %v2562 = vld [vmem:[%s2556 + $0x28] sm:$0xff]
        %v2563 = vld [vmem:[%s2556 + $0x30] sm:$0xff]
        %v2564 = vld [vmem:[%s2556 + $0x38] sm:$0xff]
        %v2565 = vld [vmem:[%s2556 + $0x40] sm:$0xff]
        %v2566 = vld [vmem:[%s2556 + $0x48] sm:$0xff]
        %v2567 = vld [vmem:[%s2556 + $0x50] sm:$0xff]
        %v2568 = vld [vmem:[%s2556 + $0x58] sm:$0xff]
        %v2569 = vld [vmem:[%s2556 + $0x60] sm:$0xff]
        %v2570 = vld [vmem:[%s2556 + $0x68] sm:$0xff]
        %v2571 = vld [vmem:[%s2556 + $0x70] sm:$0xff]
        %v2572 = vld [vmem:[%s2556 + $0x78] sm:$0xff]
        %v2573 = vld [vmem:[%s2556 + $0x80] sm:$0xff]
        %v2574 = vld [vmem:[%s2556 + $0x88] sm:$0xff]
        %v2575 = vld [vmem:[%s2556 + $0x90] sm:$0xff]
        %v2576 = vld [vmem:[%s2556 + $0x98] sm:$0xff]
        %v2577 = vld [vmem:[%s2556 + $0xa0] sm:$0xff]
        %v2578 = vld [vmem:[%s2556 + $0xa8] sm:$0xff]
        %v2579 = vld [vmem:[%s2556 + $0xb0] sm:$0xff]
        %v2580 = vld [vmem:[%s2556 + $0xb8] sm:$0xff]
        %v2581 = vld [vmem:[%s2556 + $0xc0] sm:$0xff]
        %v2582 = vld [vmem:[%s2556 + $0xc8] sm:$0xff]
        %v2583 = vld [vmem:[%s2556 + $0xd0] sm:$0xff]
        %v2584 = vld [vmem:[%s2556 + $0xd8] sm:$0xff]
        %v2585 = vld [vmem:[%s2556 + $0xe0] sm:$0xff]
        %v2586 = vld [vmem:[%s2556 + $0xe8] sm:$0xff]
        %v2587 = vld [vmem:[%s2556 + $0xf0] sm:$0xff]
        %v2588 = vld [vmem:[%s2556 + $0xf8] sm:$0xff]
        %v2589 = vcombine.low %v2516, %v2529
        %v2590 = vcombine.low %v2542, %v2555
        %v2592 = vunpack.c.l.s4 1983009808
        %v2593 = vunpack.c.0.s8 %v2592
        %v2594 = vlaneseq
        %v2595 = vshrl.u32 %v2594, 7
        %v2596 = vsub.s32 %v2593, %v2595
        %v2597 = vrot.slane %v2589, %v2596
        %v2599 = vunpack.c.l.s4 1983009808
        %v2600 = vunpack.c.0.s8 %v2599
        %v2601 = vlaneseq
        %v2602 = vshrl.u32 %v2601, 7
        %v2603 = vsub.s32 %v2600, %v2602
        %v2604 = vrot.slane %v2590, %v2603
        %v2605 = vcombine.low %v2597, %v2604
        %v2606 = vcombine.high %v2597, %v2604
        %v2641 = vunpack.c.l.b16 %v2557
        %v2642 = vunpack.c.h.b16 %v2557
        %v2643 = vunpack.c.l.b16 %v2558
        %v2644 = vunpack.c.h.b16 %v2558
        %v2645 = vunpack.c.l.b16 %v2559
        %v2646 = vunpack.c.h.b16 %v2559
        %v2647 = vunpack.c.l.b16 %v2560
        %v2648 = vunpack.c.h.b16 %v2560
        %v2649 = vunpack.c.l.b16 %v2561
        %v2650 = vunpack.c.h.b16 %v2561
        %v2651 = vunpack.c.l.b16 %v2562
        %v2652 = vunpack.c.h.b16 %v2562
        %v2653 = vunpack.c.l.b16 %v2563
        %v2654 = vunpack.c.h.b16 %v2563
        %v2655 = vunpack.c.l.b16 %v2564
        %v2656 = vunpack.c.h.b16 %v2564
        %v2657 = vunpack.c.l.b16 %v2565
        %v2658 = vunpack.c.h.b16 %v2565
        %v2659 = vunpack.c.l.b16 %v2566
        %v2660 = vunpack.c.h.b16 %v2566
        %v2661 = vunpack.c.l.b16 %v2567
        %v2662 = vunpack.c.h.b16 %v2567
        %v2663 = vunpack.c.l.b16 %v2568
        %v2664 = vunpack.c.h.b16 %v2568
        %v2665 = vunpack.c.l.b16 %v2569
        %v2666 = vunpack.c.h.b16 %v2569
        %v2667 = vunpack.c.l.b16 %v2570
        %v2668 = vunpack.c.h.b16 %v2570
        %v2669 = vunpack.c.l.b16 %v2571
        %v2670 = vunpack.c.h.b16 %v2571
        %v2671 = vunpack.c.l.b16 %v2572
        %v2672 = vunpack.c.h.b16 %v2572
        %v2673 = vunpack.c.l.b16 %v2573
        %v2674 = vunpack.c.h.b16 %v2573
        %v2675 = vunpack.c.l.b16 %v2574
        %v2676 = vunpack.c.h.b16 %v2574
        %v2677 = vunpack.c.l.b16 %v2575
        %v2678 = vunpack.c.h.b16 %v2575
        %v2679 = vunpack.c.l.b16 %v2576
        %v2680 = vunpack.c.h.b16 %v2576
        %v2681 = vunpack.c.l.b16 %v2577
        %v2682 = vunpack.c.h.b16 %v2577
        %v2683 = vunpack.c.l.b16 %v2578
        %v2684 = vunpack.c.h.b16 %v2578
        %v2685 = vunpack.c.l.b16 %v2579
        %v2686 = vunpack.c.h.b16 %v2579
        %v2687 = vunpack.c.l.b16 %v2580
        %v2688 = vunpack.c.h.b16 %v2580
        %v2689 = vunpack.c.l.b16 %v2581
        %v2690 = vunpack.c.h.b16 %v2581
        %v2691 = vunpack.c.l.b16 %v2582
        %v2692 = vunpack.c.h.b16 %v2582
        %v2693 = vunpack.c.l.b16 %v2583
        %v2694 = vunpack.c.h.b16 %v2583
        %v2695 = vunpack.c.l.b16 %v2584
        %v2696 = vunpack.c.h.b16 %v2584
        %v2697 = vunpack.c.l.b16 %v2585
        %v2698 = vunpack.c.h.b16 %v2585
        %v2699 = vunpack.c.l.b16 %v2586
        %v2700 = vunpack.c.h.b16 %v2586
        %v2701 = vunpack.c.l.b16 %v2587
        %v2702 = vunpack.c.h.b16 %v2587
        %v2703 = vunpack.c.l.b16 %v2588
        %v2704 = vunpack.c.h.b16 %v2588
        %v2705 = vpack.c.b16 %v2643, %v2641
        %v2706 = vpack.c.b16 %v2644, %v2642
        %v2707 = vpack.c.b16 %v2647, %v2645
        %v2708 = vpack.c.b16 %v2648, %v2646
        %v2709 = vpack.c.b16 %v2651, %v2649
        %v2710 = vpack.c.b16 %v2652, %v2650
        %v2711 = vpack.c.b16 %v2655, %v2653
        %v2712 = vpack.c.b16 %v2656, %v2654
        %v2713 = vpack.c.b16 %v2659, %v2657
        %v2714 = vpack.c.b16 %v2660, %v2658
        %v2715 = vpack.c.b16 %v2663, %v2661
        %v2716 = vpack.c.b16 %v2664, %v2662
        %v2717 = vpack.c.b16 %v2667, %v2665
        %v2718 = vpack.c.b16 %v2668, %v2666
        %v2719 = vpack.c.b16 %v2671, %v2669
        %v2720 = vpack.c.b16 %v2672, %v2670
        %v2721 = vpack.c.b16 %v2675, %v2673
        %v2722 = vpack.c.b16 %v2676, %v2674
        %v2723 = vpack.c.b16 %v2679, %v2677
        %v2724 = vpack.c.b16 %v2680, %v2678
        %v2725 = vpack.c.b16 %v2683, %v2681
        %v2726 = vpack.c.b16 %v2684, %v2682
        %v2727 = vpack.c.b16 %v2687, %v2685
        %v2728 = vpack.c.b16 %v2688, %v2686
        %v2729 = vpack.c.b16 %v2691, %v2689
        %v2730 = vpack.c.b16 %v2692, %v2690
        %v2731 = vpack.c.b16 %v2695, %v2693
        %v2732 = vpack.c.b16 %v2696, %v2694
        %v2733 = vpack.c.b16 %v2699, %v2697
        %v2734 = vpack.c.b16 %v2700, %v2698
        %v2735 = vpack.c.b16 %v2703, %v2701
        %v2736 = vpack.c.b16 %v2704, %v2702
        %2769 = vmatprep.subr.bf16.mxu0 %v2720
        %2770 = vmatpush1.bf16.msra.mxu0 %v2719
        %2771 = vmatprep.subr.bf16.mxu0 %v2718
        %2772 = vmatpush1.bf16.msra.mxu0 %v2717
        %2773 = vmatprep.subr.bf16.mxu0 %v2716
        %2774 = vmatpush1.bf16.msra.mxu0 %v2715
        %2775 = vmatprep.subr.bf16.mxu0 %v2714
        %2776 = vmatpush1.bf16.msra.mxu0 %v2713
        %2777 = vmatprep.subr.bf16.mxu0 %v2712
        %2778 = vmatpush1.bf16.msra.mxu0 %v2711
        %2779 = vmatprep.subr.bf16.mxu0 %v2710
        %2780 = vmatpush1.bf16.msra.mxu0 %v2709
        %2781 = vmatprep.subr.bf16.mxu0 %v2708
        %2782 = vmatpush1.bf16.msra.mxu0 %v2707
        %2783 = vmatprep.subr.bf16.mxu0 %v2706
        %2784 = vmatpush1.bf16.msra.mxu0 %v2705
        %2785 = vmatprep.subr.bf16.mxu0 %v2736
        %2786 = vmatpush2.bf16.msra.mxu0 %v2735
        %2787 = vmatprep.subr.bf16.mxu0 %v2734
        %2788 = vmatpush2.bf16.msra.mxu0 %v2733
        %2789 = vmatprep.subr.bf16.mxu0 %v2732
        %2790 = vmatpush2.bf16.msra.mxu0 %v2731
        %2791 = vmatprep.subr.bf16.mxu0 %v2730
        %2792 = vmatpush2.bf16.msra.mxu0 %v2729
        %2793 = vmatprep.subr.bf16.mxu0 %v2728
        %2794 = vmatpush2.bf16.msra.mxu0 %v2727
        %2795 = vmatprep.subr.bf16.mxu0 %v2726
        %2796 = vmatpush2.bf16.msra.mxu0 %v2725
        %2797 = vmatprep.subr.bf16.mxu0 %v2724
        %2798 = vmatpush2.bf16.msra.mxu0 %v2723
        %2799 = vmatprep.subr.bf16.mxu0 %v2722
        %2800 = vmatpush2.bf16.msra.mxu0 %v2721
        %2801 = vmatprep.mubr.bf16.mxu0 %v2606
        %2802 = vmatmul.mubr.bf16.gmra.mxu0 %v2605
        %v2803 = vpop.f32.mrf.mxu0
        %v2804 = vadd.f32 0.0, %v2803
        %v2805 = vpop.f32.mrf.mxu0
        %v2806 = vadd.f32 0.0, %v2805
        %v2807 = vpop.f32.mrf.mxu0
        %v2808 = vadd.f32 0.0, %v2807
        %v2809 = vpop.f32.mrf.mxu0
        %v2810 = vadd.f32 0.0, %v2809
        %2811 = vdwg.mxu0
        %v2812 = vadd.f32 %v2423, %v2804
        %v2813 = vadd.f32 %v2424, %v2806
        %v2814 = vadd.f32 %v2425, %v2808
        %v2815 = vadd.f32 %v2426, %v2810
        %v2816 = vld [vmem:[%s2427 + $0x10] sm:$0x33]
        %v2817 = vld [vmem:[%s2427 + $0x30] sm:$0x33]
        %v2818 = vld [vmem:[%s2427 + $0x50] sm:$0x33]
        %v2819 = vld [vmem:[%s2427 + $0x70] sm:$0x33]
        %v2825 = vunpack.c.l.s4 1983009808
        %v2826 = vunpack.c.0.s8 %v2825
        %v2827 = vlaneseq
        %v2828 = vshrl.u32 %v2827, 7
        %v2829 = vsub.s32 %v2826, %v2828
        %v2830 = vrot.slane %v2816, %v2829
        %v2832 = vunpack.c.l.s4 1983009808
        %v2833 = vunpack.c.0.s8 %v2832
        %v2834 = vlaneseq
        %v2835 = vshrl.u32 %v2834, 7
        %v2836 = vsub.s32 %v2833, %v2835
        %v2837 = vrot.slane %v2817, %v2836
        %v2839 = vunpack.c.l.s4 1983009808
        %v2840 = vunpack.c.0.s8 %v2839
        %v2841 = vlaneseq
        %v2842 = vshrl.u32 %v2841, 7
        %v2843 = vsub.s32 %v2840, %v2842
        %v2844 = vrot.slane %v2818, %v2843
        %v2846 = vunpack.c.l.s4 1983009808
        %v2847 = vunpack.c.0.s8 %v2846
        %v2848 = vlaneseq
        %v2849 = vshrl.u32 %v2848, 7
        %v2850 = vsub.s32 %v2847, %v2849
        %v2851 = vrot.slane %v2819, %v2850
        %s2852 = scalar_lea.vmem [#allocation6], 1792
        %v2853 = vld [vmem:[%s2852] sm:$0xff]
        %v2854 = vld [vmem:[%s2852 + $0x8] sm:$0xff]
        %v2855 = vld [vmem:[%s2852 + $0x10] sm:$0xff]
        %v2856 = vld [vmem:[%s2852 + $0x18] sm:$0xff]
        %v2857 = vld [vmem:[%s2852 + $0x20] sm:$0xff]
        %v2858 = vld [vmem:[%s2852 + $0x28] sm:$0xff]
        %v2859 = vld [vmem:[%s2852 + $0x30] sm:$0xff]
        %v2860 = vld [vmem:[%s2852 + $0x38] sm:$0xff]
        %v2861 = vld [vmem:[%s2852 + $0x40] sm:$0xff]
        %v2862 = vld [vmem:[%s2852 + $0x48] sm:$0xff]
        %v2863 = vld [vmem:[%s2852 + $0x50] sm:$0xff]
        %v2864 = vld [vmem:[%s2852 + $0x58] sm:$0xff]
        %v2865 = vld [vmem:[%s2852 + $0x60] sm:$0xff]
        %v2866 = vld [vmem:[%s2852 + $0x68] sm:$0xff]
        %v2867 = vld [vmem:[%s2852 + $0x70] sm:$0xff]
        %v2868 = vld [vmem:[%s2852 + $0x78] sm:$0xff]
        %v2869 = vld [vmem:[%s2852 + $0x80] sm:$0xff]
        %v2870 = vld [vmem:[%s2852 + $0x88] sm:$0xff]
        %v2871 = vld [vmem:[%s2852 + $0x90] sm:$0xff]
        %v2872 = vld [vmem:[%s2852 + $0x98] sm:$0xff]
        %v2873 = vld [vmem:[%s2852 + $0xa0] sm:$0xff]
        %v2874 = vld [vmem:[%s2852 + $0xa8] sm:$0xff]
        %v2875 = vld [vmem:[%s2852 + $0xb0] sm:$0xff]
        %v2876 = vld [vmem:[%s2852 + $0xb8] sm:$0xff]
        %v2877 = vld [vmem:[%s2852 + $0xc0] sm:$0xff]
        %v2878 = vld [vmem:[%s2852 + $0xc8] sm:$0xff]
        %v2879 = vld [vmem:[%s2852 + $0xd0] sm:$0xff]
        %v2880 = vld [vmem:[%s2852 + $0xd8] sm:$0xff]
        %v2881 = vld [vmem:[%s2852 + $0xe0] sm:$0xff]
        %v2882 = vld [vmem:[%s2852 + $0xe8] sm:$0xff]
        %v2883 = vld [vmem:[%s2852 + $0xf0] sm:$0xff]
        %v2884 = vld [vmem:[%s2852 + $0xf8] sm:$0xff]
        %v2885 = vcombine.low %v2830, %v2837
        %v2886 = vcombine.low %v2844, %v2851
        %v2888 = vunpack.c.l.s4 1983009808
        %v2889 = vunpack.c.0.s8 %v2888
        %v2890 = vlaneseq
        %v2891 = vshrl.u32 %v2890, 7
        %v2892 = vsub.s32 %v2889, %v2891
        %v2893 = vrot.slane %v2885, %v2892
        %v2895 = vunpack.c.l.s4 1983009808
        %v2896 = vunpack.c.0.s8 %v2895
        %v2897 = vlaneseq
        %v2898 = vshrl.u32 %v2897, 7
        %v2899 = vsub.s32 %v2896, %v2898
        %v2900 = vrot.slane %v2886, %v2899
        %v2901 = vcombine.low %v2893, %v2900
        %v2902 = vcombine.high %v2893, %v2900
        %v2937 = vunpack.c.l.b16 %v2853
        %v2938 = vunpack.c.h.b16 %v2853
        %v2939 = vunpack.c.l.b16 %v2854
        %v2940 = vunpack.c.h.b16 %v2854
        %v2941 = vunpack.c.l.b16 %v2855
        %v2942 = vunpack.c.h.b16 %v2855
        %v2943 = vunpack.c.l.b16 %v2856
        %v2944 = vunpack.c.h.b16 %v2856
        %v2945 = vunpack.c.l.b16 %v2857
        %v2946 = vunpack.c.h.b16 %v2857
        %v2947 = vunpack.c.l.b16 %v2858
        %v2948 = vunpack.c.h.b16 %v2858
        %v2949 = vunpack.c.l.b16 %v2859
        %v2950 = vunpack.c.h.b16 %v2859
        %v2951 = vunpack.c.l.b16 %v2860
        %v2952 = vunpack.c.h.b16 %v2860
        %v2953 = vunpack.c.l.b16 %v2861
        %v2954 = vunpack.c.h.b16 %v2861
        %v2955 = vunpack.c.l.b16 %v2862
        %v2956 = vunpack.c.h.b16 %v2862
        %v2957 = vunpack.c.l.b16 %v2863
        %v2958 = vunpack.c.h.b16 %v2863
        %v2959 = vunpack.c.l.b16 %v2864
        %v2960 = vunpack.c.h.b16 %v2864
        %v2961 = vunpack.c.l.b16 %v2865
        %v2962 = vunpack.c.h.b16 %v2865
        %v2963 = vunpack.c.l.b16 %v2866
        %v2964 = vunpack.c.h.b16 %v2866
        %v2965 = vunpack.c.l.b16 %v2867
        %v2966 = vunpack.c.h.b16 %v2867
        %v2967 = vunpack.c.l.b16 %v2868
        %v2968 = vunpack.c.h.b16 %v2868
        %v2969 = vunpack.c.l.b16 %v2869
        %v2970 = vunpack.c.h.b16 %v2869
        %v2971 = vunpack.c.l.b16 %v2870
        %v2972 = vunpack.c.h.b16 %v2870
        %v2973 = vunpack.c.l.b16 %v2871
        %v2974 = vunpack.c.h.b16 %v2871
        %v2975 = vunpack.c.l.b16 %v2872
        %v2976 = vunpack.c.h.b16 %v2872
        %v2977 = vunpack.c.l.b16 %v2873
        %v2978 = vunpack.c.h.b16 %v2873
        %v2979 = vunpack.c.l.b16 %v2874
        %v2980 = vunpack.c.h.b16 %v2874
        %v2981 = vunpack.c.l.b16 %v2875
        %v2982 = vunpack.c.h.b16 %v2875
        %v2983 = vunpack.c.l.b16 %v2876
        %v2984 = vunpack.c.h.b16 %v2876
        %v2985 = vunpack.c.l.b16 %v2877
        %v2986 = vunpack.c.h.b16 %v2877
        %v2987 = vunpack.c.l.b16 %v2878
        %v2988 = vunpack.c.h.b16 %v2878
        %v2989 = vunpack.c.l.b16 %v2879
        %v2990 = vunpack.c.h.b16 %v2879
        %v2991 = vunpack.c.l.b16 %v2880
        %v2992 = vunpack.c.h.b16 %v2880
        %v2993 = vunpack.c.l.b16 %v2881
        %v2994 = vunpack.c.h.b16 %v2881
        %v2995 = vunpack.c.l.b16 %v2882
        %v2996 = vunpack.c.h.b16 %v2882
        %v2997 = vunpack.c.l.b16 %v2883
        %v2998 = vunpack.c.h.b16 %v2883
        %v2999 = vunpack.c.l.b16 %v2884
        %v3000 = vunpack.c.h.b16 %v2884
        %v3001 = vpack.c.b16 %v2939, %v2937
        %v3002 = vpack.c.b16 %v2940, %v2938
        %v3003 = vpack.c.b16 %v2943, %v2941
        %v3004 = vpack.c.b16 %v2944, %v2942
        %v3005 = vpack.c.b16 %v2947, %v2945
        %v3006 = vpack.c.b16 %v2948, %v2946
        %v3007 = vpack.c.b16 %v2951, %v2949
        %v3008 = vpack.c.b16 %v2952, %v2950
        %v3009 = vpack.c.b16 %v2955, %v2953
        %v3010 = vpack.c.b16 %v2956, %v2954
        %v3011 = vpack.c.b16 %v2959, %v2957
        %v3012 = vpack.c.b16 %v2960, %v2958
        %v3013 = vpack.c.b16 %v2963, %v2961
        %v3014 = vpack.c.b16 %v2964, %v2962
        %v3015 = vpack.c.b16 %v2967, %v2965
        %v3016 = vpack.c.b16 %v2968, %v2966
        %v3017 = vpack.c.b16 %v2971, %v2969
        %v3018 = vpack.c.b16 %v2972, %v2970
        %v3019 = vpack.c.b16 %v2975, %v2973
        %v3020 = vpack.c.b16 %v2976, %v2974
        %v3021 = vpack.c.b16 %v2979, %v2977
        %v3022 = vpack.c.b16 %v2980, %v2978
        %v3023 = vpack.c.b16 %v2983, %v2981
        %v3024 = vpack.c.b16 %v2984, %v2982
        %v3025 = vpack.c.b16 %v2987, %v2985
        %v3026 = vpack.c.b16 %v2988, %v2986
        %v3027 = vpack.c.b16 %v2991, %v2989
        %v3028 = vpack.c.b16 %v2992, %v2990
        %v3029 = vpack.c.b16 %v2995, %v2993
        %v3030 = vpack.c.b16 %v2996, %v2994
        %v3031 = vpack.c.b16 %v2999, %v2997
        %v3032 = vpack.c.b16 %v3000, %v2998
        %3065 = vmatprep.subr.bf16.mxu0 %v3016
        %3066 = vmatpush1.bf16.msra.mxu0 %v3015
        %3067 = vmatprep.subr.bf16.mxu0 %v3014
        %3068 = vmatpush1.bf16.msra.mxu0 %v3013
        %3069 = vmatprep.subr.bf16.mxu0 %v3012
        %3070 = vmatpush1.bf16.msra.mxu0 %v3011
        %3071 = vmatprep.subr.bf16.mxu0 %v3010
        %3072 = vmatpush1.bf16.msra.mxu0 %v3009
        %3073 = vmatprep.subr.bf16.mxu0 %v3008
        %3074 = vmatpush1.bf16.msra.mxu0 %v3007
        %3075 = vmatprep.subr.bf16.mxu0 %v3006
        %3076 = vmatpush1.bf16.msra.mxu0 %v3005
        %3077 = vmatprep.subr.bf16.mxu0 %v3004
        %3078 = vmatpush1.bf16.msra.mxu0 %v3003
        %3079 = vmatprep.subr.bf16.mxu0 %v3002
        %3080 = vmatpush1.bf16.msra.mxu0 %v3001
        %3081 = vmatprep.subr.bf16.mxu0 %v3032
        %3082 = vmatpush2.bf16.msra.mxu0 %v3031
        %3083 = vmatprep.subr.bf16.mxu0 %v3030
        %3084 = vmatpush2.bf16.msra.mxu0 %v3029
        %3085 = vmatprep.subr.bf16.mxu0 %v3028
        %3086 = vmatpush2.bf16.msra.mxu0 %v3027
        %3087 = vmatprep.subr.bf16.mxu0 %v3026
        %3088 = vmatpush2.bf16.msra.mxu0 %v3025
        %3089 = vmatprep.subr.bf16.mxu0 %v3024
        %3090 = vmatpush2.bf16.msra.mxu0 %v3023
        %3091 = vmatprep.subr.bf16.mxu0 %v3022
        %3092 = vmatpush2.bf16.msra.mxu0 %v3021
        %3093 = vmatprep.subr.bf16.mxu0 %v3020
        %3094 = vmatpush2.bf16.msra.mxu0 %v3019
        %3095 = vmatprep.subr.bf16.mxu0 %v3018
        %3096 = vmatpush2.bf16.msra.mxu0 %v3017
        %3097 = vmatprep.mubr.bf16.mxu0 %v2902
        %3098 = vmatmul.mubr.bf16.gmra.mxu0 %v2901
        %v3099 = vpop.f32.mrf.mxu0
        %v3100 = vadd.f32 0.0, %v3099
        %v3101 = vpop.f32.mrf.mxu0
        %v3102 = vadd.f32 0.0, %v3101
        %v3103 = vpop.f32.mrf.mxu0
        %v3104 = vadd.f32 0.0, %v3103
        %v3105 = vpop.f32.mrf.mxu0
        %v3106 = vadd.f32 0.0, %v3105
        %3107 = vdwg.mxu0
        %v3108 = vadd.f32 %v2812, %v3100
        %v3109 = vadd.f32 %v2813, %v3102
        %v3110 = vadd.f32 %v2814, %v3104
        %v3111 = vadd.f32 %v2815, %v3106
        %v3112 = vld [vmem:[%s2427 + $0x10] sm:$0x77]
        %v3113 = vld [vmem:[%s2427 + $0x30] sm:$0x77]
        %v3114 = vld [vmem:[%s2427 + $0x50] sm:$0x77]
        %v3115 = vld [vmem:[%s2427 + $0x70] sm:$0x77]
        %v3121 = vunpack.c.l.s4 1983009808
        %v3122 = vunpack.c.0.s8 %v3121
        %v3123 = vlaneseq
        %v3124 = vshrl.u32 %v3123, 7
        %v3125 = vsub.s32 %v3122, %v3124
        %v3126 = vrot.slane %v3112, %v3125
        %v3127 = vcombine.high %v3126, %v3126
        %v3129 = vunpack.c.l.s4 1983009808
        %v3130 = vunpack.c.0.s8 %v3129
        %v3131 = vlaneseq
        %v3132 = vshrl.u32 %v3131, 7
        %v3133 = vsub.s32 %v3130, %v3132
        %v3134 = vrot.slane %v3113, %v3133
        %v3135 = vcombine.high %v3134, %v3134
        %v3137 = vunpack.c.l.s4 1983009808
        %v3138 = vunpack.c.0.s8 %v3137
        %v3139 = vlaneseq
        %v3140 = vshrl.u32 %v3139, 7
        %v3141 = vsub.s32 %v3138, %v3140
        %v3142 = vrot.slane %v3114, %v3141
        %v3143 = vcombine.high %v3142, %v3142
        %v3145 = vunpack.c.l.s4 1983009808
        %v3146 = vunpack.c.0.s8 %v3145
        %v3147 = vlaneseq
        %v3148 = vshrl.u32 %v3147, 7
        %v3149 = vsub.s32 %v3146, %v3148
        %v3150 = vrot.slane %v3115, %v3149
        %v3151 = vcombine.high %v3150, %v3150
        %v3153 = vshrl.u32 %v3126, 16
        %v3155 = vrot.slane %v3153, 6
        %v3156 = vshll.u32 %v3126, 16
        %v3158 = vrot.slane %v3156, 7
        %v3159 = vor.u32 %v3155, %v3158
        %v3160 = vrot.slane %v3159, 2
        %v3162 = vshll.u32 %v3127, 16
        %v3164 = vrot.slane %v3162, 7
        %v3165 = vsel %vm1070, %v3160, %v3164
        %v3167 = vshrl.u32 %v3134, 16
        %v3169 = vrot.slane %v3167, 6
        %v3170 = vshll.u32 %v3134, 16
        %v3172 = vrot.slane %v3170, 7
        %v3173 = vor.u32 %v3169, %v3172
        %v3174 = vrot.slane %v3173, 2
        %v3176 = vshll.u32 %v3135, 16
        %v3178 = vrot.slane %v3176, 7
        %v3179 = vsel %vm1070, %v3174, %v3178
        %v3181 = vshrl.u32 %v3142, 16
        %v3183 = vrot.slane %v3181, 6
        %v3184 = vshll.u32 %v3142, 16
        %v3186 = vrot.slane %v3184, 7
        %v3187 = vor.u32 %v3183, %v3186
        %v3188 = vrot.slane %v3187, 2
        %v3190 = vshll.u32 %v3143, 16
        %v3192 = vrot.slane %v3190, 7
        %v3193 = vsel %vm1070, %v3188, %v3192
        %v3195 = vshrl.u32 %v3150, 16
        %v3197 = vrot.slane %v3195, 6
        %v3198 = vshll.u32 %v3150, 16
        %v3200 = vrot.slane %v3198, 7
        %v3201 = vor.u32 %v3197, %v3200
        %v3202 = vrot.slane %v3201, 2
        %v3204 = vshll.u32 %v3151, 16
        %v3206 = vrot.slane %v3204, 7
        %v3207 = vsel %vm1070, %v3202, %v3206
        %s3208 = scalar_lea.vmem [#allocation6], 2048
        %v3209 = vld [vmem:[%s3208] sm:$0xff]
        %v3210 = vld [vmem:[%s3208 + $0x8] sm:$0xff]
        %v3211 = vld [vmem:[%s3208 + $0x10] sm:$0xff]
        %v3212 = vld [vmem:[%s3208 + $0x18] sm:$0xff]
        %v3213 = vld [vmem:[%s3208 + $0x20] sm:$0xff]
        %v3214 = vld [vmem:[%s3208 + $0x28] sm:$0xff]
        %v3215 = vld [vmem:[%s3208 + $0x30] sm:$0xff]
        %v3216 = vld [vmem:[%s3208 + $0x38] sm:$0xff]
        %v3217 = vld [vmem:[%s3208 + $0x40] sm:$0xff]
        %v3218 = vld [vmem:[%s3208 + $0x48] sm:$0xff]
        %v3219 = vld [vmem:[%s3208 + $0x50] sm:$0xff]
        %v3220 = vld [vmem:[%s3208 + $0x58] sm:$0xff]
        %v3221 = vld [vmem:[%s3208 + $0x60] sm:$0xff]
        %v3222 = vld [vmem:[%s3208 + $0x68] sm:$0xff]
        %v3223 = vld [vmem:[%s3208 + $0x70] sm:$0xff]
        %v3224 = vld [vmem:[%s3208 + $0x78] sm:$0xff]
        %v3225 = vld [vmem:[%s3208 + $0x80] sm:$0xff]
        %v3226 = vld [vmem:[%s3208 + $0x88] sm:$0xff]
        %v3227 = vld [vmem:[%s3208 + $0x90] sm:$0xff]
        %v3228 = vld [vmem:[%s3208 + $0x98] sm:$0xff]
        %v3229 = vld [vmem:[%s3208 + $0xa0] sm:$0xff]
        %v3230 = vld [vmem:[%s3208 + $0xa8] sm:$0xff]
        %v3231 = vld [vmem:[%s3208 + $0xb0] sm:$0xff]
        %v3232 = vld [vmem:[%s3208 + $0xb8] sm:$0xff]
        %v3233 = vld [vmem:[%s3208 + $0xc0] sm:$0xff]
        %v3234 = vld [vmem:[%s3208 + $0xc8] sm:$0xff]
        %v3235 = vld [vmem:[%s3208 + $0xd0] sm:$0xff]
        %v3236 = vld [vmem:[%s3208 + $0xd8] sm:$0xff]
        %v3237 = vld [vmem:[%s3208 + $0xe0] sm:$0xff]
        %v3238 = vld [vmem:[%s3208 + $0xe8] sm:$0xff]
        %v3239 = vld [vmem:[%s3208 + $0xf0] sm:$0xff]
        %v3240 = vld [vmem:[%s3208 + $0xf8] sm:$0xff]
        %v3241 = vcombine.low %v3165, %v3179
        %v3242 = vcombine.low %v3193, %v3207
        %v3244 = vunpack.c.l.s4 1983009808
        %v3245 = vunpack.c.0.s8 %v3244
        %v3246 = vlaneseq
        %v3247 = vshrl.u32 %v3246, 7
        %v3248 = vsub.s32 %v3245, %v3247
        %v3249 = vrot.slane %v3241, %v3248
        %v3251 = vunpack.c.l.s4 1983009808
        %v3252 = vunpack.c.0.s8 %v3251
        %v3253 = vlaneseq
        %v3254 = vshrl.u32 %v3253, 7
        %v3255 = vsub.s32 %v3252, %v3254
        %v3256 = vrot.slane %v3242, %v3255
        %v3257 = vcombine.low %v3249, %v3256
        %v3258 = vcombine.high %v3249, %v3256
        %v3293 = vunpack.c.l.b16 %v3209
        %v3294 = vunpack.c.h.b16 %v3209
        %v3295 = vunpack.c.l.b16 %v3210
        %v3296 = vunpack.c.h.b16 %v3210
        %v3297 = vunpack.c.l.b16 %v3211
        %v3298 = vunpack.c.h.b16 %v3211
        %v3299 = vunpack.c.l.b16 %v3212
        %v3300 = vunpack.c.h.b16 %v3212
        %v3301 = vunpack.c.l.b16 %v3213
        %v3302 = vunpack.c.h.b16 %v3213
        %v3303 = vunpack.c.l.b16 %v3214
        %v3304 = vunpack.c.h.b16 %v3214
        %v3305 = vunpack.c.l.b16 %v3215
        %v3306 = vunpack.c.h.b16 %v3215
        %v3307 = vunpack.c.l.b16 %v3216
        %v3308 = vunpack.c.h.b16 %v3216
        %v3309 = vunpack.c.l.b16 %v3217
        %v3310 = vunpack.c.h.b16 %v3217
        %v3311 = vunpack.c.l.b16 %v3218
        %v3312 = vunpack.c.h.b16 %v3218
        %v3313 = vunpack.c.l.b16 %v3219
        %v3314 = vunpack.c.h.b16 %v3219
        %v3315 = vunpack.c.l.b16 %v3220
        %v3316 = vunpack.c.h.b16 %v3220
        %v3317 = vunpack.c.l.b16 %v3221
        %v3318 = vunpack.c.h.b16 %v3221
        %v3319 = vunpack.c.l.b16 %v3222
        %v3320 = vunpack.c.h.b16 %v3222
        %v3321 = vunpack.c.l.b16 %v3223
        %v3322 = vunpack.c.h.b16 %v3223
        %v3323 = vunpack.c.l.b16 %v3224
        %v3324 = vunpack.c.h.b16 %v3224
        %v3325 = vunpack.c.l.b16 %v3225
        %v3326 = vunpack.c.h.b16 %v3225
        %v3327 = vunpack.c.l.b16 %v3226
        %v3328 = vunpack.c.h.b16 %v3226
        %v3329 = vunpack.c.l.b16 %v3227
        %v3330 = vunpack.c.h.b16 %v3227
        %v3331 = vunpack.c.l.b16 %v3228
        %v3332 = vunpack.c.h.b16 %v3228
        %v3333 = vunpack.c.l.b16 %v3229
        %v3334 = vunpack.c.h.b16 %v3229
        %v3335 = vunpack.c.l.b16 %v3230
        %v3336 = vunpack.c.h.b16 %v3230
        %v3337 = vunpack.c.l.b16 %v3231
        %v3338 = vunpack.c.h.b16 %v3231
        %v3339 = vunpack.c.l.b16 %v3232
        %v3340 = vunpack.c.h.b16 %v3232
        %v3341 = vunpack.c.l.b16 %v3233
        %v3342 = vunpack.c.h.b16 %v3233
        %v3343 = vunpack.c.l.b16 %v3234
        %v3344 = vunpack.c.h.b16 %v3234
        %v3345 = vunpack.c.l.b16 %v3235
        %v3346 = vunpack.c.h.b16 %v3235
        %v3347 = vunpack.c.l.b16 %v3236
        %v3348 = vunpack.c.h.b16 %v3236
        %v3349 = vunpack.c.l.b16 %v3237
        %v3350 = vunpack.c.h.b16 %v3237
        %v3351 = vunpack.c.l.b16 %v3238
        %v3352 = vunpack.c.h.b16 %v3238
        %v3353 = vunpack.c.l.b16 %v3239
        %v3354 = vunpack.c.h.b16 %v3239
        %v3355 = vunpack.c.l.b16 %v3240
        %v3356 = vunpack.c.h.b16 %v3240
        %v3357 = vpack.c.b16 %v3295, %v3293
        %v3358 = vpack.c.b16 %v3296, %v3294
        %v3359 = vpack.c.b16 %v3299, %v3297
        %v3360 = vpack.c.b16 %v3300, %v3298
        %v3361 = vpack.c.b16 %v3303, %v3301
        %v3362 = vpack.c.b16 %v3304, %v3302
        %v3363 = vpack.c.b16 %v3307, %v3305
        %v3364 = vpack.c.b16 %v3308, %v3306
        %v3365 = vpack.c.b16 %v3311, %v3309
        %v3366 = vpack.c.b16 %v3312, %v3310
        %v3367 = vpack.c.b16 %v3315, %v3313
        %v3368 = vpack.c.b16 %v3316, %v3314
        %v3369 = vpack.c.b16 %v3319, %v3317
        %v3370 = vpack.c.b16 %v3320, %v3318
        %v3371 = vpack.c.b16 %v3323, %v3321
        %v3372 = vpack.c.b16 %v3324, %v3322
        %v3373 = vpack.c.b16 %v3327, %v3325
        %v3374 = vpack.c.b16 %v3328, %v3326
        %v3375 = vpack.c.b16 %v3331, %v3329
        %v3376 = vpack.c.b16 %v3332, %v3330
        %v3377 = vpack.c.b16 %v3335, %v3333
        %v3378 = vpack.c.b16 %v3336, %v3334
        %v3379 = vpack.c.b16 %v3339, %v3337
        %v3380 = vpack.c.b16 %v3340, %v3338
        %v3381 = vpack.c.b16 %v3343, %v3341
        %v3382 = vpack.c.b16 %v3344, %v3342
        %v3383 = vpack.c.b16 %v3347, %v3345
        %v3384 = vpack.c.b16 %v3348, %v3346
        %v3385 = vpack.c.b16 %v3351, %v3349
        %v3386 = vpack.c.b16 %v3352, %v3350
        %v3387 = vpack.c.b16 %v3355, %v3353
        %v3388 = vpack.c.b16 %v3356, %v3354
        %3421 = vmatprep.subr.bf16.mxu0 %v3372
        %3422 = vmatpush1.bf16.msra.mxu0 %v3371
        %3423 = vmatprep.subr.bf16.mxu0 %v3370
        %3424 = vmatpush1.bf16.msra.mxu0 %v3369
        %3425 = vmatprep.subr.bf16.mxu0 %v3368
        %3426 = vmatpush1.bf16.msra.mxu0 %v3367
        %3427 = vmatprep.subr.bf16.mxu0 %v3366
        %3428 = vmatpush1.bf16.msra.mxu0 %v3365
        %3429 = vmatprep.subr.bf16.mxu0 %v3364
        %3430 = vmatpush1.bf16.msra.mxu0 %v3363
        %3431 = vmatprep.subr.bf16.mxu0 %v3362
        %3432 = vmatpush1.bf16.msra.mxu0 %v3361
        %3433 = vmatprep.subr.bf16.mxu0 %v3360
        %3434 = vmatpush1.bf16.msra.mxu0 %v3359
        %3435 = vmatprep.subr.bf16.mxu0 %v3358
        %3436 = vmatpush1.bf16.msra.mxu0 %v3357
        %3437 = vmatprep.subr.bf16.mxu0 %v3388
        %3438 = vmatpush2.bf16.msra.mxu0 %v3387
        %3439 = vmatprep.subr.bf16.mxu0 %v3386
        %3440 = vmatpush2.bf16.msra.mxu0 %v3385
        %3441 = vmatprep.subr.bf16.mxu0 %v3384
        %3442 = vmatpush2.bf16.msra.mxu0 %v3383
        %3443 = vmatprep.subr.bf16.mxu0 %v3382
        %3444 = vmatpush2.bf16.msra.mxu0 %v3381
        %3445 = vmatprep.subr.bf16.mxu0 %v3380
        %3446 = vmatpush2.bf16.msra.mxu0 %v3379
        %3447 = vmatprep.subr.bf16.mxu0 %v3378
        %3448 = vmatpush2.bf16.msra.mxu0 %v3377
        %3449 = vmatprep.subr.bf16.mxu0 %v3376
        %3450 = vmatpush2.bf16.msra.mxu0 %v3375
        %3451 = vmatprep.subr.bf16.mxu0 %v3374
        %3452 = vmatpush2.bf16.msra.mxu0 %v3373
        %3453 = vmatprep.mubr.bf16.mxu0 %v3258
        %3454 = vmatmul.mubr.bf16.gmra.mxu0 %v3257
        %v3455 = vpop.f32.mrf.mxu0
        %v3456 = vadd.f32 0.0, %v3455
        %v3457 = vpop.f32.mrf.mxu0
        %v3458 = vadd.f32 0.0, %v3457
        %v3459 = vpop.f32.mrf.mxu0
        %v3460 = vadd.f32 0.0, %v3459
        %v3461 = vpop.f32.mrf.mxu0
        %v3462 = vadd.f32 0.0, %v3461
        %3463 = vdwg.mxu0
        %v3464 = vadd.f32 %v3108, %v3456
        %v3465 = vadd.f32 %v3109, %v3458
        %v3466 = vadd.f32 %v3110, %v3460
        %v3467 = vadd.f32 %v3111, %v3462
        %v3468 = vld [vmem:[#allocation8] sm:$0x3]
        %v3470 = vlaneseq
        %v3471 = vshrl.u32 %v3470, 7
        %v3472 = vsub.s32 0, %v3471
        %v3473 = vrot.slane %v3468, %v3472
        %v3474 = vlaneseq
        %v3475 = vshrl.u32 %v3474, 7
        %v3476 = vsub.s32 1, %v3475
        %v3477 = vrot.slane %v3468, %v3476
        %v3480 = vadd.f32 %v3464, %v3473
        %v3481 = vadd.f32 %v3465, %v3477
        %v3482 = vadd.f32 %v3466, %v3473
        %v3483 = vadd.f32 %v3467, %v3477
        %v3484 = vmax.f32 %v3480, 0.0
        %v3485 = vmax.f32 %v3481, 0.0
        %v3486 = vmax.f32 %v3482, 0.0
        %v3487 = vmax.f32 %v3483, 0.0
        %v3488 = vpack.c.bf16 %v3486, %v3484
        %v3489 = vpack.c.bf16 %v3487, %v3485
        %v3492 = vcombine.low %v3488, %v3489
        %v3493 = vcombine.high %v3488, %v3489
        %v3495 = vunpack.c.l.s4 1983009808
        %v3496 = vunpack.c.0.s8 %v3495
        %v3497 = vlaneseq
        %v3498 = vshrl.u32 %v3497, 7
        %v3499 = vsub.s32 %v3496, %v3498
        %v3500 = vrot.slane %v3492, %v3499
        %v3502 = vunpack.c.l.s4 1983009808
        %v3503 = vunpack.c.0.s8 %v3502
        %v3504 = vlaneseq
        %v3505 = vshrl.u32 %v3504, 7
        %v3506 = vsub.s32 %v3503, %v3505
        %v3507 = vrot.slane %v3493, %v3506
        %v3508 = vcombine.high %v3500, %v3500
        %v3509 = vcombine.high %v3507, %v3507
        %v3511 = vunpack.c.l.s4 1983009808
        %v3512 = vunpack.c.0.s8 %v3511
        %v3513 = vlaneseq
        %v3514 = vshrl.u32 %v3513, 7
        %v3515 = vsub.s32 %v3512, %v3514
        %v3516 = vrot.slane %v3500, %v3515
        %v3518 = vunpack.c.l.s4 1983009808
        %v3519 = vunpack.c.0.s8 %v3518
        %v3520 = vlaneseq
        %v3521 = vshrl.u32 %v3520, 7
        %v3522 = vsub.s32 %v3519, %v3521
        %v3523 = vrot.slane %v3508, %v3522
        %v3525 = vunpack.c.l.s4 1983009808
        %v3526 = vunpack.c.0.s8 %v3525
        %v3527 = vlaneseq
        %v3528 = vshrl.u32 %v3527, 7
        %v3529 = vsub.s32 %v3526, %v3528
        %v3530 = vrot.slane %v3507, %v3529
        %v3532 = vunpack.c.l.s4 1983009808
        %v3533 = vunpack.c.0.s8 %v3532
        %v3534 = vlaneseq
        %v3535 = vshrl.u32 %v3534, 7
        %v3536 = vsub.s32 %v3533, %v3535
        %v3537 = vrot.slane %v3509, %v3536
        %3542 = vst [vmem:[%s373 + $0x10] sm:$0x33] %v3516
        %3543 = vst [vmem:[%s373 + $0x30] sm:$0x33] %v3523
        %3544 = vst [vmem:[%s373 + $0x50] sm:$0x33] %v3530
        %3545 = vst [vmem:[%s373 + $0x70] sm:$0x33] %v3537
        %v3546 = vld [vmem:[#allocation2 + $0x8] sm:$0x88]
        %v3547 = vld [vmem:[#allocation2 + $0x10] sm:$0x33]
        %v3548 = vld [vmem:[#allocation2 + $0x28] sm:$0x88]
        %v3549 = vld [vmem:[#allocation2 + $0x30] sm:$0x33]
        %v3550 = vld [vmem:[#allocation2 + $0x48] sm:$0x88]
        %v3551 = vld [vmem:[#allocation2 + $0x50] sm:$0x33]
        %v3552 = vld [vmem:[#allocation2 + $0x68] sm:$0x88]
        %v3553 = vld [vmem:[#allocation2 + $0x70] sm:$0x33]
        %v3563 = vunpack.c.l.s4 1983009808
        %v3564 = vunpack.c.0.s8 %v3563
        %v3565 = vlaneseq
        %v3566 = vshrl.u32 %v3565, 7
        %v3567 = vsub.s32 %v3564, %v3566
        %v3568 = vrot.slane %v3546, %v3567
        %v3569 = vcombine.high %v3568, %v3568
        %v3571 = vunpack.c.l.s4 1983009808
        %v3572 = vunpack.c.0.s8 %v3571
        %v3573 = vlaneseq
        %v3574 = vshrl.u32 %v3573, 7
        %v3575 = vsub.s32 %v3572, %v3574
        %v3576 = vrot.slane %v3547, %v3575
        %v3578 = vunpack.c.l.s4 1983009808
        %v3579 = vunpack.c.0.s8 %v3578
        %v3580 = vlaneseq
        %v3581 = vshrl.u32 %v3580, 7
        %v3582 = vsub.s32 %v3579, %v3581
        %v3583 = vrot.slane %v3548, %v3582
        %v3584 = vcombine.high %v3583, %v3583
        %v3586 = vunpack.c.l.s4 1983009808
        %v3587 = vunpack.c.0.s8 %v3586
        %v3588 = vlaneseq
        %v3589 = vshrl.u32 %v3588, 7
        %v3590 = vsub.s32 %v3587, %v3589
        %v3591 = vrot.slane %v3549, %v3590
        %v3593 = vunpack.c.l.s4 1983009808
        %v3594 = vunpack.c.0.s8 %v3593
        %v3595 = vlaneseq
        %v3596 = vshrl.u32 %v3595, 7
        %v3597 = vsub.s32 %v3594, %v3596
        %v3598 = vrot.slane %v3550, %v3597
        %v3599 = vcombine.high %v3598, %v3598
        %v3601 = vunpack.c.l.s4 1983009808
        %v3602 = vunpack.c.0.s8 %v3601
        %v3603 = vlaneseq
        %v3604 = vshrl.u32 %v3603, 7
        %v3605 = vsub.s32 %v3602, %v3604
        %v3606 = vrot.slane %v3551, %v3605
        %v3608 = vunpack.c.l.s4 1983009808
        %v3609 = vunpack.c.0.s8 %v3608
        %v3610 = vlaneseq
        %v3611 = vshrl.u32 %v3610, 7
        %v3612 = vsub.s32 %v3609, %v3611
        %v3613 = vrot.slane %v3552, %v3612
        %v3614 = vcombine.high %v3613, %v3613
        %v3616 = vunpack.c.l.s4 1983009808
        %v3617 = vunpack.c.0.s8 %v3616
        %v3618 = vlaneseq
        %v3619 = vshrl.u32 %v3618, 7
        %v3620 = vsub.s32 %v3617, %v3619
        %v3621 = vrot.slane %v3553, %v3620
        %v3623 = vshrl.u32 %v3569, 16
        %v3625 = vrot.slane %v3623, 7
        %v3626 = vrot.slane %v3625, 2
        %v3628 = vshrl.u32 %v3576, 16
        %v3630 = vrot.slane %v3628, 7
        %v3631 = vshll.u32 %v3576, 16
        %v3633 = vor.u32 %v3630, %v3631
        %v3634 = vsel %vm460, %v3626, %v3633
        %v3636 = vshrl.u32 %v3584, 16
        %v3638 = vrot.slane %v3636, 7
        %v3639 = vrot.slane %v3638, 2
        %v3641 = vshrl.u32 %v3591, 16
        %v3643 = vrot.slane %v3641, 7
        %v3644 = vshll.u32 %v3591, 16
        %v3646 = vor.u32 %v3643, %v3644
        %v3647 = vsel %vm460, %v3639, %v3646
        %v3649 = vshrl.u32 %v3599, 16
        %v3651 = vrot.slane %v3649, 7
        %v3652 = vrot.slane %v3651, 2
        %v3654 = vshrl.u32 %v3606, 16
        %v3656 = vrot.slane %v3654, 7
        %v3657 = vshll.u32 %v3606, 16
        %v3659 = vor.u32 %v3656, %v3657
        %v3660 = vsel %vm460, %v3652, %v3659
        %v3662 = vshrl.u32 %v3614, 16
        %v3664 = vrot.slane %v3662, 7
        %v3665 = vrot.slane %v3664, 2
        %v3667 = vshrl.u32 %v3621, 16
        %v3669 = vrot.slane %v3667, 7
        %v3670 = vshll.u32 %v3621, 16
        %v3672 = vor.u32 %v3669, %v3670
        %v3673 = vsel %vm460, %v3665, %v3672
        %v3674 = vld [vmem:[#allocation9] sm:$0xff]
        %v3675 = vld [vmem:[#allocation9 + $0x8] sm:$0xff]
        %v3676 = vld [vmem:[#allocation9 + $0x10] sm:$0xff]
        %v3677 = vld [vmem:[#allocation9 + $0x18] sm:$0xff]
        %v3678 = vld [vmem:[#allocation9 + $0x20] sm:$0xff]
        %v3679 = vld [vmem:[#allocation9 + $0x28] sm:$0xff]
        %v3680 = vld [vmem:[#allocation9 + $0x30] sm:$0xff]
        %v3681 = vld [vmem:[#allocation9 + $0x38] sm:$0xff]
        %v3682 = vld [vmem:[#allocation9 + $0x40] sm:$0xff]
        %v3683 = vld [vmem:[#allocation9 + $0x48] sm:$0xff]
        %v3684 = vld [vmem:[#allocation9 + $0x50] sm:$0xff]
        %v3685 = vld [vmem:[#allocation9 + $0x58] sm:$0xff]
        %v3686 = vld [vmem:[#allocation9 + $0x60] sm:$0xff]
        %v3687 = vld [vmem:[#allocation9 + $0x68] sm:$0xff]
        %v3688 = vld [vmem:[#allocation9 + $0x70] sm:$0xff]
        %v3689 = vld [vmem:[#allocation9 + $0x78] sm:$0xff]
        %v3690 = vld [vmem:[#allocation9 + $0x80] sm:$0xff]
        %v3691 = vld [vmem:[#allocation9 + $0x88] sm:$0xff]
        %v3692 = vld [vmem:[#allocation9 + $0x90] sm:$0xff]
        %v3693 = vld [vmem:[#allocation9 + $0x98] sm:$0xff]
        %v3694 = vld [vmem:[#allocation9 + $0xa0] sm:$0xff]
        %v3695 = vld [vmem:[#allocation9 + $0xa8] sm:$0xff]
        %v3696 = vld [vmem:[#allocation9 + $0xb0] sm:$0xff]
        %v3697 = vld [vmem:[#allocation9 + $0xb8] sm:$0xff]
        %v3698 = vld [vmem:[#allocation9 + $0xc0] sm:$0xff]
        %v3699 = vld [vmem:[#allocation9 + $0xc8] sm:$0xff]
        %v3700 = vld [vmem:[#allocation9 + $0xd0] sm:$0xff]
        %v3701 = vld [vmem:[#allocation9 + $0xd8] sm:$0xff]
        %v3702 = vld [vmem:[#allocation9 + $0xe0] sm:$0xff]
        %v3703 = vld [vmem:[#allocation9 + $0xe8] sm:$0xff]
        %v3704 = vld [vmem:[#allocation9 + $0xf0] sm:$0xff]
        %v3705 = vld [vmem:[#allocation9 + $0xf8] sm:$0xff]
        %s3706 = scalar_lea.vmem [#allocation9], 256
        %v3707 = vld [vmem:[%s3706] sm:$0xff]
        %v3708 = vld [vmem:[%s3706 + $0x8] sm:$0xff]
        %v3709 = vld [vmem:[%s3706 + $0x10] sm:$0xff]
        %v3710 = vld [vmem:[%s3706 + $0x18] sm:$0xff]
        %v3711 = vld [vmem:[%s3706 + $0x20] sm:$0xff]
        %v3712 = vld [vmem:[%s3706 + $0x28] sm:$0xff]
        %v3713 = vld [vmem:[%s3706 + $0x30] sm:$0xff]
        %v3714 = vld [vmem:[%s3706 + $0x38] sm:$0xff]
        %v3715 = vld [vmem:[%s3706 + $0x40] sm:$0xff]
        %v3716 = vld [vmem:[%s3706 + $0x48] sm:$0xff]
        %v3717 = vld [vmem:[%s3706 + $0x50] sm:$0xff]
        %v3718 = vld [vmem:[%s3706 + $0x58] sm:$0xff]
        %v3719 = vld [vmem:[%s3706 + $0x60] sm:$0xff]
        %v3720 = vld [vmem:[%s3706 + $0x68] sm:$0xff]
        %v3721 = vld [vmem:[%s3706 + $0x70] sm:$0xff]
        %v3722 = vld [vmem:[%s3706 + $0x78] sm:$0xff]
        %v3723 = vld [vmem:[%s3706 + $0x80] sm:$0xff]
        %v3724 = vld [vmem:[%s3706 + $0x88] sm:$0xff]
        %v3725 = vld [vmem:[%s3706 + $0x90] sm:$0xff]
        %v3726 = vld [vmem:[%s3706 + $0x98] sm:$0xff]
        %v3727 = vld [vmem:[%s3706 + $0xa0] sm:$0xff]
        %v3728 = vld [vmem:[%s3706 + $0xa8] sm:$0xff]
        %v3729 = vld [vmem:[%s3706 + $0xb0] sm:$0xff]
        %v3730 = vld [vmem:[%s3706 + $0xb8] sm:$0xff]
        %v3731 = vld [vmem:[%s3706 + $0xc0] sm:$0xff]
        %v3732 = vld [vmem:[%s3706 + $0xc8] sm:$0xff]
        %v3733 = vld [vmem:[%s3706 + $0xd0] sm:$0xff]
        %v3734 = vld [vmem:[%s3706 + $0xd8] sm:$0xff]
        %v3735 = vld [vmem:[%s3706 + $0xe0] sm:$0xff]
        %v3736 = vld [vmem:[%s3706 + $0xe8] sm:$0xff]
        %v3737 = vld [vmem:[%s3706 + $0xf0] sm:$0xff]
        %v3738 = vld [vmem:[%s3706 + $0xf8] sm:$0xff]
        %v3739 = vcombine.low %v3576, %v3591
        %v3740 = vcombine.low %v3606, %v3621
        %v3742 = vunpack.c.l.s4 1983009808
        %v3743 = vunpack.c.0.s8 %v3742
        %v3744 = vlaneseq
        %v3745 = vshrl.u32 %v3744, 7
        %v3746 = vsub.s32 %v3743, %v3745
        %v3747 = vrot.slane %v3739, %v3746
        %v3749 = vunpack.c.l.s4 1983009808
        %v3750 = vunpack.c.0.s8 %v3749
        %v3751 = vlaneseq
        %v3752 = vshrl.u32 %v3751, 7
        %v3753 = vsub.s32 %v3750, %v3752
        %v3754 = vrot.slane %v3740, %v3753
        %v3755 = vcombine.low %v3747, %v3754
        %v3756 = vcombine.high %v3747, %v3754
        %v3791 = vunpack.c.l.b16 %v3707
        %v3792 = vunpack.c.h.b16 %v3707
        %v3793 = vunpack.c.l.b16 %v3708
        %v3794 = vunpack.c.h.b16 %v3708
        %v3795 = vunpack.c.l.b16 %v3709
        %v3796 = vunpack.c.h.b16 %v3709
        %v3797 = vunpack.c.l.b16 %v3710
        %v3798 = vunpack.c.h.b16 %v3710
        %v3799 = vunpack.c.l.b16 %v3711
        %v3800 = vunpack.c.h.b16 %v3711
        %v3801 = vunpack.c.l.b16 %v3712
        %v3802 = vunpack.c.h.b16 %v3712
        %v3803 = vunpack.c.l.b16 %v3713
        %v3804 = vunpack.c.h.b16 %v3713
        %v3805 = vunpack.c.l.b16 %v3714
        %v3806 = vunpack.c.h.b16 %v3714
        %v3807 = vunpack.c.l.b16 %v3715
        %v3808 = vunpack.c.h.b16 %v3715
        %v3809 = vunpack.c.l.b16 %v3716
        %v3810 = vunpack.c.h.b16 %v3716
        %v3811 = vunpack.c.l.b16 %v3717
        %v3812 = vunpack.c.h.b16 %v3717
        %v3813 = vunpack.c.l.b16 %v3718
        %v3814 = vunpack.c.h.b16 %v3718
        %v3815 = vunpack.c.l.b16 %v3719
        %v3816 = vunpack.c.h.b16 %v3719
        %v3817 = vunpack.c.l.b16 %v3720
        %v3818 = vunpack.c.h.b16 %v3720
        %v3819 = vunpack.c.l.b16 %v3721
        %v3820 = vunpack.c.h.b16 %v3721
        %v3821 = vunpack.c.l.b16 %v3722
        %v3822 = vunpack.c.h.b16 %v3722
        %v3823 = vunpack.c.l.b16 %v3723
        %v3824 = vunpack.c.h.b16 %v3723
        %v3825 = vunpack.c.l.b16 %v3724
        %v3826 = vunpack.c.h.b16 %v3724
        %v3827 = vunpack.c.l.b16 %v3725
        %v3828 = vunpack.c.h.b16 %v3725
        %v3829 = vunpack.c.l.b16 %v3726
        %v3830 = vunpack.c.h.b16 %v3726
        %v3831 = vunpack.c.l.b16 %v3727
        %v3832 = vunpack.c.h.b16 %v3727
        %v3833 = vunpack.c.l.b16 %v3728
        %v3834 = vunpack.c.h.b16 %v3728
        %v3835 = vunpack.c.l.b16 %v3729
        %v3836 = vunpack.c.h.b16 %v3729
        %v3837 = vunpack.c.l.b16 %v3730
        %v3838 = vunpack.c.h.b16 %v3730
        %v3839 = vunpack.c.l.b16 %v3731
        %v3840 = vunpack.c.h.b16 %v3731
        %v3841 = vunpack.c.l.b16 %v3732
        %v3842 = vunpack.c.h.b16 %v3732
        %v3843 = vunpack.c.l.b16 %v3733
        %v3844 = vunpack.c.h.b16 %v3733
        %v3845 = vunpack.c.l.b16 %v3734
        %v3846 = vunpack.c.h.b16 %v3734
        %v3847 = vunpack.c.l.b16 %v3735
        %v3848 = vunpack.c.h.b16 %v3735
        %v3849 = vunpack.c.l.b16 %v3736
        %v3850 = vunpack.c.h.b16 %v3736
        %v3851 = vunpack.c.l.b16 %v3737
        %v3852 = vunpack.c.h.b16 %v3737
        %v3853 = vunpack.c.l.b16 %v3738
        %v3854 = vunpack.c.h.b16 %v3738
        %v3855 = vpack.c.b16 %v3793, %v3791
        %v3856 = vpack.c.b16 %v3794, %v3792
        %v3857 = vpack.c.b16 %v3797, %v3795
        %v3858 = vpack.c.b16 %v3798, %v3796
        %v3859 = vpack.c.b16 %v3801, %v3799
        %v3860 = vpack.c.b16 %v3802, %v3800
        %v3861 = vpack.c.b16 %v3805, %v3803
        %v3862 = vpack.c.b16 %v3806, %v3804
        %v3863 = vpack.c.b16 %v3809, %v3807
        %v3864 = vpack.c.b16 %v3810, %v3808
        %v3865 = vpack.c.b16 %v3813, %v3811
        %v3866 = vpack.c.b16 %v3814, %v3812
        %v3867 = vpack.c.b16 %v3817, %v3815
        %v3868 = vpack.c.b16 %v3818, %v3816
        %v3869 = vpack.c.b16 %v3821, %v3819
        %v3870 = vpack.c.b16 %v3822, %v3820
        %v3871 = vpack.c.b16 %v3825, %v3823
        %v3872 = vpack.c.b16 %v3826, %v3824
        %v3873 = vpack.c.b16 %v3829, %v3827
        %v3874 = vpack.c.b16 %v3830, %v3828
        %v3875 = vpack.c.b16 %v3833, %v3831
        %v3876 = vpack.c.b16 %v3834, %v3832
        %v3877 = vpack.c.b16 %v3837, %v3835
        %v3878 = vpack.c.b16 %v3838, %v3836
        %v3879 = vpack.c.b16 %v3841, %v3839
        %v3880 = vpack.c.b16 %v3842, %v3840
        %v3881 = vpack.c.b16 %v3845, %v3843
        %v3882 = vpack.c.b16 %v3846, %v3844
        %v3883 = vpack.c.b16 %v3849, %v3847
        %v3884 = vpack.c.b16 %v3850, %v3848
        %v3885 = vpack.c.b16 %v3853, %v3851
        %v3886 = vpack.c.b16 %v3854, %v3852
        %3919 = vmatprep.subr.bf16.mxu0 %v3870
        %3920 = vmatpush1.bf16.msra.mxu0 %v3869
        %3921 = vmatprep.subr.bf16.mxu0 %v3868
        %3922 = vmatpush1.bf16.msra.mxu0 %v3867
        %3923 = vmatprep.subr.bf16.mxu0 %v3866
        %3924 = vmatpush1.bf16.msra.mxu0 %v3865
        %3925 = vmatprep.subr.bf16.mxu0 %v3864
        %3926 = vmatpush1.bf16.msra.mxu0 %v3863
        %3927 = vmatprep.subr.bf16.mxu0 %v3862
        %3928 = vmatpush1.bf16.msra.mxu0 %v3861
        %3929 = vmatprep.subr.bf16.mxu0 %v3860
        %3930 = vmatpush1.bf16.msra.mxu0 %v3859
        %3931 = vmatprep.subr.bf16.mxu0 %v3858
        %3932 = vmatpush1.bf16.msra.mxu0 %v3857
        %3933 = vmatprep.subr.bf16.mxu0 %v3856
        %3934 = vmatpush1.bf16.msra.mxu0 %v3855
        %3935 = vmatprep.subr.bf16.mxu0 %v3886
        %3936 = vmatpush2.bf16.msra.mxu0 %v3885
        %3937 = vmatprep.subr.bf16.mxu0 %v3884
        %3938 = vmatpush2.bf16.msra.mxu0 %v3883
        %3939 = vmatprep.subr.bf16.mxu0 %v3882
        %3940 = vmatpush2.bf16.msra.mxu0 %v3881
        %3941 = vmatprep.subr.bf16.mxu0 %v3880
        %3942 = vmatpush2.bf16.msra.mxu0 %v3879
        %3943 = vmatprep.subr.bf16.mxu0 %v3878
        %3944 = vmatpush2.bf16.msra.mxu0 %v3877
        %3945 = vmatprep.subr.bf16.mxu0 %v3876
        %3946 = vmatpush2.bf16.msra.mxu0 %v3875
        %3947 = vmatprep.subr.bf16.mxu0 %v3874
        %3948 = vmatpush2.bf16.msra.mxu0 %v3873
        %3949 = vmatprep.subr.bf16.mxu0 %v3872
        %3950 = vmatpush2.bf16.msra.mxu0 %v3871
        %3951 = vmatprep.mubr.bf16.mxu0 %v3756
        %3952 = vmatmul.mubr.bf16.gmra.mxu0 %v3755
        %v3953 = vpop.f32.mrf.mxu0
        %v3954 = vadd.f32 0.0, %v3953
        %v3955 = vpop.f32.mrf.mxu0
        %v3956 = vadd.f32 0.0, %v3955
        %v3957 = vpop.f32.mrf.mxu0
        %v3958 = vadd.f32 0.0, %v3957
        %v3959 = vpop.f32.mrf.mxu0
        %v3960 = vadd.f32 0.0, %v3959
        %3961 = vdwg.mxu0
        %v3962 = vcombine.low %v3634, %v3647
        %v3963 = vcombine.low %v3660, %v3673
        %v3965 = vunpack.c.l.s4 1983009808
        %v3966 = vunpack.c.0.s8 %v3965
        %v3967 = vlaneseq
        %v3968 = vshrl.u32 %v3967, 7
        %v3969 = vsub.s32 %v3966, %v3968
        %v3970 = vrot.slane %v3962, %v3969
        %v3972 = vunpack.c.l.s4 1983009808
        %v3973 = vunpack.c.0.s8 %v3972
        %v3974 = vlaneseq
        %v3975 = vshrl.u32 %v3974, 7
        %v3976 = vsub.s32 %v3973, %v3975
        %v3977 = vrot.slane %v3963, %v3976
        %v3978 = vcombine.low %v3970, %v3977
        %v3979 = vcombine.high %v3970, %v3977
        %v4014 = vunpack.c.l.b16 %v3674
        %v4015 = vunpack.c.h.b16 %v3674
        %v4016 = vunpack.c.l.b16 %v3675
        %v4017 = vunpack.c.h.b16 %v3675
        %v4018 = vunpack.c.l.b16 %v3676
        %v4019 = vunpack.c.h.b16 %v3676
        %v4020 = vunpack.c.l.b16 %v3677
        %v4021 = vunpack.c.h.b16 %v3677
        %v4022 = vunpack.c.l.b16 %v3678
        %v4023 = vunpack.c.h.b16 %v3678
        %v4024 = vunpack.c.l.b16 %v3679
        %v4025 = vunpack.c.h.b16 %v3679
        %v4026 = vunpack.c.l.b16 %v3680
        %v4027 = vunpack.c.h.b16 %v3680
        %v4028 = vunpack.c.l.b16 %v3681
        %v4029 = vunpack.c.h.b16 %v3681
        %v4030 = vunpack.c.l.b16 %v3682
        %v4031 = vunpack.c.h.b16 %v3682
        %v4032 = vunpack.c.l.b16 %v3683
        %v4033 = vunpack.c.h.b16 %v3683
        %v4034 = vunpack.c.l.b16 %v3684
        %v4035 = vunpack.c.h.b16 %v3684
        %v4036 = vunpack.c.l.b16 %v3685
        %v4037 = vunpack.c.h.b16 %v3685
        %v4038 = vunpack.c.l.b16 %v3686
        %v4039 = vunpack.c.h.b16 %v3686
        %v4040 = vunpack.c.l.b16 %v3687
        %v4041 = vunpack.c.h.b16 %v3687
        %v4042 = vunpack.c.l.b16 %v3688
        %v4043 = vunpack.c.h.b16 %v3688
        %v4044 = vunpack.c.l.b16 %v3689
        %v4045 = vunpack.c.h.b16 %v3689
        %v4046 = vunpack.c.l.b16 %v3690
        %v4047 = vunpack.c.h.b16 %v3690
        %v4048 = vunpack.c.l.b16 %v3691
        %v4049 = vunpack.c.h.b16 %v3691
        %v4050 = vunpack.c.l.b16 %v3692
        %v4051 = vunpack.c.h.b16 %v3692
        %v4052 = vunpack.c.l.b16 %v3693
        %v4053 = vunpack.c.h.b16 %v3693
        %v4054 = vunpack.c.l.b16 %v3694
        %v4055 = vunpack.c.h.b16 %v3694
        %v4056 = vunpack.c.l.b16 %v3695
        %v4057 = vunpack.c.h.b16 %v3695
        %v4058 = vunpack.c.l.b16 %v3696
        %v4059 = vunpack.c.h.b16 %v3696
        %v4060 = vunpack.c.l.b16 %v3697
        %v4061 = vunpack.c.h.b16 %v3697
        %v4062 = vunpack.c.l.b16 %v3698
        %v4063 = vunpack.c.h.b16 %v3698
        %v4064 = vunpack.c.l.b16 %v3699
        %v4065 = vunpack.c.h.b16 %v3699
        %v4066 = vunpack.c.l.b16 %v3700
        %v4067 = vunpack.c.h.b16 %v3700
        %v4068 = vunpack.c.l.b16 %v3701
        %v4069 = vunpack.c.h.b16 %v3701
        %v4070 = vunpack.c.l.b16 %v3702
        %v4071 = vunpack.c.h.b16 %v3702
        %v4072 = vunpack.c.l.b16 %v3703
        %v4073 = vunpack.c.h.b16 %v3703
        %v4074 = vunpack.c.l.b16 %v3704
        %v4075 = vunpack.c.h.b16 %v3704
        %v4076 = vunpack.c.l.b16 %v3705
        %v4077 = vunpack.c.h.b16 %v3705
        %v4078 = vpack.c.b16 %v4016, %v4014
        %v4079 = vpack.c.b16 %v4017, %v4015
        %v4080 = vpack.c.b16 %v4020, %v4018
        %v4081 = vpack.c.b16 %v4021, %v4019
        %v4082 = vpack.c.b16 %v4024, %v4022
        %v4083 = vpack.c.b16 %v4025, %v4023
        %v4084 = vpack.c.b16 %v4028, %v4026
        %v4085 = vpack.c.b16 %v4029, %v4027
        %v4086 = vpack.c.b16 %v4032, %v4030
        %v4087 = vpack.c.b16 %v4033, %v4031
        %v4088 = vpack.c.b16 %v4036, %v4034
        %v4089 = vpack.c.b16 %v4037, %v4035
        %v4090 = vpack.c.b16 %v4040, %v4038
        %v4091 = vpack.c.b16 %v4041, %v4039
        %v4092 = vpack.c.b16 %v4044, %v4042
        %v4093 = vpack.c.b16 %v4045, %v4043
        %v4094 = vpack.c.b16 %v4048, %v4046
        %v4095 = vpack.c.b16 %v4049, %v4047
        %v4096 = vpack.c.b16 %v4052, %v4050
        %v4097 = vpack.c.b16 %v4053, %v4051
        %v4098 = vpack.c.b16 %v4056, %v4054
        %v4099 = vpack.c.b16 %v4057, %v4055
        %v4100 = vpack.c.b16 %v4060, %v4058
        %v4101 = vpack.c.b16 %v4061, %v4059
        %v4102 = vpack.c.b16 %v4064, %v4062
        %v4103 = vpack.c.b16 %v4065, %v4063
        %v4104 = vpack.c.b16 %v4068, %v4066
        %v4105 = vpack.c.b16 %v4069, %v4067
        %v4106 = vpack.c.b16 %v4072, %v4070
        %v4107 = vpack.c.b16 %v4073, %v4071
        %v4108 = vpack.c.b16 %v4076, %v4074
        %v4109 = vpack.c.b16 %v4077, %v4075
        %4142 = vmatprep.subr.bf16.mxu0 %v4093
        %4143 = vmatpush1.bf16.msra.mxu0 %v4092
        %4144 = vmatprep.subr.bf16.mxu0 %v4091
        %4145 = vmatpush1.bf16.msra.mxu0 %v4090
        %4146 = vmatprep.subr.bf16.mxu0 %v4089
        %4147 = vmatpush1.bf16.msra.mxu0 %v4088
        %4148 = vmatprep.subr.bf16.mxu0 %v4087
        %4149 = vmatpush1.bf16.msra.mxu0 %v4086
        %4150 = vmatprep.subr.bf16.mxu0 %v4085
        %4151 = vmatpush1.bf16.msra.mxu0 %v4084
        %4152 = vmatprep.subr.bf16.mxu0 %v4083
        %4153 = vmatpush1.bf16.msra.mxu0 %v4082
        %4154 = vmatprep.subr.bf16.mxu0 %v4081
        %4155 = vmatpush1.bf16.msra.mxu0 %v4080
        %4156 = vmatprep.subr.bf16.mxu0 %v4079
        %4157 = vmatpush1.bf16.msra.mxu0 %v4078
        %4158 = vmatprep.subr.bf16.mxu0 %v4109
        %4159 = vmatpush2.bf16.msra.mxu0 %v4108
        %4160 = vmatprep.subr.bf16.mxu0 %v4107
        %4161 = vmatpush2.bf16.msra.mxu0 %v4106
        %4162 = vmatprep.subr.bf16.mxu0 %v4105
        %4163 = vmatpush2.bf16.msra.mxu0 %v4104
        %4164 = vmatprep.subr.bf16.mxu0 %v4103
        %4165 = vmatpush2.bf16.msra.mxu0 %v4102
        %4166 = vmatprep.subr.bf16.mxu0 %v4101
        %4167 = vmatpush2.bf16.msra.mxu0 %v4100
        %4168 = vmatprep.subr.bf16.mxu0 %v4099
        %4169 = vmatpush2.bf16.msra.mxu0 %v4098
        %4170 = vmatprep.subr.bf16.mxu0 %v4097
        %4171 = vmatpush2.bf16.msra.mxu0 %v4096
        %4172 = vmatprep.subr.bf16.mxu0 %v4095
        %4173 = vmatpush2.bf16.msra.mxu0 %v4094
        %4174 = vmatprep.mubr.bf16.mxu0 %v3979
        %4175 = vmatmul.mubr.bf16.gmra.mxu0 %v3978
        %v4176 = vpop.f32.mrf.mxu0
        %v4177 = vadd.f32 %v3954, %v4176
        %v4178 = vpop.f32.mrf.mxu0
        %v4179 = vadd.f32 %v3956, %v4178
        %v4180 = vpop.f32.mrf.mxu0
        %v4181 = vadd.f32 %v3958, %v4180
        %v4182 = vpop.f32.mrf.mxu0
        %v4183 = vadd.f32 %v3960, %v4182
        %4184 = vdwg.mxu0
        %v4185 = vld [vmem:[#allocation2 + $0x10] sm:$0x77]
        %v4186 = vld [vmem:[#allocation2 + $0x30] sm:$0x77]
        %v4187 = vld [vmem:[#allocation2 + $0x50] sm:$0x77]
        %v4188 = vld [vmem:[#allocation2 + $0x70] sm:$0x77]
        %v4194 = vunpack.c.l.s4 1983009808
        %v4195 = vunpack.c.0.s8 %v4194
        %v4196 = vlaneseq
        %v4197 = vshrl.u32 %v4196, 7
        %v4198 = vsub.s32 %v4195, %v4197
        %v4199 = vrot.slane %v4185, %v4198
        %v4200 = vcombine.high %v4199, %v4199
        %v4202 = vunpack.c.l.s4 1983009808
        %v4203 = vunpack.c.0.s8 %v4202
        %v4204 = vlaneseq
        %v4205 = vshrl.u32 %v4204, 7
        %v4206 = vsub.s32 %v4203, %v4205
        %v4207 = vrot.slane %v4186, %v4206
        %v4208 = vcombine.high %v4207, %v4207
        %v4210 = vunpack.c.l.s4 1983009808
        %v4211 = vunpack.c.0.s8 %v4210
        %v4212 = vlaneseq
        %v4213 = vshrl.u32 %v4212, 7
        %v4214 = vsub.s32 %v4211, %v4213
        %v4215 = vrot.slane %v4187, %v4214
        %v4216 = vcombine.high %v4215, %v4215
        %v4218 = vunpack.c.l.s4 1983009808
        %v4219 = vunpack.c.0.s8 %v4218
        %v4220 = vlaneseq
        %v4221 = vshrl.u32 %v4220, 7
        %v4222 = vsub.s32 %v4219, %v4221
        %v4223 = vrot.slane %v4188, %v4222
        %v4224 = vcombine.high %v4223, %v4223
        %v4226 = vshrl.u32 %v4199, 16
        %v4228 = vrot.slane %v4226, 6
        %v4229 = vshll.u32 %v4199, 16
        %v4231 = vrot.slane %v4229, 7
        %v4232 = vor.u32 %v4228, %v4231
        %v4233 = vrot.slane %v4232, 2
        %v4235 = vshll.u32 %v4200, 16
        %v4237 = vrot.slane %v4235, 7
        %v4238 = vsel %vm1070, %v4233, %v4237
        %v4240 = vshrl.u32 %v4207, 16
        %v4242 = vrot.slane %v4240, 6
        %v4243 = vshll.u32 %v4207, 16
        %v4245 = vrot.slane %v4243, 7
        %v4246 = vor.u32 %v4242, %v4245
        %v4247 = vrot.slane %v4246, 2
        %v4249 = vshll.u32 %v4208, 16
        %v4251 = vrot.slane %v4249, 7
        %v4252 = vsel %vm1070, %v4247, %v4251
        %v4254 = vshrl.u32 %v4215, 16
        %v4256 = vrot.slane %v4254, 6
        %v4257 = vshll.u32 %v4215, 16
        %v4259 = vrot.slane %v4257, 7
        %v4260 = vor.u32 %v4256, %v4259
        %v4261 = vrot.slane %v4260, 2
        %v4263 = vshll.u32 %v4216, 16
        %v4265 = vrot.slane %v4263, 7
        %v4266 = vsel %vm1070, %v4261, %v4265
        %v4268 = vshrl.u32 %v4223, 16
        %v4270 = vrot.slane %v4268, 6
        %v4271 = vshll.u32 %v4223, 16
        %v4273 = vrot.slane %v4271, 7
        %v4274 = vor.u32 %v4270, %v4273
        %v4275 = vrot.slane %v4274, 2
        %v4277 = vshll.u32 %v4224, 16
        %v4279 = vrot.slane %v4277, 7
        %v4280 = vsel %vm1070, %v4275, %v4279
        %s4281 = scalar_lea.vmem [#allocation9], 512
        %v4282 = vld [vmem:[%s4281] sm:$0xff]
        %v4283 = vld [vmem:[%s4281 + $0x8] sm:$0xff]
        %v4284 = vld [vmem:[%s4281 + $0x10] sm:$0xff]
        %v4285 = vld [vmem:[%s4281 + $0x18] sm:$0xff]
        %v4286 = vld [vmem:[%s4281 + $0x20] sm:$0xff]
        %v4287 = vld [vmem:[%s4281 + $0x28] sm:$0xff]
        %v4288 = vld [vmem:[%s4281 + $0x30] sm:$0xff]
        %v4289 = vld [vmem:[%s4281 + $0x38] sm:$0xff]
        %v4290 = vld [vmem:[%s4281 + $0x40] sm:$0xff]
        %v4291 = vld [vmem:[%s4281 + $0x48] sm:$0xff]
        %v4292 = vld [vmem:[%s4281 + $0x50] sm:$0xff]
        %v4293 = vld [vmem:[%s4281 + $0x58] sm:$0xff]
        %v4294 = vld [vmem:[%s4281 + $0x60] sm:$0xff]
        %v4295 = vld [vmem:[%s4281 + $0x68] sm:$0xff]
        %v4296 = vld [vmem:[%s4281 + $0x70] sm:$0xff]
        %v4297 = vld [vmem:[%s4281 + $0x78] sm:$0xff]
        %v4298 = vld [vmem:[%s4281 + $0x80] sm:$0xff]
        %v4299 = vld [vmem:[%s4281 + $0x88] sm:$0xff]
        %v4300 = vld [vmem:[%s4281 + $0x90] sm:$0xff]
        %v4301 = vld [vmem:[%s4281 + $0x98] sm:$0xff]
        %v4302 = vld [vmem:[%s4281 + $0xa0] sm:$0xff]
        %v4303 = vld [vmem:[%s4281 + $0xa8] sm:$0xff]
        %v4304 = vld [vmem:[%s4281 + $0xb0] sm:$0xff]
        %v4305 = vld [vmem:[%s4281 + $0xb8] sm:$0xff]
        %v4306 = vld [vmem:[%s4281 + $0xc0] sm:$0xff]
        %v4307 = vld [vmem:[%s4281 + $0xc8] sm:$0xff]
        %v4308 = vld [vmem:[%s4281 + $0xd0] sm:$0xff]
        %v4309 = vld [vmem:[%s4281 + $0xd8] sm:$0xff]
        %v4310 = vld [vmem:[%s4281 + $0xe0] sm:$0xff]
        %v4311 = vld [vmem:[%s4281 + $0xe8] sm:$0xff]
        %v4312 = vld [vmem:[%s4281 + $0xf0] sm:$0xff]
        %v4313 = vld [vmem:[%s4281 + $0xf8] sm:$0xff]
        %v4314 = vcombine.low %v4238, %v4252
        %v4315 = vcombine.low %v4266, %v4280
        %v4317 = vunpack.c.l.s4 1983009808
        %v4318 = vunpack.c.0.s8 %v4317
        %v4319 = vlaneseq
        %v4320 = vshrl.u32 %v4319, 7
        %v4321 = vsub.s32 %v4318, %v4320
        %v4322 = vrot.slane %v4314, %v4321
        %v4324 = vunpack.c.l.s4 1983009808
        %v4325 = vunpack.c.0.s8 %v4324
        %v4326 = vlaneseq
        %v4327 = vshrl.u32 %v4326, 7
        %v4328 = vsub.s32 %v4325, %v4327
        %v4329 = vrot.slane %v4315, %v4328
        %v4330 = vcombine.low %v4322, %v4329
        %v4331 = vcombine.high %v4322, %v4329
        %v4366 = vunpack.c.l.b16 %v4282
        %v4367 = vunpack.c.h.b16 %v4282
        %v4368 = vunpack.c.l.b16 %v4283
        %v4369 = vunpack.c.h.b16 %v4283
        %v4370 = vunpack.c.l.b16 %v4284
        %v4371 = vunpack.c.h.b16 %v4284
        %v4372 = vunpack.c.l.b16 %v4285
        %v4373 = vunpack.c.h.b16 %v4285
        %v4374 = vunpack.c.l.b16 %v4286
        %v4375 = vunpack.c.h.b16 %v4286
        %v4376 = vunpack.c.l.b16 %v4287
        %v4377 = vunpack.c.h.b16 %v4287
        %v4378 = vunpack.c.l.b16 %v4288
        %v4379 = vunpack.c.h.b16 %v4288
        %v4380 = vunpack.c.l.b16 %v4289
        %v4381 = vunpack.c.h.b16 %v4289
        %v4382 = vunpack.c.l.b16 %v4290
        %v4383 = vunpack.c.h.b16 %v4290
        %v4384 = vunpack.c.l.b16 %v4291
        %v4385 = vunpack.c.h.b16 %v4291
        %v4386 = vunpack.c.l.b16 %v4292
        %v4387 = vunpack.c.h.b16 %v4292
        %v4388 = vunpack.c.l.b16 %v4293
        %v4389 = vunpack.c.h.b16 %v4293
        %v4390 = vunpack.c.l.b16 %v4294
        %v4391 = vunpack.c.h.b16 %v4294
        %v4392 = vunpack.c.l.b16 %v4295
        %v4393 = vunpack.c.h.b16 %v4295
        %v4394 = vunpack.c.l.b16 %v4296
        %v4395 = vunpack.c.h.b16 %v4296
        %v4396 = vunpack.c.l.b16 %v4297
        %v4397 = vunpack.c.h.b16 %v4297
        %v4398 = vunpack.c.l.b16 %v4298
        %v4399 = vunpack.c.h.b16 %v4298
        %v4400 = vunpack.c.l.b16 %v4299
        %v4401 = vunpack.c.h.b16 %v4299
        %v4402 = vunpack.c.l.b16 %v4300
        %v4403 = vunpack.c.h.b16 %v4300
        %v4404 = vunpack.c.l.b16 %v4301
        %v4405 = vunpack.c.h.b16 %v4301
        %v4406 = vunpack.c.l.b16 %v4302
        %v4407 = vunpack.c.h.b16 %v4302
        %v4408 = vunpack.c.l.b16 %v4303
        %v4409 = vunpack.c.h.b16 %v4303
        %v4410 = vunpack.c.l.b16 %v4304
        %v4411 = vunpack.c.h.b16 %v4304
        %v4412 = vunpack.c.l.b16 %v4305
        %v4413 = vunpack.c.h.b16 %v4305
        %v4414 = vunpack.c.l.b16 %v4306
        %v4415 = vunpack.c.h.b16 %v4306
        %v4416 = vunpack.c.l.b16 %v4307
        %v4417 = vunpack.c.h.b16 %v4307
        %v4418 = vunpack.c.l.b16 %v4308
        %v4419 = vunpack.c.h.b16 %v4308
        %v4420 = vunpack.c.l.b16 %v4309
        %v4421 = vunpack.c.h.b16 %v4309
        %v4422 = vunpack.c.l.b16 %v4310
        %v4423 = vunpack.c.h.b16 %v4310
        %v4424 = vunpack.c.l.b16 %v4311
        %v4425 = vunpack.c.h.b16 %v4311
        %v4426 = vunpack.c.l.b16 %v4312
        %v4427 = vunpack.c.h.b16 %v4312
        %v4428 = vunpack.c.l.b16 %v4313
        %v4429 = vunpack.c.h.b16 %v4313
        %v4430 = vpack.c.b16 %v4368, %v4366
        %v4431 = vpack.c.b16 %v4369, %v4367
        %v4432 = vpack.c.b16 %v4372, %v4370
        %v4433 = vpack.c.b16 %v4373, %v4371
        %v4434 = vpack.c.b16 %v4376, %v4374
        %v4435 = vpack.c.b16 %v4377, %v4375
        %v4436 = vpack.c.b16 %v4380, %v4378
        %v4437 = vpack.c.b16 %v4381, %v4379
        %v4438 = vpack.c.b16 %v4384, %v4382
        %v4439 = vpack.c.b16 %v4385, %v4383
        %v4440 = vpack.c.b16 %v4388, %v4386
        %v4441 = vpack.c.b16 %v4389, %v4387
        %v4442 = vpack.c.b16 %v4392, %v4390
        %v4443 = vpack.c.b16 %v4393, %v4391
        %v4444 = vpack.c.b16 %v4396, %v4394
        %v4445 = vpack.c.b16 %v4397, %v4395
        %v4446 = vpack.c.b16 %v4400, %v4398
        %v4447 = vpack.c.b16 %v4401, %v4399
        %v4448 = vpack.c.b16 %v4404, %v4402
        %v4449 = vpack.c.b16 %v4405, %v4403
        %v4450 = vpack.c.b16 %v4408, %v4406
        %v4451 = vpack.c.b16 %v4409, %v4407
        %v4452 = vpack.c.b16 %v4412, %v4410
        %v4453 = vpack.c.b16 %v4413, %v4411
        %v4454 = vpack.c.b16 %v4416, %v4414
        %v4455 = vpack.c.b16 %v4417, %v4415
        %v4456 = vpack.c.b16 %v4420, %v4418
        %v4457 = vpack.c.b16 %v4421, %v4419
        %v4458 = vpack.c.b16 %v4424, %v4422
        %v4459 = vpack.c.b16 %v4425, %v4423
        %v4460 = vpack.c.b16 %v4428, %v4426
        %v4461 = vpack.c.b16 %v4429, %v4427
        %4494 = vmatprep.subr.bf16.mxu0 %v4445
        %4495 = vmatpush1.bf16.msra.mxu0 %v4444
        %4496 = vmatprep.subr.bf16.mxu0 %v4443
        %4497 = vmatpush1.bf16.msra.mxu0 %v4442
        %4498 = vmatprep.subr.bf16.mxu0 %v4441
        %4499 = vmatpush1.bf16.msra.mxu0 %v4440
        %4500 = vmatprep.subr.bf16.mxu0 %v4439
        %4501 = vmatpush1.bf16.msra.mxu0 %v4438
        %4502 = vmatprep.subr.bf16.mxu0 %v4437
        %4503 = vmatpush1.bf16.msra.mxu0 %v4436
        %4504 = vmatprep.subr.bf16.mxu0 %v4435
        %4505 = vmatpush1.bf16.msra.mxu0 %v4434
        %4506 = vmatprep.subr.bf16.mxu0 %v4433
        %4507 = vmatpush1.bf16.msra.mxu0 %v4432
        %4508 = vmatprep.subr.bf16.mxu0 %v4431
        %4509 = vmatpush1.bf16.msra.mxu0 %v4430
        %4510 = vmatprep.subr.bf16.mxu0 %v4461
        %4511 = vmatpush2.bf16.msra.mxu0 %v4460
        %4512 = vmatprep.subr.bf16.mxu0 %v4459
        %4513 = vmatpush2.bf16.msra.mxu0 %v4458
        %4514 = vmatprep.subr.bf16.mxu0 %v4457
        %4515 = vmatpush2.bf16.msra.mxu0 %v4456
        %4516 = vmatprep.subr.bf16.mxu0 %v4455
        %4517 = vmatpush2.bf16.msra.mxu0 %v4454
        %4518 = vmatprep.subr.bf16.mxu0 %v4453
        %4519 = vmatpush2.bf16.msra.mxu0 %v4452
        %4520 = vmatprep.subr.bf16.mxu0 %v4451
        %4521 = vmatpush2.bf16.msra.mxu0 %v4450
        %4522 = vmatprep.subr.bf16.mxu0 %v4449
        %4523 = vmatpush2.bf16.msra.mxu0 %v4448
        %4524 = vmatprep.subr.bf16.mxu0 %v4447
        %4525 = vmatpush2.bf16.msra.mxu0 %v4446
        %4526 = vmatprep.mubr.bf16.mxu0 %v4331
        %4527 = vmatmul.mubr.bf16.gmra.mxu0 %v4330
        %v4528 = vpop.f32.mrf.mxu0
        %v4529 = vadd.f32 0.0, %v4528
        %v4530 = vpop.f32.mrf.mxu0
        %v4531 = vadd.f32 0.0, %v4530
        %v4532 = vpop.f32.mrf.mxu0
        %v4533 = vadd.f32 0.0, %v4532
        %v4534 = vpop.f32.mrf.mxu0
        %v4535 = vadd.f32 0.0, %v4534
        %4536 = vdwg.mxu0
        %v4537 = vadd.f32 %v4177, %v4529
        %v4538 = vadd.f32 %v4179, %v4531
        %v4539 = vadd.f32 %v4181, %v4533
        %v4540 = vadd.f32 %v4183, %v4535
        %v4541 = vld [vmem:[%s373 + $0x8] sm:$0x88]
        %v4542 = vld [vmem:[%s373 + $0x10] sm:$0x33]
        %v4543 = vld [vmem:[%s373 + $0x28] sm:$0x88]
        %v4544 = vld [vmem:[%s373 + $0x30] sm:$0x33]
        %v4545 = vld [vmem:[%s373 + $0x48] sm:$0x88]
        %v4546 = vld [vmem:[%s373 + $0x50] sm:$0x33]
        %v4547 = vld [vmem:[%s373 + $0x68] sm:$0x88]
        %v4548 = vld [vmem:[%s373 + $0x70] sm:$0x33]
        %v4558 = vunpack.c.l.s4 1983009808
        %v4559 = vunpack.c.0.s8 %v4558
        %v4560 = vlaneseq
        %v4561 = vshrl.u32 %v4560, 7
        %v4562 = vsub.s32 %v4559, %v4561
        %v4563 = vrot.slane %v4541, %v4562
        %v4564 = vcombine.high %v4563, %v4563
        %v4566 = vunpack.c.l.s4 1983009808
        %v4567 = vunpack.c.0.s8 %v4566
        %v4568 = vlaneseq
        %v4569 = vshrl.u32 %v4568, 7
        %v4570 = vsub.s32 %v4567, %v4569
        %v4571 = vrot.slane %v4542, %v4570
        %v4573 = vunpack.c.l.s4 1983009808
        %v4574 = vunpack.c.0.s8 %v4573
        %v4575 = vlaneseq
        %v4576 = vshrl.u32 %v4575, 7
        %v4577 = vsub.s32 %v4574, %v4576
        %v4578 = vrot.slane %v4543, %v4577
        %v4579 = vcombine.high %v4578, %v4578
        %v4581 = vunpack.c.l.s4 1983009808
        %v4582 = vunpack.c.0.s8 %v4581
        %v4583 = vlaneseq
        %v4584 = vshrl.u32 %v4583, 7
        %v4585 = vsub.s32 %v4582, %v4584
        %v4586 = vrot.slane %v4544, %v4585
        %v4588 = vunpack.c.l.s4 1983009808
        %v4589 = vunpack.c.0.s8 %v4588
        %v4590 = vlaneseq
        %v4591 = vshrl.u32 %v4590, 7
        %v4592 = vsub.s32 %v4589, %v4591
        %v4593 = vrot.slane %v4545, %v4592
        %v4594 = vcombine.high %v4593, %v4593
        %v4596 = vunpack.c.l.s4 1983009808
        %v4597 = vunpack.c.0.s8 %v4596
        %v4598 = vlaneseq
        %v4599 = vshrl.u32 %v4598, 7
        %v4600 = vsub.s32 %v4597, %v4599
        %v4601 = vrot.slane %v4546, %v4600
        %v4603 = vunpack.c.l.s4 1983009808
        %v4604 = vunpack.c.0.s8 %v4603
        %v4605 = vlaneseq
        %v4606 = vshrl.u32 %v4605, 7
        %v4607 = vsub.s32 %v4604, %v4606
        %v4608 = vrot.slane %v4547, %v4607
        %v4609 = vcombine.high %v4608, %v4608
        %v4611 = vunpack.c.l.s4 1983009808
        %v4612 = vunpack.c.0.s8 %v4611
        %v4613 = vlaneseq
        %v4614 = vshrl.u32 %v4613, 7
        %v4615 = vsub.s32 %v4612, %v4614
        %v4616 = vrot.slane %v4548, %v4615
        %v4618 = vshrl.u32 %v4564, 16
        %v4620 = vrot.slane %v4618, 7
        %v4621 = vrot.slane %v4620, 2
        %v4623 = vshrl.u32 %v4571, 16
        %v4625 = vrot.slane %v4623, 7
        %v4626 = vshll.u32 %v4571, 16
        %v4628 = vor.u32 %v4625, %v4626
        %v4629 = vsel %vm460, %v4621, %v4628
        %v4631 = vshrl.u32 %v4579, 16
        %v4633 = vrot.slane %v4631, 7
        %v4634 = vrot.slane %v4633, 2
        %v4636 = vshrl.u32 %v4586, 16
        %v4638 = vrot.slane %v4636, 7
        %v4639 = vshll.u32 %v4586, 16
        %v4641 = vor.u32 %v4638, %v4639
        %v4642 = vsel %vm460, %v4634, %v4641
        %v4644 = vshrl.u32 %v4594, 16
        %v4646 = vrot.slane %v4644, 7
        %v4647 = vrot.slane %v4646, 2
        %v4649 = vshrl.u32 %v4601, 16
        %v4651 = vrot.slane %v4649, 7
        %v4652 = vshll.u32 %v4601, 16
        %v4654 = vor.u32 %v4651, %v4652
        %v4655 = vsel %vm460, %v4647, %v4654
        %v4657 = vshrl.u32 %v4609, 16
        %v4659 = vrot.slane %v4657, 7
        %v4660 = vrot.slane %v4659, 2
        %v4662 = vshrl.u32 %v4616, 16
        %v4664 = vrot.slane %v4662, 7
        %v4665 = vshll.u32 %v4616, 16
        %v4667 = vor.u32 %v4664, %v4665
        %v4668 = vsel %vm460, %v4660, %v4667
        %s4669 = scalar_lea.vmem [#allocation9], 768
        %v4670 = vld [vmem:[%s4669] sm:$0xff]
        %v4671 = vld [vmem:[%s4669 + $0x8] sm:$0xff]
        %v4672 = vld [vmem:[%s4669 + $0x10] sm:$0xff]
        %v4673 = vld [vmem:[%s4669 + $0x18] sm:$0xff]
        %v4674 = vld [vmem:[%s4669 + $0x20] sm:$0xff]
        %v4675 = vld [vmem:[%s4669 + $0x28] sm:$0xff]
        %v4676 = vld [vmem:[%s4669 + $0x30] sm:$0xff]
        %v4677 = vld [vmem:[%s4669 + $0x38] sm:$0xff]
        %v4678 = vld [vmem:[%s4669 + $0x40] sm:$0xff]
        %v4679 = vld [vmem:[%s4669 + $0x48] sm:$0xff]
        %v4680 = vld [vmem:[%s4669 + $0x50] sm:$0xff]
        %v4681 = vld [vmem:[%s4669 + $0x58] sm:$0xff]
        %v4682 = vld [vmem:[%s4669 + $0x60] sm:$0xff]
        %v4683 = vld [vmem:[%s4669 + $0x68] sm:$0xff]
        %v4684 = vld [vmem:[%s4669 + $0x70] sm:$0xff]
        %v4685 = vld [vmem:[%s4669 + $0x78] sm:$0xff]
        %v4686 = vld [vmem:[%s4669 + $0x80] sm:$0xff]
        %v4687 = vld [vmem:[%s4669 + $0x88] sm:$0xff]
        %v4688 = vld [vmem:[%s4669 + $0x90] sm:$0xff]
        %v4689 = vld [vmem:[%s4669 + $0x98] sm:$0xff]
        %v4690 = vld [vmem:[%s4669 + $0xa0] sm:$0xff]
        %v4691 = vld [vmem:[%s4669 + $0xa8] sm:$0xff]
        %v4692 = vld [vmem:[%s4669 + $0xb0] sm:$0xff]
        %v4693 = vld [vmem:[%s4669 + $0xb8] sm:$0xff]
        %v4694 = vld [vmem:[%s4669 + $0xc0] sm:$0xff]
        %v4695 = vld [vmem:[%s4669 + $0xc8] sm:$0xff]
        %v4696 = vld [vmem:[%s4669 + $0xd0] sm:$0xff]
        %v4697 = vld [vmem:[%s4669 + $0xd8] sm:$0xff]
        %v4698 = vld [vmem:[%s4669 + $0xe0] sm:$0xff]
        %v4699 = vld [vmem:[%s4669 + $0xe8] sm:$0xff]
        %v4700 = vld [vmem:[%s4669 + $0xf0] sm:$0xff]
        %v4701 = vld [vmem:[%s4669 + $0xf8] sm:$0xff]
        %v4702 = vcombine.low %v4629, %v4642
        %v4703 = vcombine.low %v4655, %v4668
        %v4705 = vunpack.c.l.s4 1983009808
        %v4706 = vunpack.c.0.s8 %v4705
        %v4707 = vlaneseq
        %v4708 = vshrl.u32 %v4707, 7
        %v4709 = vsub.s32 %v4706, %v4708
        %v4710 = vrot.slane %v4702, %v4709
        %v4712 = vunpack.c.l.s4 1983009808
        %v4713 = vunpack.c.0.s8 %v4712
        %v4714 = vlaneseq
        %v4715 = vshrl.u32 %v4714, 7
        %v4716 = vsub.s32 %v4713, %v4715
        %v4717 = vrot.slane %v4703, %v4716
        %v4718 = vcombine.low %v4710, %v4717
        %v4719 = vcombine.high %v4710, %v4717
        %v4754 = vunpack.c.l.b16 %v4670
        %v4755 = vunpack.c.h.b16 %v4670
        %v4756 = vunpack.c.l.b16 %v4671
        %v4757 = vunpack.c.h.b16 %v4671
        %v4758 = vunpack.c.l.b16 %v4672
        %v4759 = vunpack.c.h.b16 %v4672
        %v4760 = vunpack.c.l.b16 %v4673
        %v4761 = vunpack.c.h.b16 %v4673
        %v4762 = vunpack.c.l.b16 %v4674
        %v4763 = vunpack.c.h.b16 %v4674
        %v4764 = vunpack.c.l.b16 %v4675
        %v4765 = vunpack.c.h.b16 %v4675
        %v4766 = vunpack.c.l.b16 %v4676
        %v4767 = vunpack.c.h.b16 %v4676
        %v4768 = vunpack.c.l.b16 %v4677
        %v4769 = vunpack.c.h.b16 %v4677
        %v4770 = vunpack.c.l.b16 %v4678
        %v4771 = vunpack.c.h.b16 %v4678
        %v4772 = vunpack.c.l.b16 %v4679
        %v4773 = vunpack.c.h.b16 %v4679
        %v4774 = vunpack.c.l.b16 %v4680
        %v4775 = vunpack.c.h.b16 %v4680
        %v4776 = vunpack.c.l.b16 %v4681
        %v4777 = vunpack.c.h.b16 %v4681
        %v4778 = vunpack.c.l.b16 %v4682
        %v4779 = vunpack.c.h.b16 %v4682
        %v4780 = vunpack.c.l.b16 %v4683
        %v4781 = vunpack.c.h.b16 %v4683
        %v4782 = vunpack.c.l.b16 %v4684
        %v4783 = vunpack.c.h.b16 %v4684
        %v4784 = vunpack.c.l.b16 %v4685
        %v4785 = vunpack.c.h.b16 %v4685
        %v4786 = vunpack.c.l.b16 %v4686
        %v4787 = vunpack.c.h.b16 %v4686
        %v4788 = vunpack.c.l.b16 %v4687
        %v4789 = vunpack.c.h.b16 %v4687
        %v4790 = vunpack.c.l.b16 %v4688
        %v4791 = vunpack.c.h.b16 %v4688
        %v4792 = vunpack.c.l.b16 %v4689
        %v4793 = vunpack.c.h.b16 %v4689
        %v4794 = vunpack.c.l.b16 %v4690
        %v4795 = vunpack.c.h.b16 %v4690
        %v4796 = vunpack.c.l.b16 %v4691
        %v4797 = vunpack.c.h.b16 %v4691
        %v4798 = vunpack.c.l.b16 %v4692
        %v4799 = vunpack.c.h.b16 %v4692
        %v4800 = vunpack.c.l.b16 %v4693
        %v4801 = vunpack.c.h.b16 %v4693
        %v4802 = vunpack.c.l.b16 %v4694
        %v4803 = vunpack.c.h.b16 %v4694
        %v4804 = vunpack.c.l.b16 %v4695
        %v4805 = vunpack.c.h.b16 %v4695
        %v4806 = vunpack.c.l.b16 %v4696
        %v4807 = vunpack.c.h.b16 %v4696
        %v4808 = vunpack.c.l.b16 %v4697
        %v4809 = vunpack.c.h.b16 %v4697
        %v4810 = vunpack.c.l.b16 %v4698
        %v4811 = vunpack.c.h.b16 %v4698
        %v4812 = vunpack.c.l.b16 %v4699
        %v4813 = vunpack.c.h.b16 %v4699
        %v4814 = vunpack.c.l.b16 %v4700
        %v4815 = vunpack.c.h.b16 %v4700
        %v4816 = vunpack.c.l.b16 %v4701
        %v4817 = vunpack.c.h.b16 %v4701
        %v4818 = vpack.c.b16 %v4756, %v4754
        %v4819 = vpack.c.b16 %v4757, %v4755
        %v4820 = vpack.c.b16 %v4760, %v4758
        %v4821 = vpack.c.b16 %v4761, %v4759
        %v4822 = vpack.c.b16 %v4764, %v4762
        %v4823 = vpack.c.b16 %v4765, %v4763
        %v4824 = vpack.c.b16 %v4768, %v4766
        %v4825 = vpack.c.b16 %v4769, %v4767
        %v4826 = vpack.c.b16 %v4772, %v4770
        %v4827 = vpack.c.b16 %v4773, %v4771
        %v4828 = vpack.c.b16 %v4776, %v4774
        %v4829 = vpack.c.b16 %v4777, %v4775
        %v4830 = vpack.c.b16 %v4780, %v4778
        %v4831 = vpack.c.b16 %v4781, %v4779
        %v4832 = vpack.c.b16 %v4784, %v4782
        %v4833 = vpack.c.b16 %v4785, %v4783
        %v4834 = vpack.c.b16 %v4788, %v4786
        %v4835 = vpack.c.b16 %v4789, %v4787
        %v4836 = vpack.c.b16 %v4792, %v4790
        %v4837 = vpack.c.b16 %v4793, %v4791
        %v4838 = vpack.c.b16 %v4796, %v4794
        %v4839 = vpack.c.b16 %v4797, %v4795
        %v4840 = vpack.c.b16 %v4800, %v4798
        %v4841 = vpack.c.b16 %v4801, %v4799
        %v4842 = vpack.c.b16 %v4804, %v4802
        %v4843 = vpack.c.b16 %v4805, %v4803
        %v4844 = vpack.c.b16 %v4808, %v4806
        %v4845 = vpack.c.b16 %v4809, %v4807
        %v4846 = vpack.c.b16 %v4812, %v4810
        %v4847 = vpack.c.b16 %v4813, %v4811
        %v4848 = vpack.c.b16 %v4816, %v4814
        %v4849 = vpack.c.b16 %v4817, %v4815
        %4882 = vmatprep.subr.bf16.mxu0 %v4833
        %4883 = vmatpush1.bf16.msra.mxu0 %v4832
        %4884 = vmatprep.subr.bf16.mxu0 %v4831
        %4885 = vmatpush1.bf16.msra.mxu0 %v4830
        %4886 = vmatprep.subr.bf16.mxu0 %v4829
        %4887 = vmatpush1.bf16.msra.mxu0 %v4828
        %4888 = vmatprep.subr.bf16.mxu0 %v4827
        %4889 = vmatpush1.bf16.msra.mxu0 %v4826
        %4890 = vmatprep.subr.bf16.mxu0 %v4825
        %4891 = vmatpush1.bf16.msra.mxu0 %v4824
        %4892 = vmatprep.subr.bf16.mxu0 %v4823
        %4893 = vmatpush1.bf16.msra.mxu0 %v4822
        %4894 = vmatprep.subr.bf16.mxu0 %v4821
        %4895 = vmatpush1.bf16.msra.mxu0 %v4820
        %4896 = vmatprep.subr.bf16.mxu0 %v4819
        %4897 = vmatpush1.bf16.msra.mxu0 %v4818
        %4898 = vmatprep.subr.bf16.mxu0 %v4849
        %4899 = vmatpush2.bf16.msra.mxu0 %v4848
        %4900 = vmatprep.subr.bf16.mxu0 %v4847
        %4901 = vmatpush2.bf16.msra.mxu0 %v4846
        %4902 = vmatprep.subr.bf16.mxu0 %v4845
        %4903 = vmatpush2.bf16.msra.mxu0 %v4844
        %4904 = vmatprep.subr.bf16.mxu0 %v4843
        %4905 = vmatpush2.bf16.msra.mxu0 %v4842
        %4906 = vmatprep.subr.bf16.mxu0 %v4841
        %4907 = vmatpush2.bf16.msra.mxu0 %v4840
        %4908 = vmatprep.subr.bf16.mxu0 %v4839
        %4909 = vmatpush2.bf16.msra.mxu0 %v4838
        %4910 = vmatprep.subr.bf16.mxu0 %v4837
        %4911 = vmatpush2.bf16.msra.mxu0 %v4836
        %4912 = vmatprep.subr.bf16.mxu0 %v4835
        %4913 = vmatpush2.bf16.msra.mxu0 %v4834
        %4914 = vmatprep.mubr.bf16.mxu0 %v4719
        %4915 = vmatmul.mubr.bf16.gmra.mxu0 %v4718
        %v4916 = vpop.f32.mrf.mxu0
        %v4917 = vadd.f32 0.0, %v4916
        %v4918 = vpop.f32.mrf.mxu0
        %v4919 = vadd.f32 0.0, %v4918
        %v4920 = vpop.f32.mrf.mxu0
        %v4921 = vadd.f32 0.0, %v4920
        %v4922 = vpop.f32.mrf.mxu0
        %v4923 = vadd.f32 0.0, %v4922
        %4924 = vdwg.mxu0
        %v4925 = vadd.f32 %v4537, %v4917
        %v4926 = vadd.f32 %v4538, %v4919
        %v4927 = vadd.f32 %v4539, %v4921
        %v4928 = vadd.f32 %v4540, %v4923
        %v4929 = vld [vmem:[%s373 + $0x10] sm:$0x33]
        %v4930 = vld [vmem:[%s373 + $0x30] sm:$0x33]
        %v4931 = vld [vmem:[%s373 + $0x50] sm:$0x33]
        %v4932 = vld [vmem:[%s373 + $0x70] sm:$0x33]
        %v4938 = vunpack.c.l.s4 1983009808
        %v4939 = vunpack.c.0.s8 %v4938
        %v4940 = vlaneseq
        %v4941 = vshrl.u32 %v4940, 7
        %v4942 = vsub.s32 %v4939, %v4941
        %v4943 = vrot.slane %v4929, %v4942
        %v4945 = vunpack.c.l.s4 1983009808
        %v4946 = vunpack.c.0.s8 %v4945
        %v4947 = vlaneseq
        %v4948 = vshrl.u32 %v4947, 7
        %v4949 = vsub.s32 %v4946, %v4948
        %v4950 = vrot.slane %v4930, %v4949
        %v4952 = vunpack.c.l.s4 1983009808
        %v4953 = vunpack.c.0.s8 %v4952
        %v4954 = vlaneseq
        %v4955 = vshrl.u32 %v4954, 7
        %v4956 = vsub.s32 %v4953, %v4955
        %v4957 = vrot.slane %v4931, %v4956
        %v4959 = vunpack.c.l.s4 1983009808
        %v4960 = vunpack.c.0.s8 %v4959
        %v4961 = vlaneseq
        %v4962 = vshrl.u32 %v4961, 7
        %v4963 = vsub.s32 %v4960, %v4962
        %v4964 = vrot.slane %v4932, %v4963
        %s4965 = scalar_lea.vmem [#allocation9], 1024
        %v4966 = vld [vmem:[%s4965] sm:$0xff]
        %v4967 = vld [vmem:[%s4965 + $0x8] sm:$0xff]
        %v4968 = vld [vmem:[%s4965 + $0x10] sm:$0xff]
        %v4969 = vld [vmem:[%s4965 + $0x18] sm:$0xff]
        %v4970 = vld [vmem:[%s4965 + $0x20] sm:$0xff]
        %v4971 = vld [vmem:[%s4965 + $0x28] sm:$0xff]
        %v4972 = vld [vmem:[%s4965 + $0x30] sm:$0xff]
        %v4973 = vld [vmem:[%s4965 + $0x38] sm:$0xff]
        %v4974 = vld [vmem:[%s4965 + $0x40] sm:$0xff]
        %v4975 = vld [vmem:[%s4965 + $0x48] sm:$0xff]
        %v4976 = vld [vmem:[%s4965 + $0x50] sm:$0xff]
        %v4977 = vld [vmem:[%s4965 + $0x58] sm:$0xff]
        %v4978 = vld [vmem:[%s4965 + $0x60] sm:$0xff]
        %v4979 = vld [vmem:[%s4965 + $0x68] sm:$0xff]
        %v4980 = vld [vmem:[%s4965 + $0x70] sm:$0xff]
        %v4981 = vld [vmem:[%s4965 + $0x78] sm:$0xff]
        %v4982 = vld [vmem:[%s4965 + $0x80] sm:$0xff]
        %v4983 = vld [vmem:[%s4965 + $0x88] sm:$0xff]
        %v4984 = vld [vmem:[%s4965 + $0x90] sm:$0xff]
        %v4985 = vld [vmem:[%s4965 + $0x98] sm:$0xff]
        %v4986 = vld [vmem:[%s4965 + $0xa0] sm:$0xff]
        %v4987 = vld [vmem:[%s4965 + $0xa8] sm:$0xff]
        %v4988 = vld [vmem:[%s4965 + $0xb0] sm:$0xff]
        %v4989 = vld [vmem:[%s4965 + $0xb8] sm:$0xff]
        %v4990 = vld [vmem:[%s4965 + $0xc0] sm:$0xff]
        %v4991 = vld [vmem:[%s4965 + $0xc8] sm:$0xff]
        %v4992 = vld [vmem:[%s4965 + $0xd0] sm:$0xff]
        %v4993 = vld [vmem:[%s4965 + $0xd8] sm:$0xff]
        %v4994 = vld [vmem:[%s4965 + $0xe0] sm:$0xff]
        %v4995 = vld [vmem:[%s4965 + $0xe8] sm:$0xff]
        %v4996 = vld [vmem:[%s4965 + $0xf0] sm:$0xff]
        %v4997 = vld [vmem:[%s4965 + $0xf8] sm:$0xff]
        %v4998 = vcombine.low %v4943, %v4950
        %v4999 = vcombine.low %v4957, %v4964
        %v5001 = vunpack.c.l.s4 1983009808
        %v5002 = vunpack.c.0.s8 %v5001
        %v5003 = vlaneseq
        %v5004 = vshrl.u32 %v5003, 7
        %v5005 = vsub.s32 %v5002, %v5004
        %v5006 = vrot.slane %v4998, %v5005
        %v5008 = vunpack.c.l.s4 1983009808
        %v5009 = vunpack.c.0.s8 %v5008
        %v5010 = vlaneseq
        %v5011 = vshrl.u32 %v5010, 7
        %v5012 = vsub.s32 %v5009, %v5011
        %v5013 = vrot.slane %v4999, %v5012
        %v5014 = vcombine.low %v5006, %v5013
        %v5015 = vcombine.high %v5006, %v5013
        %v5050 = vunpack.c.l.b16 %v4966
        %v5051 = vunpack.c.h.b16 %v4966
        %v5052 = vunpack.c.l.b16 %v4967
        %v5053 = vunpack.c.h.b16 %v4967
        %v5054 = vunpack.c.l.b16 %v4968
        %v5055 = vunpack.c.h.b16 %v4968
        %v5056 = vunpack.c.l.b16 %v4969
        %v5057 = vunpack.c.h.b16 %v4969
        %v5058 = vunpack.c.l.b16 %v4970
        %v5059 = vunpack.c.h.b16 %v4970
        %v5060 = vunpack.c.l.b16 %v4971
        %v5061 = vunpack.c.h.b16 %v4971
        %v5062 = vunpack.c.l.b16 %v4972
        %v5063 = vunpack.c.h.b16 %v4972
        %v5064 = vunpack.c.l.b16 %v4973
        %v5065 = vunpack.c.h.b16 %v4973
        %v5066 = vunpack.c.l.b16 %v4974
        %v5067 = vunpack.c.h.b16 %v4974
        %v5068 = vunpack.c.l.b16 %v4975
        %v5069 = vunpack.c.h.b16 %v4975
        %v5070 = vunpack.c.l.b16 %v4976
        %v5071 = vunpack.c.h.b16 %v4976
        %v5072 = vunpack.c.l.b16 %v4977
        %v5073 = vunpack.c.h.b16 %v4977
        %v5074 = vunpack.c.l.b16 %v4978
        %v5075 = vunpack.c.h.b16 %v4978
        %v5076 = vunpack.c.l.b16 %v4979
        %v5077 = vunpack.c.h.b16 %v4979
        %v5078 = vunpack.c.l.b16 %v4980
        %v5079 = vunpack.c.h.b16 %v4980
        %v5080 = vunpack.c.l.b16 %v4981
        %v5081 = vunpack.c.h.b16 %v4981
        %v5082 = vunpack.c.l.b16 %v4982
        %v5083 = vunpack.c.h.b16 %v4982
        %v5084 = vunpack.c.l.b16 %v4983
        %v5085 = vunpack.c.h.b16 %v4983
        %v5086 = vunpack.c.l.b16 %v4984
        %v5087 = vunpack.c.h.b16 %v4984
        %v5088 = vunpack.c.l.b16 %v4985
        %v5089 = vunpack.c.h.b16 %v4985
        %v5090 = vunpack.c.l.b16 %v4986
        %v5091 = vunpack.c.h.b16 %v4986
        %v5092 = vunpack.c.l.b16 %v4987
        %v5093 = vunpack.c.h.b16 %v4987
        %v5094 = vunpack.c.l.b16 %v4988
        %v5095 = vunpack.c.h.b16 %v4988
        %v5096 = vunpack.c.l.b16 %v4989
        %v5097 = vunpack.c.h.b16 %v4989
        %v5098 = vunpack.c.l.b16 %v4990
        %v5099 = vunpack.c.h.b16 %v4990
        %v5100 = vunpack.c.l.b16 %v4991
        %v5101 = vunpack.c.h.b16 %v4991
        %v5102 = vunpack.c.l.b16 %v4992
        %v5103 = vunpack.c.h.b16 %v4992
        %v5104 = vunpack.c.l.b16 %v4993
        %v5105 = vunpack.c.h.b16 %v4993
        %v5106 = vunpack.c.l.b16 %v4994
        %v5107 = vunpack.c.h.b16 %v4994
        %v5108 = vunpack.c.l.b16 %v4995
        %v5109 = vunpack.c.h.b16 %v4995
        %v5110 = vunpack.c.l.b16 %v4996
        %v5111 = vunpack.c.h.b16 %v4996
        %v5112 = vunpack.c.l.b16 %v4997
        %v5113 = vunpack.c.h.b16 %v4997
        %v5114 = vpack.c.b16 %v5052, %v5050
        %v5115 = vpack.c.b16 %v5053, %v5051
        %v5116 = vpack.c.b16 %v5056, %v5054
        %v5117 = vpack.c.b16 %v5057, %v5055
        %v5118 = vpack.c.b16 %v5060, %v5058
        %v5119 = vpack.c.b16 %v5061, %v5059
        %v5120 = vpack.c.b16 %v5064, %v5062
        %v5121 = vpack.c.b16 %v5065, %v5063
        %v5122 = vpack.c.b16 %v5068, %v5066
        %v5123 = vpack.c.b16 %v5069, %v5067
        %v5124 = vpack.c.b16 %v5072, %v5070
        %v5125 = vpack.c.b16 %v5073, %v5071
        %v5126 = vpack.c.b16 %v5076, %v5074
        %v5127 = vpack.c.b16 %v5077, %v5075
        %v5128 = vpack.c.b16 %v5080, %v5078
        %v5129 = vpack.c.b16 %v5081, %v5079
        %v5130 = vpack.c.b16 %v5084, %v5082
        %v5131 = vpack.c.b16 %v5085, %v5083
        %v5132 = vpack.c.b16 %v5088, %v5086
        %v5133 = vpack.c.b16 %v5089, %v5087
        %v5134 = vpack.c.b16 %v5092, %v5090
        %v5135 = vpack.c.b16 %v5093, %v5091
        %v5136 = vpack.c.b16 %v5096, %v5094
        %v5137 = vpack.c.b16 %v5097, %v5095
        %v5138 = vpack.c.b16 %v5100, %v5098
        %v5139 = vpack.c.b16 %v5101, %v5099
        %v5140 = vpack.c.b16 %v5104, %v5102
        %v5141 = vpack.c.b16 %v5105, %v5103
        %v5142 = vpack.c.b16 %v5108, %v5106
        %v5143 = vpack.c.b16 %v5109, %v5107
        %v5144 = vpack.c.b16 %v5112, %v5110
        %v5145 = vpack.c.b16 %v5113, %v5111
        %5178 = vmatprep.subr.bf16.mxu0 %v5129
        %5179 = vmatpush1.bf16.msra.mxu0 %v5128
        %5180 = vmatprep.subr.bf16.mxu0 %v5127
        %5181 = vmatpush1.bf16.msra.mxu0 %v5126
        %5182 = vmatprep.subr.bf16.mxu0 %v5125
        %5183 = vmatpush1.bf16.msra.mxu0 %v5124
        %5184 = vmatprep.subr.bf16.mxu0 %v5123
        %5185 = vmatpush1.bf16.msra.mxu0 %v5122
        %5186 = vmatprep.subr.bf16.mxu0 %v5121
        %5187 = vmatpush1.bf16.msra.mxu0 %v5120
        %5188 = vmatprep.subr.bf16.mxu0 %v5119
        %5189 = vmatpush1.bf16.msra.mxu0 %v5118
        %5190 = vmatprep.subr.bf16.mxu0 %v5117
        %5191 = vmatpush1.bf16.msra.mxu0 %v5116
        %5192 = vmatprep.subr.bf16.mxu0 %v5115
        %5193 = vmatpush1.bf16.msra.mxu0 %v5114
        %5194 = vmatprep.subr.bf16.mxu0 %v5145
        %5195 = vmatpush2.bf16.msra.mxu0 %v5144
        %5196 = vmatprep.subr.bf16.mxu0 %v5143
        %5197 = vmatpush2.bf16.msra.mxu0 %v5142
        %5198 = vmatprep.subr.bf16.mxu0 %v5141
        %5199 = vmatpush2.bf16.msra.mxu0 %v5140
        %5200 = vmatprep.subr.bf16.mxu0 %v5139
        %5201 = vmatpush2.bf16.msra.mxu0 %v5138
        %5202 = vmatprep.subr.bf16.mxu0 %v5137
        %5203 = vmatpush2.bf16.msra.mxu0 %v5136
        %5204 = vmatprep.subr.bf16.mxu0 %v5135
        %5205 = vmatpush2.bf16.msra.mxu0 %v5134
        %5206 = vmatprep.subr.bf16.mxu0 %v5133
        %5207 = vmatpush2.bf16.msra.mxu0 %v5132
        %5208 = vmatprep.subr.bf16.mxu0 %v5131
        %5209 = vmatpush2.bf16.msra.mxu0 %v5130
        %5210 = vmatprep.mubr.bf16.mxu0 %v5015
        %5211 = vmatmul.mubr.bf16.gmra.mxu0 %v5014
        %v5212 = vpop.f32.mrf.mxu0
        %v5213 = vadd.f32 0.0, %v5212
        %v5214 = vpop.f32.mrf.mxu0
        %v5215 = vadd.f32 0.0, %v5214
        %v5216 = vpop.f32.mrf.mxu0
        %v5217 = vadd.f32 0.0, %v5216
        %v5218 = vpop.f32.mrf.mxu0
        %v5219 = vadd.f32 0.0, %v5218
        %5220 = vdwg.mxu0
        %v5221 = vadd.f32 %v4925, %v5213
        %v5222 = vadd.f32 %v4926, %v5215
        %v5223 = vadd.f32 %v4927, %v5217
        %v5224 = vadd.f32 %v4928, %v5219
        %v5225 = vld [vmem:[%s373 + $0x10] sm:$0x77]
        %v5226 = vld [vmem:[%s373 + $0x30] sm:$0x77]
        %v5227 = vld [vmem:[%s373 + $0x50] sm:$0x77]
        %v5228 = vld [vmem:[%s373 + $0x70] sm:$0x77]
        %v5234 = vunpack.c.l.s4 1983009808
        %v5235 = vunpack.c.0.s8 %v5234
        %v5236 = vlaneseq
        %v5237 = vshrl.u32 %v5236, 7
        %v5238 = vsub.s32 %v5235, %v5237
        %v5239 = vrot.slane %v5225, %v5238
        %v5240 = vcombine.high %v5239, %v5239
        %v5242 = vunpack.c.l.s4 1983009808
        %v5243 = vunpack.c.0.s8 %v5242
        %v5244 = vlaneseq
        %v5245 = vshrl.u32 %v5244, 7
        %v5246 = vsub.s32 %v5243, %v5245
        %v5247 = vrot.slane %v5226, %v5246
        %v5248 = vcombine.high %v5247, %v5247
        %v5250 = vunpack.c.l.s4 1983009808
        %v5251 = vunpack.c.0.s8 %v5250
        %v5252 = vlaneseq
        %v5253 = vshrl.u32 %v5252, 7
        %v5254 = vsub.s32 %v5251, %v5253
        %v5255 = vrot.slane %v5227, %v5254
        %v5256 = vcombine.high %v5255, %v5255
        %v5258 = vunpack.c.l.s4 1983009808
        %v5259 = vunpack.c.0.s8 %v5258
        %v5260 = vlaneseq
        %v5261 = vshrl.u32 %v5260, 7
        %v5262 = vsub.s32 %v5259, %v5261
        %v5263 = vrot.slane %v5228, %v5262
        %v5264 = vcombine.high %v5263, %v5263
        %v5266 = vshrl.u32 %v5239, 16
        %v5268 = vrot.slane %v5266, 6
        %v5269 = vshll.u32 %v5239, 16
        %v5271 = vrot.slane %v5269, 7
        %v5272 = vor.u32 %v5268, %v5271
        %v5273 = vrot.slane %v5272, 2
        %v5275 = vshll.u32 %v5240, 16
        %v5277 = vrot.slane %v5275, 7
        %v5278 = vsel %vm1070, %v5273, %v5277
        %v5280 = vshrl.u32 %v5247, 16
        %v5282 = vrot.slane %v5280, 6
        %v5283 = vshll.u32 %v5247, 16
        %v5285 = vrot.slane %v5283, 7
        %v5286 = vor.u32 %v5282, %v5285
        %v5287 = vrot.slane %v5286, 2
        %v5289 = vshll.u32 %v5248, 16
        %v5291 = vrot.slane %v5289, 7
        %v5292 = vsel %vm1070, %v5287, %v5291
        %v5294 = vshrl.u32 %v5255, 16
        %v5296 = vrot.slane %v5294, 6
        %v5297 = vshll.u32 %v5255, 16
        %v5299 = vrot.slane %v5297, 7
        %v5300 = vor.u32 %v5296, %v5299
        %v5301 = vrot.slane %v5300, 2
        %v5303 = vshll.u32 %v5256, 16
        %v5305 = vrot.slane %v5303, 7
        %v5306 = vsel %vm1070, %v5301, %v5305
        %v5308 = vshrl.u32 %v5263, 16
        %v5310 = vrot.slane %v5308, 6
        %v5311 = vshll.u32 %v5263, 16
        %v5313 = vrot.slane %v5311, 7
        %v5314 = vor.u32 %v5310, %v5313
        %v5315 = vrot.slane %v5314, 2
        %v5317 = vshll.u32 %v5264, 16
        %v5319 = vrot.slane %v5317, 7
        %v5320 = vsel %vm1070, %v5315, %v5319
        %s5321 = scalar_lea.vmem [#allocation9], 1280
        %v5322 = vld [vmem:[%s5321] sm:$0xff]
        %v5323 = vld [vmem:[%s5321 + $0x8] sm:$0xff]
        %v5324 = vld [vmem:[%s5321 + $0x10] sm:$0xff]
        %v5325 = vld [vmem:[%s5321 + $0x18] sm:$0xff]
        %v5326 = vld [vmem:[%s5321 + $0x20] sm:$0xff]
        %v5327 = vld [vmem:[%s5321 + $0x28] sm:$0xff]
        %v5328 = vld [vmem:[%s5321 + $0x30] sm:$0xff]
        %v5329 = vld [vmem:[%s5321 + $0x38] sm:$0xff]
        %v5330 = vld [vmem:[%s5321 + $0x40] sm:$0xff]
        %v5331 = vld [vmem:[%s5321 + $0x48] sm:$0xff]
        %v5332 = vld [vmem:[%s5321 + $0x50] sm:$0xff]
        %v5333 = vld [vmem:[%s5321 + $0x58] sm:$0xff]
        %v5334 = vld [vmem:[%s5321 + $0x60] sm:$0xff]
        %v5335 = vld [vmem:[%s5321 + $0x68] sm:$0xff]
        %v5336 = vld [vmem:[%s5321 + $0x70] sm:$0xff]
        %v5337 = vld [vmem:[%s5321 + $0x78] sm:$0xff]
        %v5338 = vld [vmem:[%s5321 + $0x80] sm:$0xff]
        %v5339 = vld [vmem:[%s5321 + $0x88] sm:$0xff]
        %v5340 = vld [vmem:[%s5321 + $0x90] sm:$0xff]
        %v5341 = vld [vmem:[%s5321 + $0x98] sm:$0xff]
        %v5342 = vld [vmem:[%s5321 + $0xa0] sm:$0xff]
        %v5343 = vld [vmem:[%s5321 + $0xa8] sm:$0xff]
        %v5344 = vld [vmem:[%s5321 + $0xb0] sm:$0xff]
        %v5345 = vld [vmem:[%s5321 + $0xb8] sm:$0xff]
        %v5346 = vld [vmem:[%s5321 + $0xc0] sm:$0xff]
        %v5347 = vld [vmem:[%s5321 + $0xc8] sm:$0xff]
        %v5348 = vld [vmem:[%s5321 + $0xd0] sm:$0xff]
        %v5349 = vld [vmem:[%s5321 + $0xd8] sm:$0xff]
        %v5350 = vld [vmem:[%s5321 + $0xe0] sm:$0xff]
        %v5351 = vld [vmem:[%s5321 + $0xe8] sm:$0xff]
        %v5352 = vld [vmem:[%s5321 + $0xf0] sm:$0xff]
        %v5353 = vld [vmem:[%s5321 + $0xf8] sm:$0xff]
        %v5354 = vcombine.low %v5278, %v5292
        %v5355 = vcombine.low %v5306, %v5320
        %v5357 = vunpack.c.l.s4 1983009808
        %v5358 = vunpack.c.0.s8 %v5357
        %v5359 = vlaneseq
        %v5360 = vshrl.u32 %v5359, 7
        %v5361 = vsub.s32 %v5358, %v5360
        %v5362 = vrot.slane %v5354, %v5361
        %v5364 = vunpack.c.l.s4 1983009808
        %v5365 = vunpack.c.0.s8 %v5364
        %v5366 = vlaneseq
        %v5367 = vshrl.u32 %v5366, 7
        %v5368 = vsub.s32 %v5365, %v5367
        %v5369 = vrot.slane %v5355, %v5368
        %v5370 = vcombine.low %v5362, %v5369
        %v5371 = vcombine.high %v5362, %v5369
        %v5406 = vunpack.c.l.b16 %v5322
        %v5407 = vunpack.c.h.b16 %v5322
        %v5408 = vunpack.c.l.b16 %v5323
        %v5409 = vunpack.c.h.b16 %v5323
        %v5410 = vunpack.c.l.b16 %v5324
        %v5411 = vunpack.c.h.b16 %v5324
        %v5412 = vunpack.c.l.b16 %v5325
        %v5413 = vunpack.c.h.b16 %v5325
        %v5414 = vunpack.c.l.b16 %v5326
        %v5415 = vunpack.c.h.b16 %v5326
        %v5416 = vunpack.c.l.b16 %v5327
        %v5417 = vunpack.c.h.b16 %v5327
        %v5418 = vunpack.c.l.b16 %v5328
        %v5419 = vunpack.c.h.b16 %v5328
        %v5420 = vunpack.c.l.b16 %v5329
        %v5421 = vunpack.c.h.b16 %v5329
        %v5422 = vunpack.c.l.b16 %v5330
        %v5423 = vunpack.c.h.b16 %v5330
        %v5424 = vunpack.c.l.b16 %v5331
        %v5425 = vunpack.c.h.b16 %v5331
        %v5426 = vunpack.c.l.b16 %v5332
        %v5427 = vunpack.c.h.b16 %v5332
        %v5428 = vunpack.c.l.b16 %v5333
        %v5429 = vunpack.c.h.b16 %v5333
        %v5430 = vunpack.c.l.b16 %v5334
        %v5431 = vunpack.c.h.b16 %v5334
        %v5432 = vunpack.c.l.b16 %v5335
        %v5433 = vunpack.c.h.b16 %v5335
        %v5434 = vunpack.c.l.b16 %v5336
        %v5435 = vunpack.c.h.b16 %v5336
        %v5436 = vunpack.c.l.b16 %v5337
        %v5437 = vunpack.c.h.b16 %v5337
        %v5438 = vunpack.c.l.b16 %v5338
        %v5439 = vunpack.c.h.b16 %v5338
        %v5440 = vunpack.c.l.b16 %v5339
        %v5441 = vunpack.c.h.b16 %v5339
        %v5442 = vunpack.c.l.b16 %v5340
        %v5443 = vunpack.c.h.b16 %v5340
        %v5444 = vunpack.c.l.b16 %v5341
        %v5445 = vunpack.c.h.b16 %v5341
        %v5446 = vunpack.c.l.b16 %v5342
        %v5447 = vunpack.c.h.b16 %v5342
        %v5448 = vunpack.c.l.b16 %v5343
        %v5449 = vunpack.c.h.b16 %v5343
        %v5450 = vunpack.c.l.b16 %v5344
        %v5451 = vunpack.c.h.b16 %v5344
        %v5452 = vunpack.c.l.b16 %v5345
        %v5453 = vunpack.c.h.b16 %v5345
        %v5454 = vunpack.c.l.b16 %v5346
        %v5455 = vunpack.c.h.b16 %v5346
        %v5456 = vunpack.c.l.b16 %v5347
        %v5457 = vunpack.c.h.b16 %v5347
        %v5458 = vunpack.c.l.b16 %v5348
        %v5459 = vunpack.c.h.b16 %v5348
        %v5460 = vunpack.c.l.b16 %v5349
        %v5461 = vunpack.c.h.b16 %v5349
        %v5462 = vunpack.c.l.b16 %v5350
        %v5463 = vunpack.c.h.b16 %v5350
        %v5464 = vunpack.c.l.b16 %v5351
        %v5465 = vunpack.c.h.b16 %v5351
        %v5466 = vunpack.c.l.b16 %v5352
        %v5467 = vunpack.c.h.b16 %v5352
        %v5468 = vunpack.c.l.b16 %v5353
        %v5469 = vunpack.c.h.b16 %v5353
        %v5470 = vpack.c.b16 %v5408, %v5406
        %v5471 = vpack.c.b16 %v5409, %v5407
        %v5472 = vpack.c.b16 %v5412, %v5410
        %v5473 = vpack.c.b16 %v5413, %v5411
        %v5474 = vpack.c.b16 %v5416, %v5414
        %v5475 = vpack.c.b16 %v5417, %v5415
        %v5476 = vpack.c.b16 %v5420, %v5418
        %v5477 = vpack.c.b16 %v5421, %v5419
        %v5478 = vpack.c.b16 %v5424, %v5422
        %v5479 = vpack.c.b16 %v5425, %v5423
        %v5480 = vpack.c.b16 %v5428, %v5426
        %v5481 = vpack.c.b16 %v5429, %v5427
        %v5482 = vpack.c.b16 %v5432, %v5430
        %v5483 = vpack.c.b16 %v5433, %v5431
        %v5484 = vpack.c.b16 %v5436, %v5434
        %v5485 = vpack.c.b16 %v5437, %v5435
        %v5486 = vpack.c.b16 %v5440, %v5438
        %v5487 = vpack.c.b16 %v5441, %v5439
        %v5488 = vpack.c.b16 %v5444, %v5442
        %v5489 = vpack.c.b16 %v5445, %v5443
        %v5490 = vpack.c.b16 %v5448, %v5446
        %v5491 = vpack.c.b16 %v5449, %v5447
        %v5492 = vpack.c.b16 %v5452, %v5450
        %v5493 = vpack.c.b16 %v5453, %v5451
        %v5494 = vpack.c.b16 %v5456, %v5454
        %v5495 = vpack.c.b16 %v5457, %v5455
        %v5496 = vpack.c.b16 %v5460, %v5458
        %v5497 = vpack.c.b16 %v5461, %v5459
        %v5498 = vpack.c.b16 %v5464, %v5462
        %v5499 = vpack.c.b16 %v5465, %v5463
        %v5500 = vpack.c.b16 %v5468, %v5466
        %v5501 = vpack.c.b16 %v5469, %v5467
        %5534 = vmatprep.subr.bf16.mxu0 %v5485
        %5535 = vmatpush1.bf16.msra.mxu0 %v5484
        %5536 = vmatprep.subr.bf16.mxu0 %v5483
        %5537 = vmatpush1.bf16.msra.mxu0 %v5482
        %5538 = vmatprep.subr.bf16.mxu0 %v5481
        %5539 = vmatpush1.bf16.msra.mxu0 %v5480
        %5540 = vmatprep.subr.bf16.mxu0 %v5479
        %5541 = vmatpush1.bf16.msra.mxu0 %v5478
        %5542 = vmatprep.subr.bf16.mxu0 %v5477
        %5543 = vmatpush1.bf16.msra.mxu0 %v5476
        %5544 = vmatprep.subr.bf16.mxu0 %v5475
        %5545 = vmatpush1.bf16.msra.mxu0 %v5474
        %5546 = vmatprep.subr.bf16.mxu0 %v5473
        %5547 = vmatpush1.bf16.msra.mxu0 %v5472
        %5548 = vmatprep.subr.bf16.mxu0 %v5471
        %5549 = vmatpush1.bf16.msra.mxu0 %v5470
        %5550 = vmatprep.subr.bf16.mxu0 %v5501
        %5551 = vmatpush2.bf16.msra.mxu0 %v5500
        %5552 = vmatprep.subr.bf16.mxu0 %v5499
        %5553 = vmatpush2.bf16.msra.mxu0 %v5498
        %5554 = vmatprep.subr.bf16.mxu0 %v5497
        %5555 = vmatpush2.bf16.msra.mxu0 %v5496
        %5556 = vmatprep.subr.bf16.mxu0 %v5495
        %5557 = vmatpush2.bf16.msra.mxu0 %v5494
        %5558 = vmatprep.subr.bf16.mxu0 %v5493
        %5559 = vmatpush2.bf16.msra.mxu0 %v5492
        %5560 = vmatprep.subr.bf16.mxu0 %v5491
        %5561 = vmatpush2.bf16.msra.mxu0 %v5490
        %5562 = vmatprep.subr.bf16.mxu0 %v5489
        %5563 = vmatpush2.bf16.msra.mxu0 %v5488
        %5564 = vmatprep.subr.bf16.mxu0 %v5487
        %5565 = vmatpush2.bf16.msra.mxu0 %v5486
        %5566 = vmatprep.mubr.bf16.mxu0 %v5371
        %5567 = vmatmul.mubr.bf16.gmra.mxu0 %v5370
        %v5568 = vpop.f32.mrf.mxu0
        %v5569 = vadd.f32 0.0, %v5568
        %v5570 = vpop.f32.mrf.mxu0
        %v5571 = vadd.f32 0.0, %v5570
        %v5572 = vpop.f32.mrf.mxu0
        %v5573 = vadd.f32 0.0, %v5572
        %v5574 = vpop.f32.mrf.mxu0
        %v5575 = vadd.f32 0.0, %v5574
        %5576 = vdwg.mxu0
        %v5577 = vadd.f32 %v5221, %v5569
        %v5578 = vadd.f32 %v5222, %v5571
        %v5579 = vadd.f32 %v5223, %v5573
        %v5580 = vadd.f32 %v5224, %v5575
        %v5581 = vld [vmem:[%s2427 + $0x8] sm:$0x88]
        %v5582 = vld [vmem:[%s2427 + $0x10] sm:$0x33]
        %v5583 = vld [vmem:[%s2427 + $0x28] sm:$0x88]
        %v5584 = vld [vmem:[%s2427 + $0x30] sm:$0x33]
        %v5585 = vld [vmem:[%s2427 + $0x48] sm:$0x88]
        %v5586 = vld [vmem:[%s2427 + $0x50] sm:$0x33]
        %v5587 = vld [vmem:[%s2427 + $0x68] sm:$0x88]
        %v5588 = vld [vmem:[%s2427 + $0x70] sm:$0x33]
        %v5598 = vunpack.c.l.s4 1983009808
        %v5599 = vunpack.c.0.s8 %v5598
        %v5600 = vlaneseq
        %v5601 = vshrl.u32 %v5600, 7
        %v5602 = vsub.s32 %v5599, %v5601
        %v5603 = vrot.slane %v5581, %v5602
        %v5604 = vcombine.high %v5603, %v5603
        %v5606 = vunpack.c.l.s4 1983009808
        %v5607 = vunpack.c.0.s8 %v5606
        %v5608 = vlaneseq
        %v5609 = vshrl.u32 %v5608, 7
        %v5610 = vsub.s32 %v5607, %v5609
        %v5611 = vrot.slane %v5582, %v5610
        %v5613 = vunpack.c.l.s4 1983009808
        %v5614 = vunpack.c.0.s8 %v5613
        %v5615 = vlaneseq
        %v5616 = vshrl.u32 %v5615, 7
        %v5617 = vsub.s32 %v5614, %v5616
        %v5618 = vrot.slane %v5583, %v5617
        %v5619 = vcombine.high %v5618, %v5618
        %v5621 = vunpack.c.l.s4 1983009808
        %v5622 = vunpack.c.0.s8 %v5621
        %v5623 = vlaneseq
        %v5624 = vshrl.u32 %v5623, 7
        %v5625 = vsub.s32 %v5622, %v5624
        %v5626 = vrot.slane %v5584, %v5625
        %v5628 = vunpack.c.l.s4 1983009808
        %v5629 = vunpack.c.0.s8 %v5628
        %v5630 = vlaneseq
        %v5631 = vshrl.u32 %v5630, 7
        %v5632 = vsub.s32 %v5629, %v5631
        %v5633 = vrot.slane %v5585, %v5632
        %v5634 = vcombine.high %v5633, %v5633
        %v5636 = vunpack.c.l.s4 1983009808
        %v5637 = vunpack.c.0.s8 %v5636
        %v5638 = vlaneseq
        %v5639 = vshrl.u32 %v5638, 7
        %v5640 = vsub.s32 %v5637, %v5639
        %v5641 = vrot.slane %v5586, %v5640
        %v5643 = vunpack.c.l.s4 1983009808
        %v5644 = vunpack.c.0.s8 %v5643
        %v5645 = vlaneseq
        %v5646 = vshrl.u32 %v5645, 7
        %v5647 = vsub.s32 %v5644, %v5646
        %v5648 = vrot.slane %v5587, %v5647
        %v5649 = vcombine.high %v5648, %v5648
        %v5651 = vunpack.c.l.s4 1983009808
        %v5652 = vunpack.c.0.s8 %v5651
        %v5653 = vlaneseq
        %v5654 = vshrl.u32 %v5653, 7
        %v5655 = vsub.s32 %v5652, %v5654
        %v5656 = vrot.slane %v5588, %v5655
        %v5658 = vshrl.u32 %v5604, 16
        %v5660 = vrot.slane %v5658, 7
        %v5661 = vrot.slane %v5660, 2
        %v5663 = vshrl.u32 %v5611, 16
        %v5665 = vrot.slane %v5663, 7
        %v5666 = vshll.u32 %v5611, 16
        %v5668 = vor.u32 %v5665, %v5666
        %v5669 = vsel %vm460, %v5661, %v5668
        %v5671 = vshrl.u32 %v5619, 16
        %v5673 = vrot.slane %v5671, 7
        %v5674 = vrot.slane %v5673, 2
        %v5676 = vshrl.u32 %v5626, 16
        %v5678 = vrot.slane %v5676, 7
        %v5679 = vshll.u32 %v5626, 16
        %v5681 = vor.u32 %v5678, %v5679
        %v5682 = vsel %vm460, %v5674, %v5681
        %v5684 = vshrl.u32 %v5634, 16
        %v5686 = vrot.slane %v5684, 7
        %v5687 = vrot.slane %v5686, 2
        %v5689 = vshrl.u32 %v5641, 16
        %v5691 = vrot.slane %v5689, 7
        %v5692 = vshll.u32 %v5641, 16
        %v5694 = vor.u32 %v5691, %v5692
        %v5695 = vsel %vm460, %v5687, %v5694
        %v5697 = vshrl.u32 %v5649, 16
        %v5699 = vrot.slane %v5697, 7
        %v5700 = vrot.slane %v5699, 2
        %v5702 = vshrl.u32 %v5656, 16
        %v5704 = vrot.slane %v5702, 7
        %v5705 = vshll.u32 %v5656, 16
        %v5707 = vor.u32 %v5704, %v5705
        %v5708 = vsel %vm460, %v5700, %v5707
        %s5709 = scalar_lea.vmem [#allocation9], 1536
        %v5710 = vld [vmem:[%s5709] sm:$0xff]
        %v5711 = vld [vmem:[%s5709 + $0x8] sm:$0xff]
        %v5712 = vld [vmem:[%s5709 + $0x10] sm:$0xff]
        %v5713 = vld [vmem:[%s5709 + $0x18] sm:$0xff]
        %v5714 = vld [vmem:[%s5709 + $0x20] sm:$0xff]
        %v5715 = vld [vmem:[%s5709 + $0x28] sm:$0xff]
        %v5716 = vld [vmem:[%s5709 + $0x30] sm:$0xff]
        %v5717 = vld [vmem:[%s5709 + $0x38] sm:$0xff]
        %v5718 = vld [vmem:[%s5709 + $0x40] sm:$0xff]
        %v5719 = vld [vmem:[%s5709 + $0x48] sm:$0xff]
        %v5720 = vld [vmem:[%s5709 + $0x50] sm:$0xff]
        %v5721 = vld [vmem:[%s5709 + $0x58] sm:$0xff]
        %v5722 = vld [vmem:[%s5709 + $0x60] sm:$0xff]
        %v5723 = vld [vmem:[%s5709 + $0x68] sm:$0xff]
        %v5724 = vld [vmem:[%s5709 + $0x70] sm:$0xff]
        %v5725 = vld [vmem:[%s5709 + $0x78] sm:$0xff]
        %v5726 = vld [vmem:[%s5709 + $0x80] sm:$0xff]
        %v5727 = vld [vmem:[%s5709 + $0x88] sm:$0xff]
        %v5728 = vld [vmem:[%s5709 + $0x90] sm:$0xff]
        %v5729 = vld [vmem:[%s5709 + $0x98] sm:$0xff]
        %v5730 = vld [vmem:[%s5709 + $0xa0] sm:$0xff]
        %v5731 = vld [vmem:[%s5709 + $0xa8] sm:$0xff]
        %v5732 = vld [vmem:[%s5709 + $0xb0] sm:$0xff]
        %v5733 = vld [vmem:[%s5709 + $0xb8] sm:$0xff]
        %v5734 = vld [vmem:[%s5709 + $0xc0] sm:$0xff]
        %v5735 = vld [vmem:[%s5709 + $0xc8] sm:$0xff]
        %v5736 = vld [vmem:[%s5709 + $0xd0] sm:$0xff]
        %v5737 = vld [vmem:[%s5709 + $0xd8] sm:$0xff]
        %v5738 = vld [vmem:[%s5709 + $0xe0] sm:$0xff]
        %v5739 = vld [vmem:[%s5709 + $0xe8] sm:$0xff]
        %v5740 = vld [vmem:[%s5709 + $0xf0] sm:$0xff]
        %v5741 = vld [vmem:[%s5709 + $0xf8] sm:$0xff]
        %v5742 = vcombine.low %v5669, %v5682
        %v5743 = vcombine.low %v5695, %v5708
        %v5745 = vunpack.c.l.s4 1983009808
        %v5746 = vunpack.c.0.s8 %v5745
        %v5747 = vlaneseq
        %v5748 = vshrl.u32 %v5747, 7
        %v5749 = vsub.s32 %v5746, %v5748
        %v5750 = vrot.slane %v5742, %v5749
        %v5752 = vunpack.c.l.s4 1983009808
        %v5753 = vunpack.c.0.s8 %v5752
        %v5754 = vlaneseq
        %v5755 = vshrl.u32 %v5754, 7
        %v5756 = vsub.s32 %v5753, %v5755
        %v5757 = vrot.slane %v5743, %v5756
        %v5758 = vcombine.low %v5750, %v5757
        %v5759 = vcombine.high %v5750, %v5757
        %v5794 = vunpack.c.l.b16 %v5710
        %v5795 = vunpack.c.h.b16 %v5710
        %v5796 = vunpack.c.l.b16 %v5711
        %v5797 = vunpack.c.h.b16 %v5711
        %v5798 = vunpack.c.l.b16 %v5712
        %v5799 = vunpack.c.h.b16 %v5712
        %v5800 = vunpack.c.l.b16 %v5713
        %v5801 = vunpack.c.h.b16 %v5713
        %v5802 = vunpack.c.l.b16 %v5714
        %v5803 = vunpack.c.h.b16 %v5714
        %v5804 = vunpack.c.l.b16 %v5715
        %v5805 = vunpack.c.h.b16 %v5715
        %v5806 = vunpack.c.l.b16 %v5716
        %v5807 = vunpack.c.h.b16 %v5716
        %v5808 = vunpack.c.l.b16 %v5717
        %v5809 = vunpack.c.h.b16 %v5717
        %v5810 = vunpack.c.l.b16 %v5718
        %v5811 = vunpack.c.h.b16 %v5718
        %v5812 = vunpack.c.l.b16 %v5719
        %v5813 = vunpack.c.h.b16 %v5719
        %v5814 = vunpack.c.l.b16 %v5720
        %v5815 = vunpack.c.h.b16 %v5720
        %v5816 = vunpack.c.l.b16 %v5721
        %v5817 = vunpack.c.h.b16 %v5721
        %v5818 = vunpack.c.l.b16 %v5722
        %v5819 = vunpack.c.h.b16 %v5722
        %v5820 = vunpack.c.l.b16 %v5723
        %v5821 = vunpack.c.h.b16 %v5723
        %v5822 = vunpack.c.l.b16 %v5724
        %v5823 = vunpack.c.h.b16 %v5724
        %v5824 = vunpack.c.l.b16 %v5725
        %v5825 = vunpack.c.h.b16 %v5725
        %v5826 = vunpack.c.l.b16 %v5726
        %v5827 = vunpack.c.h.b16 %v5726
        %v5828 = vunpack.c.l.b16 %v5727
        %v5829 = vunpack.c.h.b16 %v5727
        %v5830 = vunpack.c.l.b16 %v5728
        %v5831 = vunpack.c.h.b16 %v5728
        %v5832 = vunpack.c.l.b16 %v5729
        %v5833 = vunpack.c.h.b16 %v5729
        %v5834 = vunpack.c.l.b16 %v5730
        %v5835 = vunpack.c.h.b16 %v5730
        %v5836 = vunpack.c.l.b16 %v5731
        %v5837 = vunpack.c.h.b16 %v5731
        %v5838 = vunpack.c.l.b16 %v5732
        %v5839 = vunpack.c.h.b16 %v5732
        %v5840 = vunpack.c.l.b16 %v5733
        %v5841 = vunpack.c.h.b16 %v5733
        %v5842 = vunpack.c.l.b16 %v5734
        %v5843 = vunpack.c.h.b16 %v5734
        %v5844 = vunpack.c.l.b16 %v5735
        %v5845 = vunpack.c.h.b16 %v5735
        %v5846 = vunpack.c.l.b16 %v5736
        %v5847 = vunpack.c.h.b16 %v5736
        %v5848 = vunpack.c.l.b16 %v5737
        %v5849 = vunpack.c.h.b16 %v5737
        %v5850 = vunpack.c.l.b16 %v5738
        %v5851 = vunpack.c.h.b16 %v5738
        %v5852 = vunpack.c.l.b16 %v5739
        %v5853 = vunpack.c.h.b16 %v5739
        %v5854 = vunpack.c.l.b16 %v5740
        %v5855 = vunpack.c.h.b16 %v5740
        %v5856 = vunpack.c.l.b16 %v5741
        %v5857 = vunpack.c.h.b16 %v5741
        %v5858 = vpack.c.b16 %v5796, %v5794
        %v5859 = vpack.c.b16 %v5797, %v5795
        %v5860 = vpack.c.b16 %v5800, %v5798
        %v5861 = vpack.c.b16 %v5801, %v5799
        %v5862 = vpack.c.b16 %v5804, %v5802
        %v5863 = vpack.c.b16 %v5805, %v5803
        %v5864 = vpack.c.b16 %v5808, %v5806
        %v5865 = vpack.c.b16 %v5809, %v5807
        %v5866 = vpack.c.b16 %v5812, %v5810
        %v5867 = vpack.c.b16 %v5813, %v5811
        %v5868 = vpack.c.b16 %v5816, %v5814
        %v5869 = vpack.c.b16 %v5817, %v5815
        %v5870 = vpack.c.b16 %v5820, %v5818
        %v5871 = vpack.c.b16 %v5821, %v5819
        %v5872 = vpack.c.b16 %v5824, %v5822
        %v5873 = vpack.c.b16 %v5825, %v5823
        %v5874 = vpack.c.b16 %v5828, %v5826
        %v5875 = vpack.c.b16 %v5829, %v5827
        %v5876 = vpack.c.b16 %v5832, %v5830
        %v5877 = vpack.c.b16 %v5833, %v5831
        %v5878 = vpack.c.b16 %v5836, %v5834
        %v5879 = vpack.c.b16 %v5837, %v5835
        %v5880 = vpack.c.b16 %v5840, %v5838
        %v5881 = vpack.c.b16 %v5841, %v5839
        %v5882 = vpack.c.b16 %v5844, %v5842
        %v5883 = vpack.c.b16 %v5845, %v5843
        %v5884 = vpack.c.b16 %v5848, %v5846
        %v5885 = vpack.c.b16 %v5849, %v5847
        %v5886 = vpack.c.b16 %v5852, %v5850
        %v5887 = vpack.c.b16 %v5853, %v5851
        %v5888 = vpack.c.b16 %v5856, %v5854
        %v5889 = vpack.c.b16 %v5857, %v5855
        %5922 = vmatprep.subr.bf16.mxu0 %v5873
        %5923 = vmatpush1.bf16.msra.mxu0 %v5872
        %5924 = vmatprep.subr.bf16.mxu0 %v5871
        %5925 = vmatpush1.bf16.msra.mxu0 %v5870
        %5926 = vmatprep.subr.bf16.mxu0 %v5869
        %5927 = vmatpush1.bf16.msra.mxu0 %v5868
        %5928 = vmatprep.subr.bf16.mxu0 %v5867
        %5929 = vmatpush1.bf16.msra.mxu0 %v5866
        %5930 = vmatprep.subr.bf16.mxu0 %v5865
        %5931 = vmatpush1.bf16.msra.mxu0 %v5864
        %5932 = vmatprep.subr.bf16.mxu0 %v5863
        %5933 = vmatpush1.bf16.msra.mxu0 %v5862
        %5934 = vmatprep.subr.bf16.mxu0 %v5861
        %5935 = vmatpush1.bf16.msra.mxu0 %v5860
        %5936 = vmatprep.subr.bf16.mxu0 %v5859
        %5937 = vmatpush1.bf16.msra.mxu0 %v5858
        %5938 = vmatprep.subr.bf16.mxu0 %v5889
        %5939 = vmatpush2.bf16.msra.mxu0 %v5888
        %5940 = vmatprep.subr.bf16.mxu0 %v5887
        %5941 = vmatpush2.bf16.msra.mxu0 %v5886
        %5942 = vmatprep.subr.bf16.mxu0 %v5885
        %5943 = vmatpush2.bf16.msra.mxu0 %v5884
        %5944 = vmatprep.subr.bf16.mxu0 %v5883
        %5945 = vmatpush2.bf16.msra.mxu0 %v5882
        %5946 = vmatprep.subr.bf16.mxu0 %v5881
        %5947 = vmatpush2.bf16.msra.mxu0 %v5880
        %5948 = vmatprep.subr.bf16.mxu0 %v5879
        %5949 = vmatpush2.bf16.msra.mxu0 %v5878
        %5950 = vmatprep.subr.bf16.mxu0 %v5877
        %5951 = vmatpush2.bf16.msra.mxu0 %v5876
        %5952 = vmatprep.subr.bf16.mxu0 %v5875
        %5953 = vmatpush2.bf16.msra.mxu0 %v5874
        %5954 = vmatprep.mubr.bf16.mxu0 %v5759
        %5955 = vmatmul.mubr.bf16.gmra.mxu0 %v5758
        %v5956 = vpop.f32.mrf.mxu0
        %v5957 = vadd.f32 0.0, %v5956
        %v5958 = vpop.f32.mrf.mxu0
        %v5959 = vadd.f32 0.0, %v5958
        %v5960 = vpop.f32.mrf.mxu0
        %v5961 = vadd.f32 0.0, %v5960
        %v5962 = vpop.f32.mrf.mxu0
        %v5963 = vadd.f32 0.0, %v5962
        %5964 = vdwg.mxu0
        %v5965 = vadd.f32 %v5577, %v5957
        %v5966 = vadd.f32 %v5578, %v5959
        %v5967 = vadd.f32 %v5579, %v5961
        %v5968 = vadd.f32 %v5580, %v5963
        %v5969 = vld [vmem:[%s2427 + $0x10] sm:$0x33]
        %v5970 = vld [vmem:[%s2427 + $0x30] sm:$0x33]
        %v5971 = vld [vmem:[%s2427 + $0x50] sm:$0x33]
        %v5972 = vld [vmem:[%s2427 + $0x70] sm:$0x33]
        %v5978 = vunpack.c.l.s4 1983009808
        %v5979 = vunpack.c.0.s8 %v5978
        %v5980 = vlaneseq
        %v5981 = vshrl.u32 %v5980, 7
        %v5982 = vsub.s32 %v5979, %v5981
        %v5983 = vrot.slane %v5969, %v5982
        %v5985 = vunpack.c.l.s4 1983009808
        %v5986 = vunpack.c.0.s8 %v5985
        %v5987 = vlaneseq
        %v5988 = vshrl.u32 %v5987, 7
        %v5989 = vsub.s32 %v5986, %v5988
        %v5990 = vrot.slane %v5970, %v5989
        %v5992 = vunpack.c.l.s4 1983009808
        %v5993 = vunpack.c.0.s8 %v5992
        %v5994 = vlaneseq
        %v5995 = vshrl.u32 %v5994, 7
        %v5996 = vsub.s32 %v5993, %v5995
        %v5997 = vrot.slane %v5971, %v5996
        %v5999 = vunpack.c.l.s4 1983009808
        %v6000 = vunpack.c.0.s8 %v5999
        %v6001 = vlaneseq
        %v6002 = vshrl.u32 %v6001, 7
        %v6003 = vsub.s32 %v6000, %v6002
        %v6004 = vrot.slane %v5972, %v6003
        %s6005 = scalar_lea.vmem [#allocation9], 1792
        %v6006 = vld [vmem:[%s6005] sm:$0xff]
        %v6007 = vld [vmem:[%s6005 + $0x8] sm:$0xff]
        %v6008 = vld [vmem:[%s6005 + $0x10] sm:$0xff]
        %v6009 = vld [vmem:[%s6005 + $0x18] sm:$0xff]
        %v6010 = vld [vmem:[%s6005 + $0x20] sm:$0xff]
        %v6011 = vld [vmem:[%s6005 + $0x28] sm:$0xff]
        %v6012 = vld [vmem:[%s6005 + $0x30] sm:$0xff]
        %v6013 = vld [vmem:[%s6005 + $0x38] sm:$0xff]
        %v6014 = vld [vmem:[%s6005 + $0x40] sm:$0xff]
        %v6015 = vld [vmem:[%s6005 + $0x48] sm:$0xff]
        %v6016 = vld [vmem:[%s6005 + $0x50] sm:$0xff]
        %v6017 = vld [vmem:[%s6005 + $0x58] sm:$0xff]
        %v6018 = vld [vmem:[%s6005 + $0x60] sm:$0xff]
        %v6019 = vld [vmem:[%s6005 + $0x68] sm:$0xff]
        %v6020 = vld [vmem:[%s6005 + $0x70] sm:$0xff]
        %v6021 = vld [vmem:[%s6005 + $0x78] sm:$0xff]
        %v6022 = vld [vmem:[%s6005 + $0x80] sm:$0xff]
        %v6023 = vld [vmem:[%s6005 + $0x88] sm:$0xff]
        %v6024 = vld [vmem:[%s6005 + $0x90] sm:$0xff]
        %v6025 = vld [vmem:[%s6005 + $0x98] sm:$0xff]
        %v6026 = vld [vmem:[%s6005 + $0xa0] sm:$0xff]
        %v6027 = vld [vmem:[%s6005 + $0xa8] sm:$0xff]
        %v6028 = vld [vmem:[%s6005 + $0xb0] sm:$0xff]
        %v6029 = vld [vmem:[%s6005 + $0xb8] sm:$0xff]
        %v6030 = vld [vmem:[%s6005 + $0xc0] sm:$0xff]
        %v6031 = vld [vmem:[%s6005 + $0xc8] sm:$0xff]
        %v6032 = vld [vmem:[%s6005 + $0xd0] sm:$0xff]
        %v6033 = vld [vmem:[%s6005 + $0xd8] sm:$0xff]
        %v6034 = vld [vmem:[%s6005 + $0xe0] sm:$0xff]
        %v6035 = vld [vmem:[%s6005 + $0xe8] sm:$0xff]
        %v6036 = vld [vmem:[%s6005 + $0xf0] sm:$0xff]
        %v6037 = vld [vmem:[%s6005 + $0xf8] sm:$0xff]
        %v6038 = vcombine.low %v5983, %v5990
        %v6039 = vcombine.low %v5997, %v6004
        %v6041 = vunpack.c.l.s4 1983009808
        %v6042 = vunpack.c.0.s8 %v6041
        %v6043 = vlaneseq
        %v6044 = vshrl.u32 %v6043, 7
        %v6045 = vsub.s32 %v6042, %v6044
        %v6046 = vrot.slane %v6038, %v6045
        %v6048 = vunpack.c.l.s4 1983009808
        %v6049 = vunpack.c.0.s8 %v6048
        %v6050 = vlaneseq
        %v6051 = vshrl.u32 %v6050, 7
        %v6052 = vsub.s32 %v6049, %v6051
        %v6053 = vrot.slane %v6039, %v6052
        %v6054 = vcombine.low %v6046, %v6053
        %v6055 = vcombine.high %v6046, %v6053
        %v6090 = vunpack.c.l.b16 %v6006
        %v6091 = vunpack.c.h.b16 %v6006
        %v6092 = vunpack.c.l.b16 %v6007
        %v6093 = vunpack.c.h.b16 %v6007
        %v6094 = vunpack.c.l.b16 %v6008
        %v6095 = vunpack.c.h.b16 %v6008
        %v6096 = vunpack.c.l.b16 %v6009
        %v6097 = vunpack.c.h.b16 %v6009
        %v6098 = vunpack.c.l.b16 %v6010
        %v6099 = vunpack.c.h.b16 %v6010
        %v6100 = vunpack.c.l.b16 %v6011
        %v6101 = vunpack.c.h.b16 %v6011
        %v6102 = vunpack.c.l.b16 %v6012
        %v6103 = vunpack.c.h.b16 %v6012
        %v6104 = vunpack.c.l.b16 %v6013
        %v6105 = vunpack.c.h.b16 %v6013
        %v6106 = vunpack.c.l.b16 %v6014
        %v6107 = vunpack.c.h.b16 %v6014
        %v6108 = vunpack.c.l.b16 %v6015
        %v6109 = vunpack.c.h.b16 %v6015
        %v6110 = vunpack.c.l.b16 %v6016
        %v6111 = vunpack.c.h.b16 %v6016
        %v6112 = vunpack.c.l.b16 %v6017
        %v6113 = vunpack.c.h.b16 %v6017
        %v6114 = vunpack.c.l.b16 %v6018
        %v6115 = vunpack.c.h.b16 %v6018
        %v6116 = vunpack.c.l.b16 %v6019
        %v6117 = vunpack.c.h.b16 %v6019
        %v6118 = vunpack.c.l.b16 %v6020
        %v6119 = vunpack.c.h.b16 %v6020
        %v6120 = vunpack.c.l.b16 %v6021
        %v6121 = vunpack.c.h.b16 %v6021
        %v6122 = vunpack.c.l.b16 %v6022
        %v6123 = vunpack.c.h.b16 %v6022
        %v6124 = vunpack.c.l.b16 %v6023
        %v6125 = vunpack.c.h.b16 %v6023
        %v6126 = vunpack.c.l.b16 %v6024
        %v6127 = vunpack.c.h.b16 %v6024
        %v6128 = vunpack.c.l.b16 %v6025
        %v6129 = vunpack.c.h.b16 %v6025
        %v6130 = vunpack.c.l.b16 %v6026
        %v6131 = vunpack.c.h.b16 %v6026
        %v6132 = vunpack.c.l.b16 %v6027
        %v6133 = vunpack.c.h.b16 %v6027
        %v6134 = vunpack.c.l.b16 %v6028
        %v6135 = vunpack.c.h.b16 %v6028
        %v6136 = vunpack.c.l.b16 %v6029
        %v6137 = vunpack.c.h.b16 %v6029
        %v6138 = vunpack.c.l.b16 %v6030
        %v6139 = vunpack.c.h.b16 %v6030
        %v6140 = vunpack.c.l.b16 %v6031
        %v6141 = vunpack.c.h.b16 %v6031
        %v6142 = vunpack.c.l.b16 %v6032
        %v6143 = vunpack.c.h.b16 %v6032
        %v6144 = vunpack.c.l.b16 %v6033
        %v6145 = vunpack.c.h.b16 %v6033
        %v6146 = vunpack.c.l.b16 %v6034
        %v6147 = vunpack.c.h.b16 %v6034
        %v6148 = vunpack.c.l.b16 %v6035
        %v6149 = vunpack.c.h.b16 %v6035
        %v6150 = vunpack.c.l.b16 %v6036
        %v6151 = vunpack.c.h.b16 %v6036
        %v6152 = vunpack.c.l.b16 %v6037
        %v6153 = vunpack.c.h.b16 %v6037
        %v6154 = vpack.c.b16 %v6092, %v6090
        %v6155 = vpack.c.b16 %v6093, %v6091
        %v6156 = vpack.c.b16 %v6096, %v6094
        %v6157 = vpack.c.b16 %v6097, %v6095
        %v6158 = vpack.c.b16 %v6100, %v6098
        %v6159 = vpack.c.b16 %v6101, %v6099
        %v6160 = vpack.c.b16 %v6104, %v6102
        %v6161 = vpack.c.b16 %v6105, %v6103
        %v6162 = vpack.c.b16 %v6108, %v6106
        %v6163 = vpack.c.b16 %v6109, %v6107
        %v6164 = vpack.c.b16 %v6112, %v6110
        %v6165 = vpack.c.b16 %v6113, %v6111
        %v6166 = vpack.c.b16 %v6116, %v6114
        %v6167 = vpack.c.b16 %v6117, %v6115
        %v6168 = vpack.c.b16 %v6120, %v6118
        %v6169 = vpack.c.b16 %v6121, %v6119
        %v6170 = vpack.c.b16 %v6124, %v6122
        %v6171 = vpack.c.b16 %v6125, %v6123
        %v6172 = vpack.c.b16 %v6128, %v6126
        %v6173 = vpack.c.b16 %v6129, %v6127
        %v6174 = vpack.c.b16 %v6132, %v6130
        %v6175 = vpack.c.b16 %v6133, %v6131
        %v6176 = vpack.c.b16 %v6136, %v6134
        %v6177 = vpack.c.b16 %v6137, %v6135
        %v6178 = vpack.c.b16 %v6140, %v6138
        %v6179 = vpack.c.b16 %v6141, %v6139
        %v6180 = vpack.c.b16 %v6144, %v6142
        %v6181 = vpack.c.b16 %v6145, %v6143
        %v6182 = vpack.c.b16 %v6148, %v6146
        %v6183 = vpack.c.b16 %v6149, %v6147
        %v6184 = vpack.c.b16 %v6152, %v6150
        %v6185 = vpack.c.b16 %v6153, %v6151
        %6218 = vmatprep.subr.bf16.mxu0 %v6169
        %6219 = vmatpush1.bf16.msra.mxu0 %v6168
        %6220 = vmatprep.subr.bf16.mxu0 %v6167
        %6221 = vmatpush1.bf16.msra.mxu0 %v6166
        %6222 = vmatprep.subr.bf16.mxu0 %v6165
        %6223 = vmatpush1.bf16.msra.mxu0 %v6164
        %6224 = vmatprep.subr.bf16.mxu0 %v6163
        %6225 = vmatpush1.bf16.msra.mxu0 %v6162
        %6226 = vmatprep.subr.bf16.mxu0 %v6161
        %6227 = vmatpush1.bf16.msra.mxu0 %v6160
        %6228 = vmatprep.subr.bf16.mxu0 %v6159
        %6229 = vmatpush1.bf16.msra.mxu0 %v6158
        %6230 = vmatprep.subr.bf16.mxu0 %v6157
        %6231 = vmatpush1.bf16.msra.mxu0 %v6156
        %6232 = vmatprep.subr.bf16.mxu0 %v6155
        %6233 = vmatpush1.bf16.msra.mxu0 %v6154
        %6234 = vmatprep.subr.bf16.mxu0 %v6185
        %6235 = vmatpush2.bf16.msra.mxu0 %v6184
        %6236 = vmatprep.subr.bf16.mxu0 %v6183
        %6237 = vmatpush2.bf16.msra.mxu0 %v6182
        %6238 = vmatprep.subr.bf16.mxu0 %v6181
        %6239 = vmatpush2.bf16.msra.mxu0 %v6180
        %6240 = vmatprep.subr.bf16.mxu0 %v6179
        %6241 = vmatpush2.bf16.msra.mxu0 %v6178
        %6242 = vmatprep.subr.bf16.mxu0 %v6177
        %6243 = vmatpush2.bf16.msra.mxu0 %v6176
        %6244 = vmatprep.subr.bf16.mxu0 %v6175
        %6245 = vmatpush2.bf16.msra.mxu0 %v6174
        %6246 = vmatprep.subr.bf16.mxu0 %v6173
        %6247 = vmatpush2.bf16.msra.mxu0 %v6172
        %6248 = vmatprep.subr.bf16.mxu0 %v6171
        %6249 = vmatpush2.bf16.msra.mxu0 %v6170
        %6250 = vmatprep.mubr.bf16.mxu0 %v6055
        %6251 = vmatmul.mubr.bf16.gmra.mxu0 %v6054
        %v6252 = vpop.f32.mrf.mxu0
        %v6253 = vadd.f32 0.0, %v6252
        %v6254 = vpop.f32.mrf.mxu0
        %v6255 = vadd.f32 0.0, %v6254
        %v6256 = vpop.f32.mrf.mxu0
        %v6257 = vadd.f32 0.0, %v6256
        %v6258 = vpop.f32.mrf.mxu0
        %v6259 = vadd.f32 0.0, %v6258
        %6260 = vdwg.mxu0
        %v6261 = vadd.f32 %v5965, %v6253
        %v6262 = vadd.f32 %v5966, %v6255
        %v6263 = vadd.f32 %v5967, %v6257
        %v6264 = vadd.f32 %v5968, %v6259
        %v6265 = vld [vmem:[%s2427 + $0x10] sm:$0x77]
        %v6266 = vld [vmem:[%s2427 + $0x30] sm:$0x77]
        %v6267 = vld [vmem:[%s2427 + $0x50] sm:$0x77]
        %v6268 = vld [vmem:[%s2427 + $0x70] sm:$0x77]
        %v6274 = vunpack.c.l.s4 1983009808
        %v6275 = vunpack.c.0.s8 %v6274
        %v6276 = vlaneseq
        %v6277 = vshrl.u32 %v6276, 7
        %v6278 = vsub.s32 %v6275, %v6277
        %v6279 = vrot.slane %v6265, %v6278
        %v6280 = vcombine.high %v6279, %v6279
        %v6282 = vunpack.c.l.s4 1983009808
        %v6283 = vunpack.c.0.s8 %v6282
        %v6284 = vlaneseq
        %v6285 = vshrl.u32 %v6284, 7
        %v6286 = vsub.s32 %v6283, %v6285
        %v6287 = vrot.slane %v6266, %v6286
        %v6288 = vcombine.high %v6287, %v6287
        %v6290 = vunpack.c.l.s4 1983009808
        %v6291 = vunpack.c.0.s8 %v6290
        %v6292 = vlaneseq
        %v6293 = vshrl.u32 %v6292, 7
        %v6294 = vsub.s32 %v6291, %v6293
        %v6295 = vrot.slane %v6267, %v6294
        %v6296 = vcombine.high %v6295, %v6295
        %v6298 = vunpack.c.l.s4 1983009808
        %v6299 = vunpack.c.0.s8 %v6298
        %v6300 = vlaneseq
        %v6301 = vshrl.u32 %v6300, 7
        %v6302 = vsub.s32 %v6299, %v6301
        %v6303 = vrot.slane %v6268, %v6302
        %v6304 = vcombine.high %v6303, %v6303
        %v6306 = vshrl.u32 %v6279, 16
        %v6308 = vrot.slane %v6306, 6
        %v6309 = vshll.u32 %v6279, 16
        %v6311 = vrot.slane %v6309, 7
        %v6312 = vor.u32 %v6308, %v6311
        %v6313 = vrot.slane %v6312, 2
        %v6315 = vshll.u32 %v6280, 16
        %v6317 = vrot.slane %v6315, 7
        %v6318 = vsel %vm1070, %v6313, %v6317
        %v6320 = vshrl.u32 %v6287, 16
        %v6322 = vrot.slane %v6320, 6
        %v6323 = vshll.u32 %v6287, 16
        %v6325 = vrot.slane %v6323, 7
        %v6326 = vor.u32 %v6322, %v6325
        %v6327 = vrot.slane %v6326, 2
        %v6329 = vshll.u32 %v6288, 16
        %v6331 = vrot.slane %v6329, 7
        %v6332 = vsel %vm1070, %v6327, %v6331
        %v6334 = vshrl.u32 %v6295, 16
        %v6336 = vrot.slane %v6334, 6
        %v6337 = vshll.u32 %v6295, 16
        %v6339 = vrot.slane %v6337, 7
        %v6340 = vor.u32 %v6336, %v6339
        %v6341 = vrot.slane %v6340, 2
        %v6343 = vshll.u32 %v6296, 16
        %v6345 = vrot.slane %v6343, 7
        %v6346 = vsel %vm1070, %v6341, %v6345
        %v6348 = vshrl.u32 %v6303, 16
        %v6350 = vrot.slane %v6348, 6
        %v6351 = vshll.u32 %v6303, 16
        %v6353 = vrot.slane %v6351, 7
        %v6354 = vor.u32 %v6350, %v6353
        %v6355 = vrot.slane %v6354, 2
        %v6357 = vshll.u32 %v6304, 16
        %v6359 = vrot.slane %v6357, 7
        %v6360 = vsel %vm1070, %v6355, %v6359
        %s6361 = scalar_lea.vmem [#allocation9], 2048
        %v6362 = vld [vmem:[%s6361] sm:$0xff]
        %v6363 = vld [vmem:[%s6361 + $0x8] sm:$0xff]
        %v6364 = vld [vmem:[%s6361 + $0x10] sm:$0xff]
        %v6365 = vld [vmem:[%s6361 + $0x18] sm:$0xff]
        %v6366 = vld [vmem:[%s6361 + $0x20] sm:$0xff]
        %v6367 = vld [vmem:[%s6361 + $0x28] sm:$0xff]
        %v6368 = vld [vmem:[%s6361 + $0x30] sm:$0xff]
        %v6369 = vld [vmem:[%s6361 + $0x38] sm:$0xff]
        %v6370 = vld [vmem:[%s6361 + $0x40] sm:$0xff]
        %v6371 = vld [vmem:[%s6361 + $0x48] sm:$0xff]
        %v6372 = vld [vmem:[%s6361 + $0x50] sm:$0xff]
        %v6373 = vld [vmem:[%s6361 + $0x58] sm:$0xff]
        %v6374 = vld [vmem:[%s6361 + $0x60] sm:$0xff]
        %v6375 = vld [vmem:[%s6361 + $0x68] sm:$0xff]
        %v6376 = vld [vmem:[%s6361 + $0x70] sm:$0xff]
        %v6377 = vld [vmem:[%s6361 + $0x78] sm:$0xff]
        %v6378 = vld [vmem:[%s6361 + $0x80] sm:$0xff]
        %v6379 = vld [vmem:[%s6361 + $0x88] sm:$0xff]
        %v6380 = vld [vmem:[%s6361 + $0x90] sm:$0xff]
        %v6381 = vld [vmem:[%s6361 + $0x98] sm:$0xff]
        %v6382 = vld [vmem:[%s6361 + $0xa0] sm:$0xff]
        %v6383 = vld [vmem:[%s6361 + $0xa8] sm:$0xff]
        %v6384 = vld [vmem:[%s6361 + $0xb0] sm:$0xff]
        %v6385 = vld [vmem:[%s6361 + $0xb8] sm:$0xff]
        %v6386 = vld [vmem:[%s6361 + $0xc0] sm:$0xff]
        %v6387 = vld [vmem:[%s6361 + $0xc8] sm:$0xff]
        %v6388 = vld [vmem:[%s6361 + $0xd0] sm:$0xff]
        %v6389 = vld [vmem:[%s6361 + $0xd8] sm:$0xff]
        %v6390 = vld [vmem:[%s6361 + $0xe0] sm:$0xff]
        %v6391 = vld [vmem:[%s6361 + $0xe8] sm:$0xff]
        %v6392 = vld [vmem:[%s6361 + $0xf0] sm:$0xff]
        %v6393 = vld [vmem:[%s6361 + $0xf8] sm:$0xff]
        %v6394 = vcombine.low %v6318, %v6332
        %v6395 = vcombine.low %v6346, %v6360
        %v6397 = vunpack.c.l.s4 1983009808
        %v6398 = vunpack.c.0.s8 %v6397
        %v6399 = vlaneseq
        %v6400 = vshrl.u32 %v6399, 7
        %v6401 = vsub.s32 %v6398, %v6400
        %v6402 = vrot.slane %v6394, %v6401
        %v6404 = vunpack.c.l.s4 1983009808
        %v6405 = vunpack.c.0.s8 %v6404
        %v6406 = vlaneseq
        %v6407 = vshrl.u32 %v6406, 7
        %v6408 = vsub.s32 %v6405, %v6407
        %v6409 = vrot.slane %v6395, %v6408
        %v6410 = vcombine.low %v6402, %v6409
        %v6411 = vcombine.high %v6402, %v6409
        %v6446 = vunpack.c.l.b16 %v6362
        %v6447 = vunpack.c.h.b16 %v6362
        %v6448 = vunpack.c.l.b16 %v6363
        %v6449 = vunpack.c.h.b16 %v6363
        %v6450 = vunpack.c.l.b16 %v6364
        %v6451 = vunpack.c.h.b16 %v6364
        %v6452 = vunpack.c.l.b16 %v6365
        %v6453 = vunpack.c.h.b16 %v6365
        %v6454 = vunpack.c.l.b16 %v6366
        %v6455 = vunpack.c.h.b16 %v6366
        %v6456 = vunpack.c.l.b16 %v6367
        %v6457 = vunpack.c.h.b16 %v6367
        %v6458 = vunpack.c.l.b16 %v6368
        %v6459 = vunpack.c.h.b16 %v6368
        %v6460 = vunpack.c.l.b16 %v6369
        %v6461 = vunpack.c.h.b16 %v6369
        %v6462 = vunpack.c.l.b16 %v6370
        %v6463 = vunpack.c.h.b16 %v6370
        %v6464 = vunpack.c.l.b16 %v6371
        %v6465 = vunpack.c.h.b16 %v6371
        %v6466 = vunpack.c.l.b16 %v6372
        %v6467 = vunpack.c.h.b16 %v6372
        %v6468 = vunpack.c.l.b16 %v6373
        %v6469 = vunpack.c.h.b16 %v6373
        %v6470 = vunpack.c.l.b16 %v6374
        %v6471 = vunpack.c.h.b16 %v6374
        %v6472 = vunpack.c.l.b16 %v6375
        %v6473 = vunpack.c.h.b16 %v6375
        %v6474 = vunpack.c.l.b16 %v6376
        %v6475 = vunpack.c.h.b16 %v6376
        %v6476 = vunpack.c.l.b16 %v6377
        %v6477 = vunpack.c.h.b16 %v6377
        %v6478 = vunpack.c.l.b16 %v6378
        %v6479 = vunpack.c.h.b16 %v6378
        %v6480 = vunpack.c.l.b16 %v6379
        %v6481 = vunpack.c.h.b16 %v6379
        %v6482 = vunpack.c.l.b16 %v6380
        %v6483 = vunpack.c.h.b16 %v6380
        %v6484 = vunpack.c.l.b16 %v6381
        %v6485 = vunpack.c.h.b16 %v6381
        %v6486 = vunpack.c.l.b16 %v6382
        %v6487 = vunpack.c.h.b16 %v6382
        %v6488 = vunpack.c.l.b16 %v6383
        %v6489 = vunpack.c.h.b16 %v6383
        %v6490 = vunpack.c.l.b16 %v6384
        %v6491 = vunpack.c.h.b16 %v6384
        %v6492 = vunpack.c.l.b16 %v6385
        %v6493 = vunpack.c.h.b16 %v6385
        %v6494 = vunpack.c.l.b16 %v6386
        %v6495 = vunpack.c.h.b16 %v6386
        %v6496 = vunpack.c.l.b16 %v6387
        %v6497 = vunpack.c.h.b16 %v6387
        %v6498 = vunpack.c.l.b16 %v6388
        %v6499 = vunpack.c.h.b16 %v6388
        %v6500 = vunpack.c.l.b16 %v6389
        %v6501 = vunpack.c.h.b16 %v6389
        %v6502 = vunpack.c.l.b16 %v6390
        %v6503 = vunpack.c.h.b16 %v6390
        %v6504 = vunpack.c.l.b16 %v6391
        %v6505 = vunpack.c.h.b16 %v6391
        %v6506 = vunpack.c.l.b16 %v6392
        %v6507 = vunpack.c.h.b16 %v6392
        %v6508 = vunpack.c.l.b16 %v6393
        %v6509 = vunpack.c.h.b16 %v6393
        %v6510 = vpack.c.b16 %v6448, %v6446
        %v6511 = vpack.c.b16 %v6449, %v6447
        %v6512 = vpack.c.b16 %v6452, %v6450
        %v6513 = vpack.c.b16 %v6453, %v6451
        %v6514 = vpack.c.b16 %v6456, %v6454
        %v6515 = vpack.c.b16 %v6457, %v6455
        %v6516 = vpack.c.b16 %v6460, %v6458
        %v6517 = vpack.c.b16 %v6461, %v6459
        %v6518 = vpack.c.b16 %v6464, %v6462
        %v6519 = vpack.c.b16 %v6465, %v6463
        %v6520 = vpack.c.b16 %v6468, %v6466
        %v6521 = vpack.c.b16 %v6469, %v6467
        %v6522 = vpack.c.b16 %v6472, %v6470
        %v6523 = vpack.c.b16 %v6473, %v6471
        %v6524 = vpack.c.b16 %v6476, %v6474
        %v6525 = vpack.c.b16 %v6477, %v6475
        %v6526 = vpack.c.b16 %v6480, %v6478
        %v6527 = vpack.c.b16 %v6481, %v6479
        %v6528 = vpack.c.b16 %v6484, %v6482
        %v6529 = vpack.c.b16 %v6485, %v6483
        %v6530 = vpack.c.b16 %v6488, %v6486
        %v6531 = vpack.c.b16 %v6489, %v6487
        %v6532 = vpack.c.b16 %v6492, %v6490
        %v6533 = vpack.c.b16 %v6493, %v6491
        %v6534 = vpack.c.b16 %v6496, %v6494
        %v6535 = vpack.c.b16 %v6497, %v6495
        %v6536 = vpack.c.b16 %v6500, %v6498
        %v6537 = vpack.c.b16 %v6501, %v6499
        %v6538 = vpack.c.b16 %v6504, %v6502
        %v6539 = vpack.c.b16 %v6505, %v6503
        %v6540 = vpack.c.b16 %v6508, %v6506
        %v6541 = vpack.c.b16 %v6509, %v6507
        %6574 = vmatprep.subr.bf16.mxu0 %v6525
        %6575 = vmatpush1.bf16.msra.mxu0 %v6524
        %6576 = vmatprep.subr.bf16.mxu0 %v6523
        %6577 = vmatpush1.bf16.msra.mxu0 %v6522
        %6578 = vmatprep.subr.bf16.mxu0 %v6521
        %6579 = vmatpush1.bf16.msra.mxu0 %v6520
        %6580 = vmatprep.subr.bf16.mxu0 %v6519
        %6581 = vmatpush1.bf16.msra.mxu0 %v6518
        %6582 = vmatprep.subr.bf16.mxu0 %v6517
        %6583 = vmatpush1.bf16.msra.mxu0 %v6516
        %6584 = vmatprep.subr.bf16.mxu0 %v6515
        %6585 = vmatpush1.bf16.msra.mxu0 %v6514
        %6586 = vmatprep.subr.bf16.mxu0 %v6513
        %6587 = vmatpush1.bf16.msra.mxu0 %v6512
        %6588 = vmatprep.subr.bf16.mxu0 %v6511
        %6589 = vmatpush1.bf16.msra.mxu0 %v6510
        %6590 = vmatprep.subr.bf16.mxu0 %v6541
        %6591 = vmatpush2.bf16.msra.mxu0 %v6540
        %6592 = vmatprep.subr.bf16.mxu0 %v6539
        %6593 = vmatpush2.bf16.msra.mxu0 %v6538
        %6594 = vmatprep.subr.bf16.mxu0 %v6537
        %6595 = vmatpush2.bf16.msra.mxu0 %v6536
        %6596 = vmatprep.subr.bf16.mxu0 %v6535
        %6597 = vmatpush2.bf16.msra.mxu0 %v6534
        %6598 = vmatprep.subr.bf16.mxu0 %v6533
        %6599 = vmatpush2.bf16.msra.mxu0 %v6532
        %6600 = vmatprep.subr.bf16.mxu0 %v6531
        %6601 = vmatpush2.bf16.msra.mxu0 %v6530
        %6602 = vmatprep.subr.bf16.mxu0 %v6529
        %6603 = vmatpush2.bf16.msra.mxu0 %v6528
        %6604 = vmatprep.subr.bf16.mxu0 %v6527
        %6605 = vmatpush2.bf16.msra.mxu0 %v6526
        %6606 = vmatprep.mubr.bf16.mxu0 %v6411
        %6607 = vmatmul.mubr.bf16.gmra.mxu0 %v6410
        %v6608 = vpop.f32.mrf.mxu0
        %v6609 = vadd.f32 0.0, %v6608
        %v6610 = vpop.f32.mrf.mxu0
        %v6611 = vadd.f32 0.0, %v6610
        %v6612 = vpop.f32.mrf.mxu0
        %v6613 = vadd.f32 0.0, %v6612
        %v6614 = vpop.f32.mrf.mxu0
        %v6615 = vadd.f32 0.0, %v6614
        %6616 = vdwg.mxu0
        %v6617 = vadd.f32 %v6261, %v6609
        %v6618 = vadd.f32 %v6262, %v6611
        %v6619 = vadd.f32 %v6263, %v6613
        %v6620 = vadd.f32 %v6264, %v6615
        %v6621 = vld [vmem:[#allocation11] sm:$0x3]
        %v6623 = vlaneseq
        %v6624 = vshrl.u32 %v6623, 7
        %v6625 = vsub.s32 0, %v6624
        %v6626 = vrot.slane %v6621, %v6625
        %v6627 = vlaneseq
        %v6628 = vshrl.u32 %v6627, 7
        %v6629 = vsub.s32 1, %v6628
        %v6630 = vrot.slane %v6621, %v6629
        %v6633 = vadd.f32 %v6617, %v6626
        %v6634 = vadd.f32 %v6618, %v6630
        %v6635 = vadd.f32 %v6619, %v6626
        %v6636 = vadd.f32 %v6620, %v6630
        %v6637 = vcombine.low %v325, %v326
        %v6638 = vcombine.high %v325, %v326
        %v6639 = vcombine.low %v327, %v328
        %v6640 = vcombine.high %v327, %v328
        %v6645 = vadd.f32 %v6633, %v6637
        %v6646 = vadd.f32 %v6634, %v6638
        %v6647 = vadd.f32 %v6635, %v6639
        %v6648 = vadd.f32 %v6636, %v6640
        %v6653 = vcombine.low %v6645, %v6646
        %v6654 = vcombine.high %v6645, %v6646
        %v6655 = vcombine.low %v6647, %v6648
        %v6656 = vcombine.high %v6647, %v6648
        %6661 = vst [vmem:[%s296] sm:$0xff] %v6653
        %6662 = vst [vmem:[%s296 + $0x8] sm:$0xff] %v6654
        %6663 = vst [vmem:[%s296 + $0x10] sm:$0xff] %v6655
        %6664 = vst [vmem:[%s296 + $0x18] sm:$0xff] %v6656
        %s6665 = sand.u32 %s142, 1
        %s6666 = scalar_lea.sflag [#allocation5], %s6665
        %s6667 = sand.u32 %s142, 1
        %s6668 = smul.addr %s6667, 32
        %s6669 = scalar_lea.vmem [#allocation12], %s6668
        // Predicated region
        $region61: #{tpu_custom_call.1} parent=39 // pred_check
          %p6670 = pneg %p152
        $region62: #{tpu_custom_call.1} parent=39 // pred_check_branch
          %6672 = sbr.rel (%p6670) target = $region64
        $region63: #{tpu_custom_call.1} parent=39 // pred_region
          %s6674 = ssub.s32 512, 512
          %6675 = vsyncadd %s6666, %s6674
          %s6676 = smul.addr %s24, 8
          %s6677 = smul.addr %s6676, 64
          %s6678 = scalar_lea.hbm %s5, %s6677
          %s6679 = sshll.u32 %s6669, 4
          %s6680 = int_to_ptr.vmem [resolvable:$true] %s6679
          %6685 = dma.vmem_to_hbm [thread:$0]  %s6680, 512, %s6678, %s6666, 128, 128, 8
        $region64: #{tpu_custom_call.1} parent=39 // pred_fallthru
          _
      $region40: #{tpu_custom_call.1} parent=5 // pred_fallthru
        _
      %p6686 = scmp.le.s32.totalorder 2, %s19
      // Predicated region
      $region65: #{tpu_custom_call.1} parent=5 // pred_check
        %p6687 = pneg %p6686
      $region66: #{tpu_custom_call.1} parent=5 // pred_check_branch
        %6689 = sbr.rel (%p6687) target = $region68
      $region67: #{tpu_custom_call.1} parent=5 // pred_region
        %s6690 = ssub.s32 %s19, 2
        // Predicated region
        $region69: #{tpu_custom_call.1} parent=67 // pred_check
          %p6691 = pneg %p158
        $region70: #{tpu_custom_call.1} parent=67 // pred_check_branch
          %6693 = sbr.rel (%p6691) target = $region72
        $region71: #{tpu_custom_call.1} parent=67 // pred_region
          %s6694 = sand.u32 %s143, 1
          %s6695 = scalar_lea.sflag [#allocation5], %s6694
          %s6696 = sand.u32 %s143, 1
          %s6697 = smul.addr %s6696, 32
          %s6698 = scalar_lea.vmem [#allocation12], %s6697
          %6699 = dma.done %s6695, 512
        $region72: #{tpu_custom_call.1} parent=67 // pred_fallthru
          _
      $region68: #{tpu_custom_call.1} parent=5 // pred_fallthru
        _
    $region6: #{tpu_custom_call.1} parent=1 // loop_footer
      %s23 = sadd.s32 1, %s19
    $region7: #{tpu_custom_call.1} parent=1 // loop_footer_branch
      %18 = sbr.rel target = $region3
    $region8: #{tpu_custom_call.1} parent=1 // loop_exit
      _
    %6700 = vsyncpa [#allocation4], 1
    %s6701 = scalar_lea.sflag [#allocation4], 1
    %6702 = vsyncpa %s6701, 1
    %6703 = vsyncpa [#allocation7], 1
    %6704 = vsyncpa [#allocation10], 1
    %6705 = vsyncpa [#allocation5], 1
    %s6706 = scalar_lea.sflag [#allocation5], 1
    %6707 = vsyncpa %s6706, 1

</llo_original>
